<compile_context>
chip_gen: v5e
topology: v5e:2x2
jax: 0.10.0
libtpu: 0.0.40
codegen_flags: <defaults>
</compile_context>

<pallas_src>
import functools

import jax
import jax.numpy as jnp
import numpy as np
from jax.experimental import pallas as pl
from jax.experimental.pallas import tpu as pltpu


def _round_up(x, m):
    return (x + m - 1) // m * m


def _vmem_budget_bytes():
    """Per-chip VMEM budget with ~8 MiB headroom (v7x has only 64 MiB)."""
    cap = 64 << 20                      # conservative default = v7x per-TC VMEM
    try:
        info = pltpu.get_tpu_info()
        cap = int(getattr(info, "vmem_capacity_bytes", cap) or cap)
    except Exception:
        pass
    return max(16 << 20, min(cap - (8 << 20), 112 << 20))


# -----------------------------------------------------------------------------
# Kernel A: multi-layer LSTM over time (grid over batch chunks)
# -----------------------------------------------------------------------------
def make_lstm_stack_kernel(num_layers, seq_len, batch_c, hidden_p, unroll):
    H = hidden_p

    def kernel(*refs):
        x_ref = refs[0]                                   # (T, Bc, Ep)  bf16
        mask_ref = refs[1]                                # (T, Bc, 1)   bf16
        layer_refs = refs[2:2 + 3 * num_layers]           # per layer: w_ih_T, w_hh_T, b
        out_ref = refs[2 + 3 * num_layers]                # (T, Bc, Hp)  bf16
        ys_ref, gates_ref = refs[3 + 3 * num_layers:]     # scratch (bf16, bf16)

        for l in range(num_layers):
            w_ih = layer_refs[3 * l][...]                 # (in_p, 4Hp) bf16
            w_hh = layer_refs[3 * l + 1][...]             # (Hp, 4Hp)   bf16
            b = layer_refs[3 * l + 2][...]                # (1, 4Hp)    f32
            in_ref = x_ref if l == 0 else ys_ref
            in_dim = in_ref.shape[-1]
            is_last = l == num_layers - 1

            # Hoisted input->hidden projection: ONE large bf16 MXU matmul per
            # layer (f32 accumulate), stored as bf16 to halve scratch VMEM.
            xin = in_ref[...].reshape(seq_len * batch_c, in_dim)   # tile-aligned view
            gates_ref[...] = (
                jnp.dot(xin, w_ih, preferred_element_type=jnp.float32) + b
            ).astype(jnp.bfloat16).reshape(seq_len, batch_c, 4 * H)

            def step(t, carry, w_hh=w_hh, is_last=is_last):
                # h carried in bf16 (feeds the MXU directly), c stays f32.
                h, c = carry
                g = gates_ref[t].astype(jnp.float32) + jnp.dot(
                    h, w_hh, preferred_element_type=jnp.float32)   # (Bc, 4Hp) f32
                # Gates were repacked to (i, f, o, g) order with the i/f/o
                # preactivations pre-scaled by 0.5 in prepare_kernel_params, so
                # a single EUP tanh pass covers all four gate blocks:
                #   sigmoid(x) = 0.5 * tanh(x / 2) + 0.5
                t_all = jnp.tanh(g)
                sig = 0.5 * t_all[:, 0:3 * H] + 0.5
                i_g = sig[:, 0 * H:1 * H]
                f_g = sig[:, 1 * H:2 * H]
                o_g = sig[:, 2 * H:3 * H]
                g_g = t_all[:, 3 * H:4 * H]
                c_new = f_g * c + i_g * g_g
                h_new = (o_g * jnp.tanh(c_new)).astype(jnp.bfloat16)
                if is_last:
                    out_ref[t] = h_new
                else:
                    # Safe in-place reuse: this layer's input was already fully
                    # consumed by the hoisted matmul above.
                    ys_ref[t] = h_new
                return h_new, c_new

            h0 = jnp.zeros((batch_c, H), jnp.bfloat16)
            c0 = jnp.zeros((batch_c, H), jnp.float32)
            jax.lax.fori_loop(0, seq_len, step, (h0, c0), unroll=unroll)

        # pack/pad semantics: zero outputs at t >= length[b] with one whole-array
        # VPU pass (mask hoisted out of the per-step store).
        out_ref[...] = (out_ref[...] * mask_ref[...]).astype(out_ref.dtype)

    return kernel


# -----------------------------------------------------------------------------
# Kernel B: tiled hidden2out projection
# -----------------------------------------------------------------------------
def projection_kernel(y_ref, w_ref, b_ref, out_ref):
    out_ref[...] = (
        jnp.dot(y_ref[...], w_ref[...], preferred_element_type=jnp.float32)
        + b_ref[...])


# -----------------------------------------------------------------------------
# Parameter prep: pad to (sublane, lane)-friendly shapes, gate repack + scale,
# bf16 MXU inputs (biases / accumulation / cell state stay f32).
# -----------------------------------------------------------------------------
def prepare_kernel_params(params, num_layers, emb_size, hidden_size, vocab_size):
    H, E, V = hidden_size, emb_size, vocab_size
    Hp, Ep, Vp = _round_up(H, 128), _round_up(E, 128), _round_up(V, 128)
    kp = {}

    # Embedding table pre-padded to Ep and pre-cast to bf16 so jnp.take emits
    # kernel-ready bf16 activations directly (no extra f32 pad/convert pass).
    kp["embedding"] = jnp.pad(
        params["embedding"], ((0, 0), (0, Ep - E))).astype(jnp.bfloat16)

    # PyTorch gate order (i, f, g, o) -> (i, f, o, g); scale i/f/o preactivations
    # by 0.5 so the kernel needs a single tanh for all four gates.
    order = np.array([0, 1, 3, 2])
    scale = jnp.array([0.5, 0.5, 0.5, 1.0], jnp.float32)

    for l in range(num_layers):
        in_dim = E if l == 0 else H
        in_p = Ep if l == 0 else Hp

        w_ih = params[f"w_ih_{l}"].reshape(4, H, in_dim)[order]     # gate-major
        w_ih = w_ih * scale[:, None, None]
        w_ih = jnp.pad(w_ih, ((0, 0), (0, Hp - H), (0, in_p - in_dim)))
        kp[f"w_ih_T_{l}"] = (w_ih.transpose(2, 0, 1)
                             .reshape(in_p, 4 * Hp).astype(jnp.bfloat16))

        w_hh = params[f"w_hh_{l}"].reshape(4, H, H)[order]
        w_hh = w_hh * scale[:, None, None]
        w_hh = jnp.pad(w_hh, ((0, 0), (0, Hp - H), (0, Hp - H)))
        kp[f"w_hh_T_{l}"] = (w_hh.transpose(2, 0, 1)
                             .reshape(Hp, 4 * Hp).astype(jnp.bfloat16))

        b = (params[f"b_ih_{l}"] + params[f"b_hh_{l}"]).reshape(4, H)[order]
        b = b * scale[:, None]
        b = jnp.pad(b, ((0, 0), (0, Hp - H)))
        kp[f"b_{l}"] = b.reshape(1, 4 * Hp).astype(jnp.float32)

    w_out = jnp.pad(params["w_out"], ((0, Vp - V), (0, Hp - H)))
    kp["w_out_T"] = w_out.T.astype(jnp.bfloat16)                    # (Hp, Vp)
    kp["b_out"] = jnp.pad(params["b_out"], (0, Vp - V)).reshape(1, Vp).astype(jnp.float32)
    return kp


# -----------------------------------------------------------------------------
# Wrapper
# -----------------------------------------------------------------------------
def rnnlm_forward(input_ids, lengths, params, *, num_layers, emb_size,
                  hidden_size, vocab_size):
    T, B = input_ids.shape
    H, E, V = hidden_size, emb_size, vocab_size
    Hp, Ep, Vp = _round_up(H, 128), _round_up(E, 128), _round_up(V, 128)

    vmem_budget = _vmem_budget_bytes()

    # Batch padding / chunking: >=2 chunks when batch allows (v7x 2-TC parallel
    # axis), more if the per-program (bf16 ys + bf16 gates) scratch is too big.
    Bp = _round_up(B, 16)                           # 16 = bf16 sublane packing
    row_scratch = T * Hp * 2 + T * 4 * Hp * 2       # scratch bytes per batch row
    if Bp >= 32:
        Bc = _round_up((Bp + 1) // 2, 16)
        while Bc > 16 and Bc * row_scratch > vmem_budget // 4:
            Bc = _round_up((Bc + 1) // 2, 16)
        Bp = _round_up(Bp, Bc)
    else:
        Bc = Bp
    grid_b = Bp // Bc

    kp = prepare_kernel_params(params, num_layers, E, H, V)

    # Glue (outside kernels): embedding gather straight into padded bf16,
    # trailing-padding validity mask (lengths sorted descending, max == T).
    ids_p = jnp.pad(input_ids, ((0, 0), (0, Bp - B)))
    emb = jnp.take(kp["embedding"], ids_p, axis=0)                  # (T,Bp,Ep) bf16
    lengths_p = jnp.pad(lengths, (0, Bp - B))
    mask = (jnp.arange(T)[:, None] < lengths_p[None, :])
    mask = mask[:, :, None].astype(jnp.bfloat16)                    # (T,Bp,1)

    # Unroll factor capped by per-step live state (h, c, gate temporaries).
    if Bc >= 32 or Hp >= 512:
        unroll = 2 if T % 2 == 0 else 1
    elif T <= 32:
        unroll = True
    else:
        unroll = next(u for u in (8, 4, 2, 1) if T % u == 0)

    # ---------------- kernel A: LSTM stack ----------------
    weight_bytes = 0
    for l in range(num_layers):
        in_p = Ep if l == 0 else Hp
        weight_bytes += (in_p + Hp) * 4 * Hp * 2 + 4 * Hp * 4
    act_block_bytes = T * Bc * (Ep * 2 + 128 * 2 + Hp * 2)   # emb + padded mask + out
    lstm_bytes = 2 * weight_bytes + 2 * act_block_bytes + Bc * row_scratch + (2 << 20)
    vmem_a = int(min(vmem_budget, max(4 << 20, lstm_bytes)))

    lstm_flops = sum(2 * T * Bp * ((Ep if l == 0 else Hp) + Hp) * 4 * Hp
                     for l in range(num_layers))
    cost_a = pl.CostEstimate(
        flops=int(lstm_flops),
        transcendentals=int(T * Bp * num_layers * 5 * Hp),
        bytes_accessed=int(T * Bp * (Ep + Hp) * 2 + weight_bytes))

    lstm_inputs = [emb, mask]
    in_specs_a = [
        pl.BlockSpec((T, Bc, Ep), lambda b: (0, b, 0)),
        pl.BlockSpec((T, Bc, 1), lambda b: (0, b, 0)),
    ]
    for l in range(num_layers):
        for name in (f"w_ih_T_{l}", f"w_hh_T_{l}", f"b_{l}"):
            arr = kp[name]
            lstm_inputs.append(arr)
            in_specs_a.append(pl.BlockSpec(arr.shape, lambda b: (0, 0)))

    y = pl.pallas_call(
        make_lstm_stack_kernel(num_layers, T, Bc, Hp, unroll),
        out_shape=jax.ShapeDtypeStruct((T, Bp, Hp), jnp.bfloat16),
        grid=(grid_b,),
        in_specs=in_specs_a,
        out_specs=pl.BlockSpec((T, Bc, Hp), lambda b: (0, b, 0)),
        scratch_shapes=[
            pltpu.VMEM((T, Bc, Hp), jnp.bfloat16),        # layer output buffer
            pltpu.VMEM((T, Bc, 4 * Hp), jnp.bfloat16),    # hoisted x@W_ih gates
        ],
        compiler_params=pltpu.CompilerParams(
            dimension_semantics=("parallel",),
            vmem_limit_bytes=vmem_a),
        cost_estimate=cost_a,
    )(*lstm_inputs)

    # ---------------- kernel B: tiled hidden2out projection ----------------
    M = T * Bp
    Mp = _round_up(M, 256)                       # MXU-shaped row tiles (tm=256)
    y2 = y.reshape(M, Hp)
    if Mp != M:
        y2 = jnp.pad(y2, ((0, Mp - M), (0, 0)))

    tm = min(256, Mp)
    tn = 128
    for cand in (2048, 1024, 512, 256, 128):
        if cand <= Vp and Vp % cand == 0:
            blk = 2 * (tm * Hp * 2 + Hp * cand * 2 + cand * 4 + tm * cand * 4)
            if blk <= max(vmem_budget - (8 << 20), 8 << 20):
                tn = cand
                break

    proj_bytes = 2 * (tm * Hp * 2 + Hp * tn * 2 + tn * 4 + tm * tn * 4) + (2 << 20)
    vmem_b = int(min(vmem_budget, max(4 << 20, proj_bytes)))

    cost_b = pl.CostEstimate(
        flops=int(2 * Mp * Hp * Vp), transcendentals=0,
        bytes_accessed=int(Mp * Hp * 2 + Hp * Vp * 2 + Vp * 4 + Mp * Vp * 4))

    # Put the larger operand on the slow (outer) grid axis so its tile stays
    # resident (fetched once) while the smaller operand streams under it.
    if Hp * Vp >= Mp * Hp:                       # W_out dominates -> vocab outer
        grid_p = (Vp // tn, Mp // tm)
        in_specs_b = [pl.BlockSpec((tm, Hp), lambda j, i: (i, 0)),
                      pl.BlockSpec((Hp, tn), lambda j, i: (0, j)),
                      pl.BlockSpec((1, tn), lambda j, i: (0, j))]
        out_spec_b = pl.BlockSpec((tm, tn), lambda j, i: (i, j))
    else:                                        # activations dominate -> rows outer
        grid_p = (Mp // tm, Vp // tn)
        in_specs_b = [pl.BlockSpec((tm, Hp), lambda i, j: (i, 0)),
                      pl.BlockSpec((Hp, tn), lambda i, j: (0, j)),
                      pl.BlockSpec((1, tn), lambda i, j: (0, j))]
        out_spec_b = pl.BlockSpec((tm, tn), lambda i, j: (i, j))

    logits_p = pl.pallas_call(
        projection_kernel,
        out_shape=jax.ShapeDtypeStruct((Mp, Vp), jnp.float32),
        grid=grid_p,
        in_specs=in_specs_b,
        out_specs=out_spec_b,
        compiler_params=pltpu.CompilerParams(
            dimension_semantics=("parallel", "parallel"),
            vmem_limit_bytes=vmem_b),
        cost_estimate=cost_b,
    )(y2, kp["w_out_T"], kp["b_out"])

    logits = logits_p[:M].reshape(T, Bp, Vp)[:, :B, :V]
    return logits


# -----------------------------------------------------------------------------
# Pure-JAX f32 reference (PyTorch semantics)
# -----------------------------------------------------------------------------
def rnnlm_reference(input_ids, lengths, params, *, num_layers, hidden_size,
                    vocab_size):
    T, B = input_ids.shape
    x = jnp.take(params["embedding"], input_ids, axis=0)
    for l in range(num_layers):
        w_ih = params[f"w_ih_{l}"]
        w_hh = params[f"w_hh_{l}"]
        b = params[f"b_ih_{l}"] + params[f"b_hh_{l}"]

        def step(carry, xt, w_ih=w_ih, w_hh=w_hh, b=b):
            h, c = carry
            gates = xt @ w_ih.T + h @ w_hh.T + b
            i_g, f_g, g_g, o_g = jnp.split(gates, 4, axis=-1)
            c = jax.nn.sigmoid(f_g) * c + jax.nn.sigmoid(i_g) * jnp.tanh(g_g)
            h = jax.nn.sigmoid(o_g) * jnp.tanh(c)
            return (h, c), h

        init = (jnp.zeros((B, hidden_size), jnp.float32),
                jnp.zeros((B, hidden_size), jnp.float32))
        _, x = jax.lax.scan(step, init, x)

    mask = (jnp.arange(T)[:, None] < lengths[None, :]).astype(jnp.float32)
    y = x * mask[:, :, None]
    logits = y.reshape(T * B, hidden_size) @ params["w_out"].T + params["b_out"]
    return logits.reshape(T, B, vocab_size)


# -----------------------------------------------------------------------------
# Deterministic init (PyTorch-like shapes)
# -----------------------------------------------------------------------------
def init_params(key, vocab_size, emb_size, hidden_size, num_layers, pad_idx):
    params = {}
    k_scale = 1.0 / np.sqrt(hidden_size)

    key, sub = jax.random.split(key)
    emb = jax.random.normal(sub, (vocab_size, emb_size), jnp.float32)
    emb = emb.at[pad_idx].set(0.0)                       # padding_idx row is zero
    params["embedding"] = emb

    for l in range(num_layers):
        in_dim = emb_size if l == 0 else hidden_size
        key, k1, k2, k3, k4 = jax.random.split(key, 5)
        params[f"w_ih_{l}"] = jax.random.uniform(
            k1, (4 * hidden_size, in_dim), jnp.float32, -k_scale, k_scale)
        params[f"w_hh_{l}"] = jax.random.uniform(
            k2, (4 * hidden_size, hidden_size), jnp.float32, -k_scale, k_scale)
        params[f"b_ih_{l}"] = jax.random.uniform(
            k3, (4 * hidden_size,), jnp.float32, -k_scale, k_scale)
        params[f"b_hh_{l}"] = jax.random.uniform(
            k4, (4 * hidden_size,), jnp.float32, -k_scale, k_scale)

    key, k1, k2 = jax.random.split(key, 3)
    params["w_out"] = jax.random.uniform(
        k1, (vocab_size, hidden_size), jnp.float32, -k_scale, k_scale)
    params["b_out"] = jax.random.uniform(
        k2, (vocab_size,), jnp.float32, -k_scale, k_scale)
    return params


if __name__ == "__main__":
    vocab_size, emb_size, hidden_size, num_layers, pad_idx = 64, 16, 32, 2, 0
    seq_len, batch = 8, 4

    key = jax.random.PRNGKey(0)
    params = init_params(key, vocab_size, emb_size, hidden_size, num_layers,
                         pad_idx)

    # lengths sorted descending (pack_padded_sequence enforce_sorted=True),
    # max length == seq_len so that out.view(seq_len*batch, H) is valid.
    lengths = jnp.array([8, 6, 5, 3], dtype=jnp.int32)
    key, sub = jax.random.split(key)
    ids = jax.random.randint(sub, (seq_len, batch), 1, vocab_size,
                             dtype=jnp.int32)
    pad_mask = jnp.arange(seq_len)[:, None] >= lengths[None, :]
    input_ids = jnp.where(pad_mask, pad_idx, ids)

    fwd = functools.partial(rnnlm_forward, num_layers=num_layers,
                            emb_size=emb_size, hidden_size=hidden_size,
                            vocab_size=vocab_size)
    out = jax.jit(fwd)(input_ids, lengths, params)
    out = jax.block_until_ready(out)

    ref = rnnlm_reference(input_ids, lengths, params, num_layers=num_layers,
                          hidden_size=hidden_size, vocab_size=vocab_size)
    # bf16 MXU inputs / bf16 gate scratch with f32 accumulation -> loosened
    # tolerance vs the pure-f32 reference.
    np.testing.assert_allclose(np.asarray(out), np.asarray(ref),
                               rtol=5e-2, atol=3e-2)

    assert out.shape == (seq_len, batch, vocab_size)
    print("KERNEL_OK")
</pallas_src>

<mosaic_0001>
module attributes {stable_mosaic.version = 11 : i64} {
  func.func @kernel(%arg0: i32, %arg1: memref<8x16x128xbf16, #tpu.memory_space<vmem>>, %arg2: memref<8x16x1xbf16, #tpu.memory_space<vmem>>, %arg3: memref<128x512xbf16, #tpu.memory_space<vmem>>, %arg4: memref<128x512xbf16, #tpu.memory_space<vmem>>, %arg5: memref<1x512xf32, #tpu.memory_space<vmem>>, %arg6: memref<128x512xbf16, #tpu.memory_space<vmem>>, %arg7: memref<128x512xbf16, #tpu.memory_space<vmem>>, %arg8: memref<1x512xf32, #tpu.memory_space<vmem>>, %arg9: memref<8x16x128xbf16, #tpu.memory_space<vmem>>, %arg10: memref<8x16x128xbf16, #tpu.memory_space<vmem>>, %arg11: memref<8x16x512xbf16, #tpu.memory_space<vmem>>) attributes {dimension_semantics = [#tpu.dimension_semantics<parallel>], iteration_bounds = array<i64: 1>, scalar_prefetch = 0 : i64, scratch_operands = 2 : i64, tpu.core_type = #tpu.core_type<tc>, window_params = [{transform_indices = @transform_0, window_bounds = array<i64: 8, 16, 128>}, {transform_indices = @transform_1, window_bounds = array<i64: 8, 16, 1>}, {pipeline_mode = #tpu.pipeline_mode<synchronous>, transform_indices = @transform_2, window_bounds = array<i64: 128, 512>}, {pipeline_mode = #tpu.pipeline_mode<synchronous>, transform_indices = @transform_3, window_bounds = array<i64: 128, 512>}, {pipeline_mode = #tpu.pipeline_mode<synchronous>, transform_indices = @transform_4, window_bounds = array<i64: 1, 512>}, {pipeline_mode = #tpu.pipeline_mode<synchronous>, transform_indices = @transform_5, window_bounds = array<i64: 128, 512>}, {pipeline_mode = #tpu.pipeline_mode<synchronous>, transform_indices = @transform_6, window_bounds = array<i64: 128, 512>}, {pipeline_mode = #tpu.pipeline_mode<synchronous>, transform_indices = @transform_7, window_bounds = array<i64: 1, 512>}, {transform_indices = @transform_8, window_bounds = array<i64: 8, 16, 128>}]} {
    %c0 = arith.constant 0 : index
    %c0_0 = arith.constant 0 : index
    %0 = vector.load %arg3[%c0, %c0_0] : memref<128x512xbf16, #tpu.memory_space<vmem>>, vector<128x512xbf16>
    %c0_1 = arith.constant 0 : index
    %c0_2 = arith.constant 0 : index
    %1 = vector.load %arg4[%c0_1, %c0_2] : memref<128x512xbf16, #tpu.memory_space<vmem>>, vector<128x512xbf16>
    %c0_3 = arith.constant 0 : index
    %c0_4 = arith.constant 0 : index
    %2 = vector.load %arg5[%c0_3, %c0_4] : memref<1x512xf32, #tpu.memory_space<vmem>>, vector<1x512xf32>
    %c0_5 = arith.constant 0 : index
    %c0_6 = arith.constant 0 : index
    %c0_7 = arith.constant 0 : index
    %3 = vector.load %arg1[%c0_5, %c0_6, %c0_7] : memref<8x16x128xbf16, #tpu.memory_space<vmem>>, vector<8x16x128xbf16>
    %4 = vector.shape_cast %3 : vector<8x16x128xbf16> to vector<128x128xbf16>
    %cst = arith.constant dense<0.000000e+00> : vector<128x512xf32>
    %5 = tpu.matmul %4, %0, %cst {dimension_numbers = #tpu.dot_dimension_numbers<[1], [0], [0], [1], [0, 0, 1, 1], [], []>} : vector<128x128xbf16>, vector<128x512xbf16>, vector<128x512xf32> -> vector<128x512xf32>
    %6 = vector.broadcast %2 : vector<1x512xf32> to vector<128x512xf32>
    %7 = arith.addf %5, %6 : vector<128x512xf32>
    %8 = arith.truncf %7 : vector<128x512xf32> to vector<128x512xbf16>
    %9 = vector.shape_cast %8 : vector<128x512xbf16> to vector<8x16x512xbf16>
    %c0_8 = arith.constant 0 : index
    %c0_9 = arith.constant 0 : index
    %c0_10 = arith.constant 0 : index
    %10 = vector.load %arg11[%c0_8, %c0_9, %c0_10] : memref<8x16x512xbf16, #tpu.memory_space<vmem>>, vector<8x16x512xbf16>
    tpu.vector_store %arg11[%c0_8, %c0_9, %c0_10], %9 {strides = array<i32>} : memref<8x16x512xbf16, #tpu.memory_space<vmem>>, vector<8x16x512xbf16>,
    %cst_11 = arith.constant 0.000000e+00 : bf16
    %11 = vector.broadcast %cst_11 : bf16 to vector<16x128xbf16>
    %cst_12 = arith.constant 0.000000e+00 : f32
    %12 = vector.broadcast %cst_12 : f32 to vector<16x128xf32>
    %c0_i32 = arith.constant 0 : i32
    %13 = arith.index_cast %c0_i32 : i32 to index
    %c0_13 = arith.constant 0 : index
    %c0_14 = arith.constant 0 : index
    %14 = vector.load %arg11[%13, %c0_13, %c0_14] : memref<8x16x512xbf16, #tpu.memory_space<vmem>>, vector<1x16x512xbf16>
    %15 = vector.shape_cast %14 : vector<1x16x512xbf16> to vector<16x512xbf16>
    %16 = arith.extf %15 : vector<16x512xbf16> to vector<16x512xf32>
    %cst_15 = arith.constant dense<0.000000e+00> : vector<16x512xf32>
    %17 = tpu.matmul %11, %1, %cst_15 {dimension_numbers = #tpu.dot_dimension_numbers<[1], [0], [0], [1], [0, 0, 1, 1], [], []>} : vector<16x128xbf16>, vector<128x512xbf16>, vector<16x512xf32> -> vector<16x512xf32>
    %18 = arith.addf %16, %17 : vector<16x512xf32>
    %19 = math.tanh %18 : vector<16x512xf32>
    %20 = vector.extract_strided_slice %19 {offsets = [0, 0], sizes = [16, 384], strides = [1, 1]} : vector<16x512xf32> to vector<16x384xf32>
    %cst_16 = arith.constant 5.000000e-01 : f32
    %21 = vector.broadcast %cst_16 : f32 to vector<16x384xf32>
    %22 = arith.mulf %21, %20 : vector<16x384xf32>
    %cst_17 = arith.constant 5.000000e-01 : f32
    %23 = vector.broadcast %cst_17 : f32 to vector<16x384xf32>
    %24 = arith.addf %22, %23 : vector<16x384xf32>
    %25 = vector.extract_strided_slice %24 {offsets = [0, 0], sizes = [16, 128], strides = [1, 1]} : vector<16x384xf32> to vector<16x128xf32>
    %26 = vector.extract_strided_slice %24 {offsets = [0, 128], sizes = [16, 128], strides = [1, 1]} : vector<16x384xf32> to vector<16x128xf32>
    %27 = vector.extract_strided_slice %24 {offsets = [0, 256], sizes = [16, 128], strides = [1, 1]} : vector<16x384xf32> to vector<16x128xf32>
    %28 = vector.extract_strided_slice %19 {offsets = [0, 384], sizes = [16, 128], strides = [1, 1]} : vector<16x512xf32> to vector<16x128xf32>
    %29 = arith.mulf %26, %12 : vector<16x128xf32>
    %30 = arith.mulf %25, %28 : vector<16x128xf32>
    %31 = arith.addf %29, %30 : vector<16x128xf32>
    %32 = math.tanh %31 : vector<16x128xf32>
    %33 = arith.mulf %27, %32 : vector<16x128xf32>
    %34 = arith.truncf %33 : vector<16x128xf32> to vector<16x128xbf16>
    %35 = arith.index_cast %c0_i32 : i32 to index
    %c0_18 = arith.constant 0 : index
    %c0_19 = arith.constant 0 : index
    %36 = vector.load %arg10[%35, %c0_18, %c0_19] : memref<8x16x128xbf16, #tpu.memory_space<vmem>>, vector<1x16x128xbf16>
    %37 = vector.shape_cast %36 : vector<1x16x128xbf16> to vector<16x128xbf16>
    %38 = vector.shape_cast %34 : vector<16x128xbf16> to vector<1x16x128xbf16>
    tpu.vector_store %arg10[%35, %c0_18, %c0_19], %38 {strides = array<i32>} : memref<8x16x128xbf16, #tpu.memory_space<vmem>>, vector<1x16x128xbf16>,
    %c1_i32 = arith.constant 1 : i32
    %39 = arith.index_cast %c1_i32 : i32 to index
    %c0_20 = arith.constant 0 : index
    %c0_21 = arith.constant 0 : index
    %40 = vector.load %arg11[%39, %c0_20, %c0_21] : memref<8x16x512xbf16, #tpu.memory_space<vmem>>, vector<1x16x512xbf16>
    %41 = vector.shape_cast %40 : vector<1x16x512xbf16> to vector<16x512xbf16>
    %42 = arith.extf %41 : vector<16x512xbf16> to vector<16x512xf32>
    %cst_22 = arith.constant dense<0.000000e+00> : vector<16x512xf32>
    %43 = tpu.matmul %34, %1, %cst_22 {dimension_numbers = #tpu.dot_dimension_numbers<[1], [0], [0], [1], [0, 0, 1, 1], [], []>} : vector<16x128xbf16>, vector<128x512xbf16>, vector<16x512xf32> -> vector<16x512xf32>
    %44 = arith.addf %42, %43 : vector<16x512xf32>
    %45 = math.tanh %44 : vector<16x512xf32>
    %46 = vector.extract_strided_slice %45 {offsets = [0, 0], sizes = [16, 384], strides = [1, 1]} : vector<16x512xf32> to vector<16x384xf32>
    %cst_23 = arith.constant 5.000000e-01 : f32
    %47 = vector.broadcast %cst_23 : f32 to vector<16x384xf32>
    %48 = arith.mulf %47, %46 : vector<16x384xf32>
    %cst_24 = arith.constant 5.000000e-01 : f32
    %49 = vector.broadcast %cst_24 : f32 to vector<16x384xf32>
    %50 = arith.addf %48, %49 : vector<16x384xf32>
    %51 = vector.extract_strided_slice %50 {offsets = [0, 0], sizes = [16, 128], strides = [1, 1]} : vector<16x384xf32> to vector<16x128xf32>
    %52 = vector.extract_strided_slice %50 {offsets = [0, 128], sizes = [16, 128], strides = [1, 1]} : vector<16x384xf32> to vector<16x128xf32>
    %53 = vector.extract_strided_slice %50 {offsets = [0, 256], sizes = [16, 128], strides = [1, 1]} : vector<16x384xf32> to vector<16x128xf32>
    %54 = vector.extract_strided_slice %45 {offsets = [0, 384], sizes = [16, 128], strides = [1, 1]} : vector<16x512xf32> to vector<16x128xf32>
    %55 = arith.mulf %52, %31 : vector<16x128xf32>
    %56 = arith.mulf %51, %54 : vector<16x128xf32>
    %57 = arith.addf %55, %56 : vector<16x128xf32>
    %58 = math.tanh %57 : vector<16x128xf32>
    %59 = arith.mulf %53, %58 : vector<16x128xf32>
    %60 = arith.truncf %59 : vector<16x128xf32> to vector<16x128xbf16>
    %61 = arith.index_cast %c1_i32 : i32 to index
    %c0_25 = arith.constant 0 : index
    %c0_26 = arith.constant 0 : index
    %62 = vector.load %arg10[%61, %c0_25, %c0_26] : memref<8x16x128xbf16, #tpu.memory_space<vmem>>, vector<1x16x128xbf16>
    %63 = vector.shape_cast %62 : vector<1x16x128xbf16> to vector<16x128xbf16>
    %64 = vector.shape_cast %60 : vector<16x128xbf16> to vector<1x16x128xbf16>
    tpu.vector_store %arg10[%61, %c0_25, %c0_26], %64 {strides = array<i32>} : memref<8x16x128xbf16, #tpu.memory_space<vmem>>, vector<1x16x128xbf16>,
    %c2_i32 = arith.constant 2 : i32
    %65 = arith.index_cast %c2_i32 : i32 to index
    %c0_27 = arith.constant 0 : index
    %c0_28 = arith.constant 0 : index
    %66 = vector.load %arg11[%65, %c0_27, %c0_28] : memref<8x16x512xbf16, #tpu.memory_space<vmem>>, vector<1x16x512xbf16>
    %67 = vector.shape_cast %66 : vector<1x16x512xbf16> to vector<16x512xbf16>
    %68 = arith.extf %67 : vector<16x512xbf16> to vector<16x512xf32>
    %cst_29 = arith.constant dense<0.000000e+00> : vector<16x512xf32>
    %69 = tpu.matmul %60, %1, %cst_29 {dimension_numbers = #tpu.dot_dimension_numbers<[1], [0], [0], [1], [0, 0, 1, 1], [], []>} : vector<16x128xbf16>, vector<128x512xbf16>, vector<16x512xf32> -> vector<16x512xf32>
    %70 = arith.addf %68, %69 : vector<16x512xf32>
    %71 = math.tanh %70 : vector<16x512xf32>
    %72 = vector.extract_strided_slice %71 {offsets = [0, 0], sizes = [16, 384], strides = [1, 1]} : vector<16x512xf32> to vector<16x384xf32>
    %cst_30 = arith.constant 5.000000e-01 : f32
    %73 = vector.broadcast %cst_30 : f32 to vector<16x384xf32>
    %74 = arith.mulf %73, %72 : vector<16x384xf32>
    %cst_31 = arith.constant 5.000000e-01 : f32
    %75 = vector.broadcast %cst_31 : f32 to vector<16x384xf32>
    %76 = arith.addf %74, %75 : vector<16x384xf32>
    %77 = vector.extract_strided_slice %76 {offsets = [0, 0], sizes = [16, 128], strides = [1, 1]} : vector<16x384xf32> to vector<16x128xf32>
    %78 = vector.extract_strided_slice %76 {offsets = [0, 128], sizes = [16, 128], strides = [1, 1]} : vector<16x384xf32> to vector<16x128xf32>
    %79 = vector.extract_strided_slice %76 {offsets = [0, 256], sizes = [16, 128], strides = [1, 1]} : vector<16x384xf32> to vector<16x128xf32>
    %80 = vector.extract_strided_slice %71 {offsets = [0, 384], sizes = [16, 128], strides = [1, 1]} : vector<16x512xf32> to vector<16x128xf32>
    %81 = arith.mulf %78, %57 : vector<16x128xf32>
    %82 = arith.mulf %77, %80 : vector<16x128xf32>
    %83 = arith.addf %81, %82 : vector<16x128xf32>
    %84 = math.tanh %83 : vector<16x128xf32>
    %85 = arith.mulf %79, %84 : vector<16x128xf32>
    %86 = arith.truncf %85 : vector<16x128xf32> to vector<16x128xbf16>
    %87 = arith.index_cast %c2_i32 : i32 to index
    %c0_32 = arith.constant 0 : index
    %c0_33 = arith.constant 0 : index
    %88 = vector.load %arg10[%87, %c0_32, %c0_33] : memref<8x16x128xbf16, #tpu.memory_space<vmem>>, vector<1x16x128xbf16>
    %89 = vector.shape_cast %88 : vector<1x16x128xbf16> to vector<16x128xbf16>
    %90 = vector.shape_cast %86 : vector<16x128xbf16> to vector<1x16x128xbf16>
    tpu.vector_store %arg10[%87, %c0_32, %c0_33], %90 {strides = array<i32>} : memref<8x16x128xbf16, #tpu.memory_space<vmem>>, vector<1x16x128xbf16>,
    %c3_i32 = arith.constant 3 : i32
    %91 = arith.index_cast %c3_i32 : i32 to index
    %c0_34 = arith.constant 0 : index
    %c0_35 = arith.constant 0 : index
    %92 = vector.load %arg11[%91, %c0_34, %c0_35] : memref<8x16x512xbf16, #tpu.memory_space<vmem>>, vector<1x16x512xbf16>
    %93 = vector.shape_cast %92 : vector<1x16x512xbf16> to vector<16x512xbf16>
    %94 = arith.extf %93 : vector<16x512xbf16> to vector<16x512xf32>
    %cst_36 = arith.constant dense<0.000000e+00> : vector<16x512xf32>
    %95 = tpu.matmul %86, %1, %cst_36 {dimension_numbers = #tpu.dot_dimension_numbers<[1], [0], [0], [1], [0, 0, 1, 1], [], []>} : vector<16x128xbf16>, vector<128x512xbf16>, vector<16x512xf32> -> vector<16x512xf32>
    %96 = arith.addf %94, %95 : vector<16x512xf32>
    %97 = math.tanh %96 : vector<16x512xf32>
    %98 = vector.extract_strided_slice %97 {offsets = [0, 0], sizes = [16, 384], strides = [1, 1]} : vector<16x512xf32> to vector<16x384xf32>
    %cst_37 = arith.constant 5.000000e-01 : f32
    %99 = vector.broadcast %cst_37 : f32 to vector<16x384xf32>
    %100 = arith.mulf %99, %98 : vector<16x384xf32>
    %cst_38 = arith.constant 5.000000e-01 : f32
    %101 = vector.broadcast %cst_38 : f32 to vector<16x384xf32>
    %102 = arith.addf %100, %101 : vector<16x384xf32>
    %103 = vector.extract_strided_slice %102 {offsets = [0, 0], sizes = [16, 128], strides = [1, 1]} : vector<16x384xf32> to vector<16x128xf32>
    %104 = vector.extract_strided_slice %102 {offsets = [0, 128], sizes = [16, 128], strides = [1, 1]} : vector<16x384xf32> to vector<16x128xf32>
    %105 = vector.extract_strided_slice %102 {offsets = [0, 256], sizes = [16, 128], strides = [1, 1]} : vector<16x384xf32> to vector<16x128xf32>
    %106 = vector.extract_strided_slice %97 {offsets = [0, 384], sizes = [16, 128], strides = [1, 1]} : vector<16x512xf32> to vector<16x128xf32>
    %107 = arith.mulf %104, %83 : vector<16x128xf32>
    %108 = arith.mulf %103, %106 : vector<16x128xf32>
    %109 = arith.addf %107, %108 : vector<16x128xf32>
    %110 = math.tanh %109 : vector<16x128xf32>
    %111 = arith.mulf %105, %110 : vector<16x128xf32>
    %112 = arith.truncf %111 : vector<16x128xf32> to vector<16x128xbf16>
    %113 = arith.index_cast %c3_i32 : i32 to index
    %c0_39 = arith.constant 0 : index
    %c0_40 = arith.constant 0 : index
    %114 = vector.load %arg10[%113, %c0_39, %c0_40] : memref<8x16x128xbf16, #tpu.memory_space<vmem>>, vector<1x16x128xbf16>
    %115 = vector.shape_cast %114 : vector<1x16x128xbf16> to vector<16x128xbf16>
    %116 = vector.shape_cast %112 : vector<16x128xbf16> to vector<1x16x128xbf16>
    tpu.vector_store %arg10[%113, %c0_39, %c0_40], %116 {strides = array<i32>} : memref<8x16x128xbf16, #tpu.memory_space<vmem>>, vector<1x16x128xbf16>,
    %c4_i32 = arith.constant 4 : i32
    %117 = arith.index_cast %c4_i32 : i32 to index
    %c0_41 = arith.constant 0 : index
    %c0_42 = arith.constant 0 : index
    %118 = vector.load %arg11[%117, %c0_41, %c0_42] : memref<8x16x512xbf16, #tpu.memory_space<vmem>>, vector<1x16x512xbf16>
    %119 = vector.shape_cast %118 : vector<1x16x512xbf16> to vector<16x512xbf16>
    %120 = arith.extf %119 : vector<16x512xbf16> to vector<16x512xf32>
    %cst_43 = arith.constant dense<0.000000e+00> : vector<16x512xf32>
    %121 = tpu.matmul %112, %1, %cst_43 {dimension_numbers = #tpu.dot_dimension_numbers<[1], [0], [0], [1], [0, 0, 1, 1], [], []>} : vector<16x128xbf16>, vector<128x512xbf16>, vector<16x512xf32> -> vector<16x512xf32>
    %122 = arith.addf %120, %121 : vector<16x512xf32>
    %123 = math.tanh %122 : vector<16x512xf32>
    %124 = vector.extract_strided_slice %123 {offsets = [0, 0], sizes = [16, 384], strides = [1, 1]} : vector<16x512xf32> to vector<16x384xf32>
    %cst_44 = arith.constant 5.000000e-01 : f32
    %125 = vector.broadcast %cst_44 : f32 to vector<16x384xf32>
    %126 = arith.mulf %125, %124 : vector<16x384xf32>
    %cst_45 = arith.constant 5.000000e-01 : f32
    %127 = vector.broadcast %cst_45 : f32 to vector<16x384xf32>
    %128 = arith.addf %126, %127 : vector<16x384xf32>
    %129 = vector.extract_strided_slice %128 {offsets = [0, 0], sizes = [16, 128], strides = [1, 1]} : vector<16x384xf32> to vector<16x128xf32>
    %130 = vector.extract_strided_slice %128 {offsets = [0, 128], sizes = [16, 128], strides = [1, 1]} : vector<16x384xf32> to vector<16x128xf32>
    %131 = vector.extract_strided_slice %128 {offsets = [0, 256], sizes = [16, 128], strides = [1, 1]} : vector<16x384xf32> to vector<16x128xf32>
    %132 = vector.extract_strided_slice %123 {offsets = [0, 384], sizes = [16, 128], strides = [1, 1]} : vector<16x512xf32> to vector<16x128xf32>
    %133 = arith.mulf %130, %109 : vector<16x128xf32>
    %134 = arith.mulf %129, %132 : vector<16x128xf32>
    %135 = arith.addf %133, %134 : vector<16x128xf32>
    %136 = math.tanh %135 : vector<16x128xf32>
    %137 = arith.mulf %131, %136 : vector<16x128xf32>
    %138 = arith.truncf %137 : vector<16x128xf32> to vector<16x128xbf16>
    %139 = arith.index_cast %c4_i32 : i32 to index
    %c0_46 = arith.constant 0 : index
    %c0_47 = arith.constant 0 : index
    %140 = vector.load %arg10[%139, %c0_46, %c0_47] : memref<8x16x128xbf16, #tpu.memory_space<vmem>>, vector<1x16x128xbf16>
    %141 = vector.shape_cast %140 : vector<1x16x128xbf16> to vector<16x128xbf16>
    %142 = vector.shape_cast %138 : vector<16x128xbf16> to vector<1x16x128xbf16>
    tpu.vector_store %arg10[%139, %c0_46, %c0_47], %142 {strides = array<i32>} : memref<8x16x128xbf16, #tpu.memory_space<vmem>>, vector<1x16x128xbf16>,
    %c5_i32 = arith.constant 5 : i32
    %143 = arith.index_cast %c5_i32 : i32 to index
    %c0_48 = arith.constant 0 : index
    %c0_49 = arith.constant 0 : index
    %144 = vector.load %arg11[%143, %c0_48, %c0_49] : memref<8x16x512xbf16, #tpu.memory_space<vmem>>, vector<1x16x512xbf16>
    %145 = vector.shape_cast %144 : vector<1x16x512xbf16> to vector<16x512xbf16>
    %146 = arith.extf %145 : vector<16x512xbf16> to vector<16x512xf32>
    %cst_50 = arith.constant dense<0.000000e+00> : vector<16x512xf32>
    %147 = tpu.matmul %138, %1, %cst_50 {dimension_numbers = #tpu.dot_dimension_numbers<[1], [0], [0], [1], [0, 0, 1, 1], [], []>} : vector<16x128xbf16>, vector<128x512xbf16>, vector<16x512xf32> -> vector<16x512xf32>
    %148 = arith.addf %146, %147 : vector<16x512xf32>
    %149 = math.tanh %148 : vector<16x512xf32>
    %150 = vector.extract_strided_slice %149 {offsets = [0, 0], sizes = [16, 384], strides = [1, 1]} : vector<16x512xf32> to vector<16x384xf32>
    %cst_51 = arith.constant 5.000000e-01 : f32
    %151 = vector.broadcast %cst_51 : f32 to vector<16x384xf32>
    %152 = arith.mulf %151, %150 : vector<16x384xf32>
    %cst_52 = arith.constant 5.000000e-01 : f32
    %153 = vector.broadcast %cst_52 : f32 to vector<16x384xf32>
    %154 = arith.addf %152, %153 : vector<16x384xf32>
    %155 = vector.extract_strided_slice %154 {offsets = [0, 0], sizes = [16, 128], strides = [1, 1]} : vector<16x384xf32> to vector<16x128xf32>
    %156 = vector.extract_strided_slice %154 {offsets = [0, 128], sizes = [16, 128], strides = [1, 1]} : vector<16x384xf32> to vector<16x128xf32>
    %157 = vector.extract_strided_slice %154 {offsets = [0, 256], sizes = [16, 128], strides = [1, 1]} : vector<16x384xf32> to vector<16x128xf32>
    %158 = vector.extract_strided_slice %149 {offsets = [0, 384], sizes = [16, 128], strides = [1, 1]} : vector<16x512xf32> to vector<16x128xf32>
    %159 = arith.mulf %156, %135 : vector<16x128xf32>
    %160 = arith.mulf %155, %158 : vector<16x128xf32>
    %161 = arith.addf %159, %160 : vector<16x128xf32>
    %162 = math.tanh %161 : vector<16x128xf32>
    %163 = arith.mulf %157, %162 : vector<16x128xf32>
    %164 = arith.truncf %163 : vector<16x128xf32> to vector<16x128xbf16>
    %165 = arith.index_cast %c5_i32 : i32 to index
    %c0_53 = arith.constant 0 : index
    %c0_54 = arith.constant 0 : index
    %166 = vector.load %arg10[%165, %c0_53, %c0_54] : memref<8x16x128xbf16, #tpu.memory_space<vmem>>, vector<1x16x128xbf16>
    %167 = vector.shape_cast %166 : vector<1x16x128xbf16> to vector<16x128xbf16>
    %168 = vector.shape_cast %164 : vector<16x128xbf16> to vector<1x16x128xbf16>
    tpu.vector_store %arg10[%165, %c0_53, %c0_54], %168 {strides = array<i32>} : memref<8x16x128xbf16, #tpu.memory_space<vmem>>, vector<1x16x128xbf16>,
    %c6_i32 = arith.constant 6 : i32
    %169 = arith.index_cast %c6_i32 : i32 to index
    %c0_55 = arith.constant 0 : index
    %c0_56 = arith.constant 0 : index
    %170 = vector.load %arg11[%169, %c0_55, %c0_56] : memref<8x16x512xbf16, #tpu.memory_space<vmem>>, vector<1x16x512xbf16>
    %171 = vector.shape_cast %170 : vector<1x16x512xbf16> to vector<16x512xbf16>
    %172 = arith.extf %171 : vector<16x512xbf16> to vector<16x512xf32>
    %cst_57 = arith.constant dense<0.000000e+00> : vector<16x512xf32>
    %173 = tpu.matmul %164, %1, %cst_57 {dimension_numbers = #tpu.dot_dimension_numbers<[1], [0], [0], [1], [0, 0, 1, 1], [], []>} : vector<16x128xbf16>, vector<128x512xbf16>, vector<16x512xf32> -> vector<16x512xf32>
    %174 = arith.addf %172, %173 : vector<16x512xf32>
    %175 = math.tanh %174 : vector<16x512xf32>
    %176 = vector.extract_strided_slice %175 {offsets = [0, 0], sizes = [16, 384], strides = [1, 1]} : vector<16x512xf32> to vector<16x384xf32>
    %cst_58 = arith.constant 5.000000e-01 : f32
    %177 = vector.broadcast %cst_58 : f32 to vector<16x384xf32>
    %178 = arith.mulf %177, %176 : vector<16x384xf32>
    %cst_59 = arith.constant 5.000000e-01 : f32
    %179 = vector.broadcast %cst_59 : f32 to vector<16x384xf32>
    %180 = arith.addf %178, %179 : vector<16x384xf32>
    %181 = vector.extract_strided_slice %180 {offsets = [0, 0], sizes = [16, 128], strides = [1, 1]} : vector<16x384xf32> to vector<16x128xf32>
    %182 = vector.extract_strided_slice %180 {offsets = [0, 128], sizes = [16, 128], strides = [1, 1]} : vector<16x384xf32> to vector<16x128xf32>
    %183 = vector.extract_strided_slice %180 {offsets = [0, 256], sizes = [16, 128], strides = [1, 1]} : vector<16x384xf32> to vector<16x128xf32>
    %184 = vector.extract_strided_slice %175 {offsets = [0, 384], sizes = [16, 128], strides = [1, 1]} : vector<16x512xf32> to vector<16x128xf32>
    %185 = arith.mulf %182, %161 : vector<16x128xf32>
    %186 = arith.mulf %181, %184 : vector<16x128xf32>
    %187 = arith.addf %185, %186 : vector<16x128xf32>
    %188 = math.tanh %187 : vector<16x128xf32>
    %189 = arith.mulf %183, %188 : vector<16x128xf32>
    %190 = arith.truncf %189 : vector<16x128xf32> to vector<16x128xbf16>
    %191 = arith.index_cast %c6_i32 : i32 to index
    %c0_60 = arith.constant 0 : index
    %c0_61 = arith.constant 0 : index
    %192 = vector.load %arg10[%191, %c0_60, %c0_61] : memref<8x16x128xbf16, #tpu.memory_space<vmem>>, vector<1x16x128xbf16>
    %193 = vector.shape_cast %192 : vector<1x16x128xbf16> to vector<16x128xbf16>
    %194 = vector.shape_cast %190 : vector<16x128xbf16> to vector<1x16x128xbf16>
    tpu.vector_store %arg10[%191, %c0_60, %c0_61], %194 {strides = array<i32>} : memref<8x16x128xbf16, #tpu.memory_space<vmem>>, vector<1x16x128xbf16>,
    %c7_i32 = arith.constant 7 : i32
    %195 = arith.index_cast %c7_i32 : i32 to index
    %c0_62 = arith.constant 0 : index
    %c0_63 = arith.constant 0 : index
    %196 = vector.load %arg11[%195, %c0_62, %c0_63] : memref<8x16x512xbf16, #tpu.memory_space<vmem>>, vector<1x16x512xbf16>
    %197 = vector.shape_cast %196 : vector<1x16x512xbf16> to vector<16x512xbf16>
    %198 = arith.extf %197 : vector<16x512xbf16> to vector<16x512xf32>
    %cst_64 = arith.constant dense<0.000000e+00> : vector<16x512xf32>
    %199 = tpu.matmul %190, %1, %cst_64 {dimension_numbers = #tpu.dot_dimension_numbers<[1], [0], [0], [1], [0, 0, 1, 1], [], []>} : vector<16x128xbf16>, vector<128x512xbf16>, vector<16x512xf32> -> vector<16x512xf32>
    %200 = arith.addf %198, %199 : vector<16x512xf32>
    %201 = math.tanh %200 : vector<16x512xf32>
    %202 = vector.extract_strided_slice %201 {offsets = [0, 0], sizes = [16, 384], strides = [1, 1]} : vector<16x512xf32> to vector<16x384xf32>
    %cst_65 = arith.constant 5.000000e-01 : f32
    %203 = vector.broadcast %cst_65 : f32 to vector<16x384xf32>
    %204 = arith.mulf %203, %202 : vector<16x384xf32>
    %cst_66 = arith.constant 5.000000e-01 : f32
    %205 = vector.broadcast %cst_66 : f32 to vector<16x384xf32>
    %206 = arith.addf %204, %205 : vector<16x384xf32>
    %207 = vector.extract_strided_slice %206 {offsets = [0, 0], sizes = [16, 128], strides = [1, 1]} : vector<16x384xf32> to vector<16x128xf32>
    %208 = vector.extract_strided_slice %206 {offsets = [0, 128], sizes = [16, 128], strides = [1, 1]} : vector<16x384xf32> to vector<16x128xf32>
    %209 = vector.extract_strided_slice %206 {offsets = [0, 256], sizes = [16, 128], strides = [1, 1]} : vector<16x384xf32> to vector<16x128xf32>
    %210 = vector.extract_strided_slice %201 {offsets = [0, 384], sizes = [16, 128], strides = [1, 1]} : vector<16x512xf32> to vector<16x128xf32>
    %211 = arith.mulf %208, %187 : vector<16x128xf32>
    %212 = arith.mulf %207, %210 : vector<16x128xf32>
    %213 = arith.addf %211, %212 : vector<16x128xf32>
    %214 = math.tanh %213 : vector<16x128xf32>
    %215 = arith.mulf %209, %214 : vector<16x128xf32>
    %216 = arith.truncf %215 : vector<16x128xf32> to vector<16x128xbf16>
    %217 = arith.index_cast %c7_i32 : i32 to index
    %c0_67 = arith.constant 0 : index
    %c0_68 = arith.constant 0 : index
    %218 = vector.load %arg10[%217, %c0_67, %c0_68] : memref<8x16x128xbf16, #tpu.memory_space<vmem>>, vector<1x16x128xbf16>
    %219 = vector.shape_cast %218 : vector<1x16x128xbf16> to vector<16x128xbf16>
    %220 = vector.shape_cast %216 : vector<16x128xbf16> to vector<1x16x128xbf16>
    tpu.vector_store %arg10[%217, %c0_67, %c0_68], %220 {strides = array<i32>} : memref<8x16x128xbf16, #tpu.memory_space<vmem>>, vector<1x16x128xbf16>,
    %c8_i32 = arith.constant 8 : i32
    %c0_69 = arith.constant 0 : index
    %c0_70 = arith.constant 0 : index
    %221 = vector.load %arg6[%c0_69, %c0_70] : memref<128x512xbf16, #tpu.memory_space<vmem>>, vector<128x512xbf16>
    %c0_71 = arith.constant 0 : index
    %c0_72 = arith.constant 0 : index
    %222 = vector.load %arg7[%c0_71, %c0_72] : memref<128x512xbf16, #tpu.memory_space<vmem>>, vector<128x512xbf16>
    %c0_73 = arith.constant 0 : index
    %c0_74 = arith.constant 0 : index
    %223 = vector.load %arg8[%c0_73, %c0_74] : memref<1x512xf32, #tpu.memory_space<vmem>>, vector<1x512xf32>
    %c0_75 = arith.constant 0 : index
    %c0_76 = arith.constant 0 : index
    %c0_77 = arith.constant 0 : index
    %224 = vector.load %arg10[%c0_75, %c0_76, %c0_77] : memref<8x16x128xbf16, #tpu.memory_space<vmem>>, vector<8x16x128xbf16>
    %225 = vector.shape_cast %224 : vector<8x16x128xbf16> to vector<128x128xbf16>
    %cst_78 = arith.constant dense<0.000000e+00> : vector<128x512xf32>
    %226 = tpu.matmul %225, %221, %cst_78 {dimension_numbers = #tpu.dot_dimension_numbers<[1], [0], [0], [1], [0, 0, 1, 1], [], []>} : vector<128x128xbf16>, vector<128x512xbf16>, vector<128x512xf32> -> vector<128x512xf32>
    %227 = vector.broadcast %223 : vector<1x512xf32> to vector<128x512xf32>
    %228 = arith.addf %226, %227 : vector<128x512xf32>
    %229 = arith.truncf %228 : vector<128x512xf32> to vector<128x512xbf16>
    %230 = vector.shape_cast %229 : vector<128x512xbf16> to vector<8x16x512xbf16>
    %c0_79 = arith.constant 0 : index
    %c0_80 = arith.constant 0 : index
    %c0_81 = arith.constant 0 : index
    %231 = vector.load %arg11[%c0_79, %c0_80, %c0_81] : memref<8x16x512xbf16, #tpu.memory_space<vmem>>, vector<8x16x512xbf16>
    tpu.vector_store %arg11[%c0_79, %c0_80, %c0_81], %230 {strides = array<i32>} : memref<8x16x512xbf16, #tpu.memory_space<vmem>>, vector<8x16x512xbf16>,
    %cst_82 = arith.constant 0.000000e+00 : bf16
    %232 = vector.broadcast %cst_82 : bf16 to vector<16x128xbf16>
    %cst_83 = arith.constant 0.000000e+00 : f32
    %233 = vector.broadcast %cst_83 : f32 to vector<16x128xf32>
    %c0_i32_84 = arith.constant 0 : i32
    %234 = arith.index_cast %c0_i32_84 : i32 to index
    %c0_85 = arith.constant 0 : index
    %c0_86 = arith.constant 0 : index
    %235 = vector.load %arg11[%234, %c0_85, %c0_86] : memref<8x16x512xbf16, #tpu.memory_space<vmem>>, vector<1x16x512xbf16>
    %236 = vector.shape_cast %235 : vector<1x16x512xbf16> to vector<16x512xbf16>
    %237 = arith.extf %236 : vector<16x512xbf16> to vector<16x512xf32>
    %cst_87 = arith.constant dense<0.000000e+00> : vector<16x512xf32>
    %238 = tpu.matmul %232, %222, %cst_87 {dimension_numbers = #tpu.dot_dimension_numbers<[1], [0], [0], [1], [0, 0, 1, 1], [], []>} : vector<16x128xbf16>, vector<128x512xbf16>, vector<16x512xf32> -> vector<16x512xf32>
    %239 = arith.addf %237, %238 : vector<16x512xf32>
    %240 = math.tanh %239 : vector<16x512xf32>
    %241 = vector.extract_strided_slice %240 {offsets = [0, 0], sizes = [16, 384], strides = [1, 1]} : vector<16x512xf32> to vector<16x384xf32>
    %cst_88 = arith.constant 5.000000e-01 : f32
    %242 = vector.broadcast %cst_88 : f32 to vector<16x384xf32>
    %243 = arith.mulf %242, %241 : vector<16x384xf32>
    %cst_89 = arith.constant 5.000000e-01 : f32
    %244 = vector.broadcast %cst_89 : f32 to vector<16x384xf32>
    %245 = arith.addf %243, %244 : vector<16x384xf32>
    %246 = vector.extract_strided_slice %245 {offsets = [0, 0], sizes = [16, 128], strides = [1, 1]} : vector<16x384xf32> to vector<16x128xf32>
    %247 = vector.extract_strided_slice %245 {offsets = [0, 128], sizes = [16, 128], strides = [1, 1]} : vector<16x384xf32> to vector<16x128xf32>
    %248 = vector.extract_strided_slice %245 {offsets = [0, 256], sizes = [16, 128], strides = [1, 1]} : vector<16x384xf32> to vector<16x128xf32>
    %249 = vector.extract_strided_slice %240 {offsets = [0, 384], sizes = [16, 128], strides = [1, 1]} : vector<16x512xf32> to vector<16x128xf32>
    %250 = arith.mulf %247, %233 : vector<16x128xf32>
    %251 = arith.mulf %246, %249 : vector<16x128xf32>
    %252 = arith.addf %250, %251 : vector<16x128xf32>
    %253 = math.tanh %252 : vector<16x128xf32>
    %254 = arith.mulf %248, %253 : vector<16x128xf32>
    %255 = arith.truncf %254 : vector<16x128xf32> to vector<16x128xbf16>
    %256 = arith.index_cast %c0_i32_84 : i32 to index
    %c0_90 = arith.constant 0 : index
    %c0_91 = arith.constant 0 : index
    %257 = vector.load %arg9[%256, %c0_90, %c0_91] : memref<8x16x128xbf16, #tpu.memory_space<vmem>>, vector<1x16x128xbf16>
    %258 = vector.shape_cast %257 : vector<1x16x128xbf16> to vector<16x128xbf16>
    %259 = vector.shape_cast %255 : vector<16x128xbf16> to vector<1x16x128xbf16>
    tpu.vector_store %arg9[%256, %c0_90, %c0_91], %259 {strides = array<i32>} : memref<8x16x128xbf16, #tpu.memory_space<vmem>>, vector<1x16x128xbf16>,
    %c1_i32_92 = arith.constant 1 : i32
    %260 = arith.index_cast %c1_i32_92 : i32 to index
    %c0_93 = arith.constant 0 : index
    %c0_94 = arith.constant 0 : index
    %261 = vector.load %arg11[%260, %c0_93, %c0_94] : memref<8x16x512xbf16, #tpu.memory_space<vmem>>, vector<1x16x512xbf16>
    %262 = vector.shape_cast %261 : vector<1x16x512xbf16> to vector<16x512xbf16>
    %263 = arith.extf %262 : vector<16x512xbf16> to vector<16x512xf32>
    %cst_95 = arith.constant dense<0.000000e+00> : vector<16x512xf32>
    %264 = tpu.matmul %255, %222, %cst_95 {dimension_numbers = #tpu.dot_dimension_numbers<[1], [0], [0], [1], [0, 0, 1, 1], [], []>} : vector<16x128xbf16>, vector<128x512xbf16>, vector<16x512xf32> -> vector<16x512xf32>
    %265 = arith.addf %263, %264 : vector<16x512xf32>
    %266 = math.tanh %265 : vector<16x512xf32>
    %267 = vector.extract_strided_slice %266 {offsets = [0, 0], sizes = [16, 384], strides = [1, 1]} : vector<16x512xf32> to vector<16x384xf32>
    %cst_96 = arith.constant 5.000000e-01 : f32
    %268 = vector.broadcast %cst_96 : f32 to vector<16x384xf32>
    %269 = arith.mulf %268, %267 : vector<16x384xf32>
    %cst_97 = arith.constant 5.000000e-01 : f32
    %270 = vector.broadcast %cst_97 : f32 to vector<16x384xf32>
    %271 = arith.addf %269, %270 : vector<16x384xf32>
    %272 = vector.extract_strided_slice %271 {offsets = [0, 0], sizes = [16, 128], strides = [1, 1]} : vector<16x384xf32> to vector<16x128xf32>
    %273 = vector.extract_strided_slice %271 {offsets = [0, 128], sizes = [16, 128], strides = [1, 1]} : vector<16x384xf32> to vector<16x128xf32>
    %274 = vector.extract_strided_slice %271 {offsets = [0, 256], sizes = [16, 128], strides = [1, 1]} : vector<16x384xf32> to vector<16x128xf32>
    %275 = vector.extract_strided_slice %266 {offsets = [0, 384], sizes = [16, 128], strides = [1, 1]} : vector<16x512xf32> to vector<16x128xf32>
    %276 = arith.mulf %273, %252 : vector<16x128xf32>
    %277 = arith.mulf %272, %275 : vector<16x128xf32>
    %278 = arith.addf %276, %277 : vector<16x128xf32>
    %279 = math.tanh %278 : vector<16x128xf32>
    %280 = arith.mulf %274, %279 : vector<16x128xf32>
    %281 = arith.truncf %280 : vector<16x128xf32> to vector<16x128xbf16>
    %282 = arith.index_cast %c1_i32_92 : i32 to index
    %c0_98 = arith.constant 0 : index
    %c0_99 = arith.constant 0 : index
    %283 = vector.load %arg9[%282, %c0_98, %c0_99] : memref<8x16x128xbf16, #tpu.memory_space<vmem>>, vector<1x16x128xbf16>
    %284 = vector.shape_cast %283 : vector<1x16x128xbf16> to vector<16x128xbf16>
    %285 = vector.shape_cast %281 : vector<16x128xbf16> to vector<1x16x128xbf16>
    tpu.vector_store %arg9[%282, %c0_98, %c0_99], %285 {strides = array<i32>} : memref<8x16x128xbf16, #tpu.memory_space<vmem>>, vector<1x16x128xbf16>,
    %c2_i32_100 = arith.constant 2 : i32
    %286 = arith.index_cast %c2_i32_100 : i32 to index
    %c0_101 = arith.constant 0 : index
    %c0_102 = arith.constant 0 : index
    %287 = vector.load %arg11[%286, %c0_101, %c0_102] : memref<8x16x512xbf16, #tpu.memory_space<vmem>>, vector<1x16x512xbf16>
    %288 = vector.shape_cast %287 : vector<1x16x512xbf16> to vector<16x512xbf16>
    %289 = arith.extf %288 : vector<16x512xbf16> to vector<16x512xf32>
    %cst_103 = arith.constant dense<0.000000e+00> : vector<16x512xf32>
    %290 = tpu.matmul %281, %222, %cst_103 {dimension_numbers = #tpu.dot_dimension_numbers<[1], [0], [0], [1], [0, 0, 1, 1], [], []>} : vector<16x128xbf16>, vector<128x512xbf16>, vector<16x512xf32> -> vector<16x512xf32>
    %291 = arith.addf %289, %290 : vector<16x512xf32>
    %292 = math.tanh %291 : vector<16x512xf32>
    %293 = vector.extract_strided_slice %292 {offsets = [0, 0], sizes = [16, 384], strides = [1, 1]} : vector<16x512xf32> to vector<16x384xf32>
    %cst_104 = arith.constant 5.000000e-01 : f32
    %294 = vector.broadcast %cst_104 : f32 to vector<16x384xf32>
    %295 = arith.mulf %294, %293 : vector<16x384xf32>
    %cst_105 = arith.constant 5.000000e-01 : f32
    %296 = vector.broadcast %cst_105 : f32 to vector<16x384xf32>
    %297 = arith.addf %295, %296 : vector<16x384xf32>
    %298 = vector.extract_strided_slice %297 {offsets = [0, 0], sizes = [16, 128], strides = [1, 1]} : vector<16x384xf32> to vector<16x128xf32>
    %299 = vector.extract_strided_slice %297 {offsets = [0, 128], sizes = [16, 128], strides = [1, 1]} : vector<16x384xf32> to vector<16x128xf32>
    %300 = vector.extract_strided_slice %297 {offsets = [0, 256], sizes = [16, 128], strides = [1, 1]} : vector<16x384xf32> to vector<16x128xf32>
    %301 = vector.extract_strided_slice %292 {offsets = [0, 384], sizes = [16, 128], strides = [1, 1]} : vector<16x512xf32> to vector<16x128xf32>
    %302 = arith.mulf %299, %278 : vector<16x128xf32>
    %303 = arith.mulf %298, %301 : vector<16x128xf32>
    %304 = arith.addf %302, %303 : vector<16x128xf32>
    %305 = math.tanh %304 : vector<16x128xf32>
    %306 = arith.mulf %300, %305 : vector<16x128xf32>
    %307 = arith.truncf %306 : vector<16x128xf32> to vector<16x128xbf16>
    %308 = arith.index_cast %c2_i32_100 : i32 to index
    %c0_106 = arith.constant 0 : index
    %c0_107 = arith.constant 0 : index
    %309 = vector.load %arg9[%308, %c0_106, %c0_107] : memref<8x16x128xbf16, #tpu.memory_space<vmem>>, vector<1x16x128xbf16>
    %310 = vector.shape_cast %309 : vector<1x16x128xbf16> to vector<16x128xbf16>
    %311 = vector.shape_cast %307 : vector<16x128xbf16> to vector<1x16x128xbf16>
    tpu.vector_store %arg9[%308, %c0_106, %c0_107], %311 {strides = array<i32>} : memref<8x16x128xbf16, #tpu.memory_space<vmem>>, vector<1x16x128xbf16>,
    %c3_i32_108 = arith.constant 3 : i32
    %312 = arith.index_cast %c3_i32_108 : i32 to index
    %c0_109 = arith.constant 0 : index
    %c0_110 = arith.constant 0 : index
    %313 = vector.load %arg11[%312, %c0_109, %c0_110] : memref<8x16x512xbf16, #tpu.memory_space<vmem>>, vector<1x16x512xbf16>
    %314 = vector.shape_cast %313 : vector<1x16x512xbf16> to vector<16x512xbf16>
    %315 = arith.extf %314 : vector<16x512xbf16> to vector<16x512xf32>
    %cst_111 = arith.constant dense<0.000000e+00> : vector<16x512xf32>
    %316 = tpu.matmul %307, %222, %cst_111 {dimension_numbers = #tpu.dot_dimension_numbers<[1], [0], [0], [1], [0, 0, 1, 1], [], []>} : vector<16x128xbf16>, vector<128x512xbf16>, vector<16x512xf32> -> vector<16x512xf32>
    %317 = arith.addf %315, %316 : vector<16x512xf32>
    %318 = math.tanh %317 : vector<16x512xf32>
    %319 = vector.extract_strided_slice %318 {offsets = [0, 0], sizes = [16, 384], strides = [1, 1]} : vector<16x512xf32> to vector<16x384xf32>
    %cst_112 = arith.constant 5.000000e-01 : f32
    %320 = vector.broadcast %cst_112 : f32 to vector<16x384xf32>
    %321 = arith.mulf %320, %319 : vector<16x384xf32>
    %cst_113 = arith.constant 5.000000e-01 : f32
    %322 = vector.broadcast %cst_113 : f32 to vector<16x384xf32>
    %323 = arith.addf %321, %322 : vector<16x384xf32>
    %324 = vector.extract_strided_slice %323 {offsets = [0, 0], sizes = [16, 128], strides = [1, 1]} : vector<16x384xf32> to vector<16x128xf32>
    %325 = vector.extract_strided_slice %323 {offsets = [0, 128], sizes = [16, 128], strides = [1, 1]} : vector<16x384xf32> to vector<16x128xf32>
    %326 = vector.extract_strided_slice %323 {offsets = [0, 256], sizes = [16, 128], strides = [1, 1]} : vector<16x384xf32> to vector<16x128xf32>
    %327 = vector.extract_strided_slice %318 {offsets = [0, 384], sizes = [16, 128], strides = [1, 1]} : vector<16x512xf32> to vector<16x128xf32>
    %328 = arith.mulf %325, %304 : vector<16x128xf32>
    %329 = arith.mulf %324, %327 : vector<16x128xf32>
    %330 = arith.addf %328, %329 : vector<16x128xf32>
    %331 = math.tanh %330 : vector<16x128xf32>
    %332 = arith.mulf %326, %331 : vector<16x128xf32>
    %333 = arith.truncf %332 : vector<16x128xf32> to vector<16x128xbf16>
    %334 = arith.index_cast %c3_i32_108 : i32 to index
    %c0_114 = arith.constant 0 : index
    %c0_115 = arith.constant 0 : index
    %335 = vector.load %arg9[%334, %c0_114, %c0_115] : memref<8x16x128xbf16, #tpu.memory_space<vmem>>, vector<1x16x128xbf16>
    %336 = vector.shape_cast %335 : vector<1x16x128xbf16> to vector<16x128xbf16>
    %337 = vector.shape_cast %333 : vector<16x128xbf16> to vector<1x16x128xbf16>
    tpu.vector_store %arg9[%334, %c0_114, %c0_115], %337 {strides = array<i32>} : memref<8x16x128xbf16, #tpu.memory_space<vmem>>, vector<1x16x128xbf16>,
    %c4_i32_116 = arith.constant 4 : i32
    %338 = arith.index_cast %c4_i32_116 : i32 to index
    %c0_117 = arith.constant 0 : index
    %c0_118 = arith.constant 0 : index
    %339 = vector.load %arg11[%338, %c0_117, %c0_118] : memref<8x16x512xbf16, #tpu.memory_space<vmem>>, vector<1x16x512xbf16>
    %340 = vector.shape_cast %339 : vector<1x16x512xbf16> to vector<16x512xbf16>
    %341 = arith.extf %340 : vector<16x512xbf16> to vector<16x512xf32>
    %cst_119 = arith.constant dense<0.000000e+00> : vector<16x512xf32>
    %342 = tpu.matmul %333, %222, %cst_119 {dimension_numbers = #tpu.dot_dimension_numbers<[1], [0], [0], [1], [0, 0, 1, 1], [], []>} : vector<16x128xbf16>, vector<128x512xbf16>, vector<16x512xf32> -> vector<16x512xf32>
    %343 = arith.addf %341, %342 : vector<16x512xf32>
    %344 = math.tanh %343 : vector<16x512xf32>
    %345 = vector.extract_strided_slice %344 {offsets = [0, 0], sizes = [16, 384], strides = [1, 1]} : vector<16x512xf32> to vector<16x384xf32>
    %cst_120 = arith.constant 5.000000e-01 : f32
    %346 = vector.broadcast %cst_120 : f32 to vector<16x384xf32>
    %347 = arith.mulf %346, %345 : vector<16x384xf32>
    %cst_121 = arith.constant 5.000000e-01 : f32
    %348 = vector.broadcast %cst_121 : f32 to vector<16x384xf32>
    %349 = arith.addf %347, %348 : vector<16x384xf32>
    %350 = vector.extract_strided_slice %349 {offsets = [0, 0], sizes = [16, 128], strides = [1, 1]} : vector<16x384xf32> to vector<16x128xf32>
    %351 = vector.extract_strided_slice %349 {offsets = [0, 128], sizes = [16, 128], strides = [1, 1]} : vector<16x384xf32> to vector<16x128xf32>
    %352 = vector.extract_strided_slice %349 {offsets = [0, 256], sizes = [16, 128], strides = [1, 1]} : vector<16x384xf32> to vector<16x128xf32>
    %353 = vector.extract_strided_slice %344 {offsets = [0, 384], sizes = [16, 128], strides = [1, 1]} : vector<16x512xf32> to vector<16x128xf32>
    %354 = arith.mulf %351, %330 : vector<16x128xf32>
    %355 = arith.mulf %350, %353 : vector<16x128xf32>
    %356 = arith.addf %354, %355 : vector<16x128xf32>
    %357 = math.tanh %356 : vector<16x128xf32>
    %358 = arith.mulf %352, %357 : vector<16x128xf32>
    %359 = arith.truncf %358 : vector<16x128xf32> to vector<16x128xbf16>
    %360 = arith.index_cast %c4_i32_116 : i32 to index
    %c0_122 = arith.constant 0 : index
    %c0_123 = arith.constant 0 : index
    %361 = vector.load %arg9[%360, %c0_122, %c0_123] : memref<8x16x128xbf16, #tpu.memory_space<vmem>>, vector<1x16x128xbf16>
    %362 = vector.shape_cast %361 : vector<1x16x128xbf16> to vector<16x128xbf16>
    %363 = vector.shape_cast %359 : vector<16x128xbf16> to vector<1x16x128xbf16>
    tpu.vector_store %arg9[%360, %c0_122, %c0_123], %363 {strides = array<i32>} : memref<8x16x128xbf16, #tpu.memory_space<vmem>>, vector<1x16x128xbf16>,
    %c5_i32_124 = arith.constant 5 : i32
    %364 = arith.index_cast %c5_i32_124 : i32 to index
    %c0_125 = arith.constant 0 : index
    %c0_126 = arith.constant 0 : index
    %365 = vector.load %arg11[%364, %c0_125, %c0_126] : memref<8x16x512xbf16, #tpu.memory_space<vmem>>, vector<1x16x512xbf16>
    %366 = vector.shape_cast %365 : vector<1x16x512xbf16> to vector<16x512xbf16>
    %367 = arith.extf %366 : vector<16x512xbf16> to vector<16x512xf32>
    %cst_127 = arith.constant dense<0.000000e+00> : vector<16x512xf32>
    %368 = tpu.matmul %359, %222, %cst_127 {dimension_numbers = #tpu.dot_dimension_numbers<[1], [0], [0], [1], [0, 0, 1, 1], [], []>} : vector<16x128xbf16>, vector<128x512xbf16>, vector<16x512xf32> -> vector<16x512xf32>
    %369 = arith.addf %367, %368 : vector<16x512xf32>
    %370 = math.tanh %369 : vector<16x512xf32>
    %371 = vector.extract_strided_slice %370 {offsets = [0, 0], sizes = [16, 384], strides = [1, 1]} : vector<16x512xf32> to vector<16x384xf32>
    %cst_128 = arith.constant 5.000000e-01 : f32
    %372 = vector.broadcast %cst_128 : f32 to vector<16x384xf32>
    %373 = arith.mulf %372, %371 : vector<16x384xf32>
    %cst_129 = arith.constant 5.000000e-01 : f32
    %374 = vector.broadcast %cst_129 : f32 to vector<16x384xf32>
    %375 = arith.addf %373, %374 : vector<16x384xf32>
    %376 = vector.extract_strided_slice %375 {offsets = [0, 0], sizes = [16, 128], strides = [1, 1]} : vector<16x384xf32> to vector<16x128xf32>
    %377 = vector.extract_strided_slice %375 {offsets = [0, 128], sizes = [16, 128], strides = [1, 1]} : vector<16x384xf32> to vector<16x128xf32>
    %378 = vector.extract_strided_slice %375 {offsets = [0, 256], sizes = [16, 128], strides = [1, 1]} : vector<16x384xf32> to vector<16x128xf32>
    %379 = vector.extract_strided_slice %370 {offsets = [0, 384], sizes = [16, 128], strides = [1, 1]} : vector<16x512xf32> to vector<16x128xf32>
    %380 = arith.mulf %377, %356 : vector<16x128xf32>
    %381 = arith.mulf %376, %379 : vector<16x128xf32>
    %382 = arith.addf %380, %381 : vector<16x128xf32>
    %383 = math.tanh %382 : vector<16x128xf32>
    %384 = arith.mulf %378, %383 : vector<16x128xf32>
    %385 = arith.truncf %384 : vector<16x128xf32> to vector<16x128xbf16>
    %386 = arith.index_cast %c5_i32_124 : i32 to index
    %c0_130 = arith.constant 0 : index
    %c0_131 = arith.constant 0 : index
    %387 = vector.load %arg9[%386, %c0_130, %c0_131] : memref<8x16x128xbf16, #tpu.memory_space<vmem>>, vector<1x16x128xbf16>
    %388 = vector.shape_cast %387 : vector<1x16x128xbf16> to vector<16x128xbf16>
    %389 = vector.shape_cast %385 : vector<16x128xbf16> to vector<1x16x128xbf16>
    tpu.vector_store %arg9[%386, %c0_130, %c0_131], %389 {strides = array<i32>} : memref<8x16x128xbf16, #tpu.memory_space<vmem>>, vector<1x16x128xbf16>,
    %c6_i32_132 = arith.constant 6 : i32
    %390 = arith.index_cast %c6_i32_132 : i32 to index
    %c0_133 = arith.constant 0 : index
    %c0_134 = arith.constant 0 : index
    %391 = vector.load %arg11[%390, %c0_133, %c0_134] : memref<8x16x512xbf16, #tpu.memory_space<vmem>>, vector<1x16x512xbf16>
    %392 = vector.shape_cast %391 : vector<1x16x512xbf16> to vector<16x512xbf16>
    %393 = arith.extf %392 : vector<16x512xbf16> to vector<16x512xf32>
    %cst_135 = arith.constant dense<0.000000e+00> : vector<16x512xf32>
    %394 = tpu.matmul %385, %222, %cst_135 {dimension_numbers = #tpu.dot_dimension_numbers<[1], [0], [0], [1], [0, 0, 1, 1], [], []>} : vector<16x128xbf16>, vector<128x512xbf16>, vector<16x512xf32> -> vector<16x512xf32>
    %395 = arith.addf %393, %394 : vector<16x512xf32>
    %396 = math.tanh %395 : vector<16x512xf32>
    %397 = vector.extract_strided_slice %396 {offsets = [0, 0], sizes = [16, 384], strides = [1, 1]} : vector<16x512xf32> to vector<16x384xf32>
    %cst_136 = arith.constant 5.000000e-01 : f32
    %398 = vector.broadcast %cst_136 : f32 to vector<16x384xf32>
    %399 = arith.mulf %398, %397 : vector<16x384xf32>
    %cst_137 = arith.constant 5.000000e-01 : f32
    %400 = vector.broadcast %cst_137 : f32 to vector<16x384xf32>
    %401 = arith.addf %399, %400 : vector<16x384xf32>
    %402 = vector.extract_strided_slice %401 {offsets = [0, 0], sizes = [16, 128], strides = [1, 1]} : vector<16x384xf32> to vector<16x128xf32>
    %403 = vector.extract_strided_slice %401 {offsets = [0, 128], sizes = [16, 128], strides = [1, 1]} : vector<16x384xf32> to vector<16x128xf32>
    %404 = vector.extract_strided_slice %401 {offsets = [0, 256], sizes = [16, 128], strides = [1, 1]} : vector<16x384xf32> to vector<16x128xf32>
    %405 = vector.extract_strided_slice %396 {offsets = [0, 384], sizes = [16, 128], strides = [1, 1]} : vector<16x512xf32> to vector<16x128xf32>
    %406 = arith.mulf %403, %382 : vector<16x128xf32>
    %407 = arith.mulf %402, %405 : vector<16x128xf32>
    %408 = arith.addf %406, %407 : vector<16x128xf32>
    %409 = math.tanh %408 : vector<16x128xf32>
    %410 = arith.mulf %404, %409 : vector<16x128xf32>
    %411 = arith.truncf %410 : vector<16x128xf32> to vector<16x128xbf16>
    %412 = arith.index_cast %c6_i32_132 : i32 to index
    %c0_138 = arith.constant 0 : index
    %c0_139 = arith.constant 0 : index
    %413 = vector.load %arg9[%412, %c0_138, %c0_139] : memref<8x16x128xbf16, #tpu.memory_space<vmem>>, vector<1x16x128xbf16>
    %414 = vector.shape_cast %413 : vector<1x16x128xbf16> to vector<16x128xbf16>
    %415 = vector.shape_cast %411 : vector<16x128xbf16> to vector<1x16x128xbf16>
    tpu.vector_store %arg9[%412, %c0_138, %c0_139], %415 {strides = array<i32>} : memref<8x16x128xbf16, #tpu.memory_space<vmem>>, vector<1x16x128xbf16>,
    %c7_i32_140 = arith.constant 7 : i32
    %416 = arith.index_cast %c7_i32_140 : i32 to index
    %c0_141 = arith.constant 0 : index
    %c0_142 = arith.constant 0 : index
    %417 = vector.load %arg11[%416, %c0_141, %c0_142] : memref<8x16x512xbf16, #tpu.memory_space<vmem>>, vector<1x16x512xbf16>
    %418 = vector.shape_cast %417 : vector<1x16x512xbf16> to vector<16x512xbf16>
    %419 = arith.extf %418 : vector<16x512xbf16> to vector<16x512xf32>
    %cst_143 = arith.constant dense<0.000000e+00> : vector<16x512xf32>
    %420 = tpu.matmul %411, %222, %cst_143 {dimension_numbers = #tpu.dot_dimension_numbers<[1], [0], [0], [1], [0, 0, 1, 1], [], []>} : vector<16x128xbf16>, vector<128x512xbf16>, vector<16x512xf32> -> vector<16x512xf32>
    %421 = arith.addf %419, %420 : vector<16x512xf32>
    %422 = math.tanh %421 : vector<16x512xf32>
    %423 = vector.extract_strided_slice %422 {offsets = [0, 0], sizes = [16, 384], strides = [1, 1]} : vector<16x512xf32> to vector<16x384xf32>
    %cst_144 = arith.constant 5.000000e-01 : f32
    %424 = vector.broadcast %cst_144 : f32 to vector<16x384xf32>
    %425 = arith.mulf %424, %423 : vector<16x384xf32>
    %cst_145 = arith.constant 5.000000e-01 : f32
    %426 = vector.broadcast %cst_145 : f32 to vector<16x384xf32>
    %427 = arith.addf %425, %426 : vector<16x384xf32>
    %428 = vector.extract_strided_slice %427 {offsets = [0, 0], sizes = [16, 128], strides = [1, 1]} : vector<16x384xf32> to vector<16x128xf32>
    %429 = vector.extract_strided_slice %427 {offsets = [0, 128], sizes = [16, 128], strides = [1, 1]} : vector<16x384xf32> to vector<16x128xf32>
    %430 = vector.extract_strided_slice %427 {offsets = [0, 256], sizes = [16, 128], strides = [1, 1]} : vector<16x384xf32> to vector<16x128xf32>
    %431 = vector.extract_strided_slice %422 {offsets = [0, 384], sizes = [16, 128], strides = [1, 1]} : vector<16x512xf32> to vector<16x128xf32>
    %432 = arith.mulf %429, %408 : vector<16x128xf32>
    %433 = arith.mulf %428, %431 : vector<16x128xf32>
    %434 = arith.addf %432, %433 : vector<16x128xf32>
    %435 = math.tanh %434 : vector<16x128xf32>
    %436 = arith.mulf %430, %435 : vector<16x128xf32>
    %437 = arith.truncf %436 : vector<16x128xf32> to vector<16x128xbf16>
    %438 = arith.index_cast %c7_i32_140 : i32 to index
    %c0_146 = arith.constant 0 : index
    %c0_147 = arith.constant 0 : index
    %439 = vector.load %arg9[%438, %c0_146, %c0_147] : memref<8x16x128xbf16, #tpu.memory_space<vmem>>, vector<1x16x128xbf16>
    %440 = vector.shape_cast %439 : vector<1x16x128xbf16> to vector<16x128xbf16>
    %441 = vector.shape_cast %437 : vector<16x128xbf16> to vector<1x16x128xbf16>
    tpu.vector_store %arg9[%438, %c0_146, %c0_147], %441 {strides = array<i32>} : memref<8x16x128xbf16, #tpu.memory_space<vmem>>, vector<1x16x128xbf16>,
    %c8_i32_148 = arith.constant 8 : i32
    %c0_149 = arith.constant 0 : index
    %c0_150 = arith.constant 0 : index
    %c0_151 = arith.constant 0 : index
    %442 = vector.load %arg9[%c0_149, %c0_150, %c0_151] : memref<8x16x128xbf16, #tpu.memory_space<vmem>>, vector<8x16x128xbf16>
    %c0_152 = arith.constant 0 : index
    %c0_153 = arith.constant 0 : index
    %c0_154 = arith.constant 0 : index
    %443 = vector.load %arg2[%c0_152, %c0_153, %c0_154] : memref<8x16x1xbf16, #tpu.memory_space<vmem>>, vector<8x16x1xbf16>
    %444 = vector.broadcast %443 : vector<8x16x1xbf16> to vector<8x16x128xbf16>
    %445 = arith.mulf %442, %444 : vector<8x16x128xbf16>
    %c0_155 = arith.constant 0 : index
    %c0_156 = arith.constant 0 : index
    %c0_157 = arith.constant 0 : index
    %446 = vector.load %arg9[%c0_155, %c0_156, %c0_157] : memref<8x16x128xbf16, #tpu.memory_space<vmem>>, vector<8x16x128xbf16>
    tpu.vector_store %arg9[%c0_155, %c0_156, %c0_157], %445 {strides = array<i32>} : memref<8x16x128xbf16, #tpu.memory_space<vmem>>, vector<8x16x128xbf16>,
    return
  }
  func.func @transform_0(%arg0: i32) -> (i32, i32, i32) {
    %c0_i32 = arith.constant 0 : i32
    %c0_i32_0 = arith.constant 0 : i32
    %c0_i32_1 = arith.constant 0 : i32
    return %c0_i32, %arg0, %c0_i32_0 : i32, i32, i32
  }
  func.func @transform_1(%arg0: i32) -> (i32, i32, i32) {
    %c0_i32 = arith.constant 0 : i32
    %c0_i32_0 = arith.constant 0 : i32
    %c0_i32_1 = arith.constant 0 : i32
    return %c0_i32, %arg0, %c0_i32_0 : i32, i32, i32
  }
  func.func @transform_2(%arg0: i32) -> (i32, i32) {
    %c0_i32 = arith.constant 0 : i32
    %c0_i32_0 = arith.constant 0 : i32
    %c0_i32_1 = arith.constant 0 : i32
    return %c0_i32, %c0_i32_0 : i32, i32
  }
  func.func @transform_3(%arg0: i32) -> (i32, i32) {
    %c0_i32 = arith.constant 0 : i32
    %c0_i32_0 = arith.constant 0 : i32
    %c0_i32_1 = arith.constant 0 : i32
    return %c0_i32, %c0_i32_0 : i32, i32
  }
  func.func @transform_4(%arg0: i32) -> (i32, i32) {
    %c0_i32 = arith.constant 0 : i32
    %c0_i32_0 = arith.constant 0 : i32
    %c0_i32_1 = arith.constant 0 : i32
    return %c0_i32, %c0_i32_0 : i32, i32
  }
  func.func @transform_5(%arg0: i32) -> (i32, i32) {
    %c0_i32 = arith.constant 0 : i32
    %c0_i32_0 = arith.constant 0 : i32
    %c0_i32_1 = arith.constant 0 : i32
    return %c0_i32, %c0_i32_0 : i32, i32
  }
  func.func @transform_6(%arg0: i32) -> (i32, i32) {
    %c0_i32 = arith.constant 0 : i32
    %c0_i32_0 = arith.constant 0 : i32
    %c0_i32_1 = arith.constant 0 : i32
    return %c0_i32, %c0_i32_0 : i32, i32
  }
  func.func @transform_7(%arg0: i32) -> (i32, i32) {
    %c0_i32 = arith.constant 0 : i32
    %c0_i32_0 = arith.constant 0 : i32
    %c0_i32_1 = arith.constant 0 : i32
    return %c0_i32, %c0_i32_0 : i32, i32
  }
  func.func @transform_8(%arg0: i32) -> (i32, i32, i32) {
    %c0_i32 = arith.constant 0 : i32
    %c0_i32_0 = arith.constant 0 : i32
    %c0_i32_1 = arith.constant 0 : i32
    return %c0_i32, %arg0, %c0_i32_0 : i32, i32, i32
  }
}

module attributes {stable_mosaic.version = 11 : i64} {
  func.func @projection_kernel(%arg0: i32, %arg1: i32, %arg2: memref<256x128xbf16, #tpu.memory_space<vmem>>, %arg3: memref<128x128xbf16, #tpu.memory_space<vmem>>, %arg4: memref<1x128xf32, #tpu.memory_space<vmem>>, %arg5: memref<256x128xf32, #tpu.memory_space<vmem>>) attributes {dimension_semantics = [#tpu.dimension_semantics<parallel>, #tpu.dimension_semantics<parallel>], iteration_bounds = array<i64: 1, 1>, scalar_prefetch = 0 : i64, scratch_operands = 0 : i64, tpu.core_type = #tpu.core_type<tc>, window_params = [{transform_indices = @transform_0, window_bounds = array<i64: 256, 128>}, {transform_indices = @transform_1, window_bounds = array<i64: 128, 128>}, {transform_indices = @transform_2, window_bounds = array<i64: 1, 128>}, {transform_indices = @transform_3, window_bounds = array<i64: 256, 128>}]} {
    %c0 = arith.constant 0 : index
    %c0_0 = arith.constant 0 : index
    %0 = vector.load %arg2[%c0, %c0_0] : memref<256x128xbf16, #tpu.memory_space<vmem>>, vector<256x128xbf16>
    %c0_1 = arith.constant 0 : index
    %c0_2 = arith.constant 0 : index
    %1 = vector.load %arg3[%c0_1, %c0_2] : memref<128x128xbf16, #tpu.memory_space<vmem>>, vector<128x128xbf16>
    %cst = arith.constant dense<0.000000e+00> : vector<256x128xf32>
    %2 = tpu.matmul %0, %1, %cst {dimension_numbers = #tpu.dot_dimension_numbers<[1], [0], [0], [1], [0, 0, 1, 1], [], []>} : vector<256x128xbf16>, vector<128x128xbf16>, vector<256x128xf32> -> vector<256x128xf32>
    %c0_3 = arith.constant 0 : index
    %c0_4 = arith.constant 0 : index
    %3 = vector.load %arg4[%c0_3, %c0_4] : memref<1x128xf32, #tpu.memory_space<vmem>>, vector<1x128xf32>
    %4 = vector.broadcast %3 : vector<1x128xf32> to vector<256x128xf32>
    %5 = arith.addf %2, %4 : vector<256x128xf32>
    %c0_5 = arith.constant 0 : index
    %c0_6 = arith.constant 0 : index
    %6 = vector.load %arg5[%c0_5, %c0_6] : memref<256x128xf32, #tpu.memory_space<vmem>>, vector<256x128xf32>
    tpu.vector_store %arg5[%c0_5, %c0_6], %5 {strides = array<i32>} : memref<256x128xf32, #tpu.memory_space<vmem>>, vector<256x128xf32>,
    return
  }
  func.func @transform_0(%arg0: i32, %arg1: i32) -> (i32, i32) {
    %c0_i32 = arith.constant 0 : i32
    %c0_i32_0 = arith.constant 0 : i32
    return %arg0, %c0_i32 : i32, i32
  }
  func.func @transform_1(%arg0: i32, %arg1: i32) -> (i32, i32) {
    %c0_i32 = arith.constant 0 : i32
    %c0_i32_0 = arith.constant 0 : i32
    return %c0_i32, %arg1 : i32, i32
  }
  func.func @transform_2(%arg0: i32, %arg1: i32) -> (i32, i32) {
    %c0_i32 = arith.constant 0 : i32
    %c0_i32_0 = arith.constant 0 : i32
    return %c0_i32, %arg1 : i32, i32
  }
  func.func @transform_3(%arg0: i32, %arg1: i32) -> (i32, i32) {
    %c0_i32 = arith.constant 0 : i32
    return %arg0, %arg1 : i32, i32
  }
}

</mosaic_0001>

<llo_original>
// kernel: rnnlm_forward.3
$region0: #{rnnlm_forward.3}
  #allocation0 [shape = 'u32[]', space=smem, size = 0x4, offset = 0x4, fixed_abs, tag = 'smem constant byte address 0x4 - core index']
  #allocation1 [shape = 'u32[72,128]{1,0:T(1,128)}', space=vmem, size = 0x9000, scoped, tag = 'internal scratch']
  %s0 = inlined_call_operand.vmem [shape: bf16[256,128], index: 0, kind: input, shape index: {}]
  %s1 = inlined_call_operand.vmem [shape: bf16[128,128], index: 1, kind: input, shape index: {}]
  %s2 = inlined_call_operand.vmem [shape: f32[1,128], index: 2, kind: input, shape index: {}]
  %s3 = inlined_call_operand.vmem [shape: f32[256,128], index: 3, kind: output, shape index: {}]
  %s4 = sld [smem:[#allocation0]]
  $region22: #{rnnlm_forward.3} parent=0
    _
  %s6 = ssub.s32 1, %s4
  %s7 = scalar_select 0, %s6, %s4
  // Predicated region
  $region2: #{rnnlm_forward.3} parent=0 // pred_check
    _
  $region3: #{rnnlm_forward.3} parent=0 // pred_check_branch
    %9 = sbr.rel (0) target = $region5
  $region4: #{rnnlm_forward.3} parent=0 // pred_region
    _
  $region5: #{rnnlm_forward.3} parent=0 // pred_fallthru
    _
  // Predicated region
  $region6: #{rnnlm_forward.3} parent=0 // pred_check
    _
  $region7: #{rnnlm_forward.3} parent=0 // pred_check_branch
    %11 = sbr.rel (0) target = $region9
  $region8: #{rnnlm_forward.3} parent=0 // pred_region
    _
  $region9: #{rnnlm_forward.3} parent=0 // pred_fallthru
    _
  // Predicated region
  $region10: #{rnnlm_forward.3} parent=0 // pred_check
    _
  $region11: #{rnnlm_forward.3} parent=0 // pred_check_branch
    %13 = sbr.rel (0) target = $region13
  $region12: #{rnnlm_forward.3} parent=0 // pred_region
    _
  $region13: #{rnnlm_forward.3} parent=0 // pred_fallthru
    _
  %v14 = vld [vmem:[%s0] sm:$0xf]
  %v15 = vld [vmem:[%s0 + $0x4] sm:$0xf]
  %v16 = vld [vmem:[%s0 + $0x8] sm:$0xf]
  %v17 = vld [vmem:[%s0 + $0xc] sm:$0xf]
  %v18 = vld [vmem:[%s0 + $0x10] sm:$0xf]
  %v19 = vld [vmem:[%s0 + $0x14] sm:$0xf]
  %v20 = vld [vmem:[%s0 + $0x18] sm:$0xf]
  %v21 = vld [vmem:[%s0 + $0x1c] sm:$0xf]
  %v22 = vld [vmem:[%s0 + $0x20] sm:$0xf]
  %v23 = vld [vmem:[%s0 + $0x24] sm:$0xf]
  %v24 = vld [vmem:[%s0 + $0x28] sm:$0xf]
  %v25 = vld [vmem:[%s0 + $0x2c] sm:$0xf]
  %v26 = vld [vmem:[%s0 + $0x30] sm:$0xf]
  %v27 = vld [vmem:[%s0 + $0x34] sm:$0xf]
  %v28 = vld [vmem:[%s0 + $0x38] sm:$0xf]
  %v29 = vld [vmem:[%s0 + $0x3c] sm:$0xf]
  %v30 = vld [vmem:[%s0 + $0x40] sm:$0xf]
  %v31 = vld [vmem:[%s0 + $0x44] sm:$0xf]
  %v32 = vld [vmem:[%s0 + $0x48] sm:$0xf]
  %v33 = vld [vmem:[%s0 + $0x4c] sm:$0xf]
  %v34 = vld [vmem:[%s0 + $0x50] sm:$0xf]
  %v35 = vld [vmem:[%s0 + $0x54] sm:$0xf]
  %v36 = vld [vmem:[%s0 + $0x58] sm:$0xf]
  %v37 = vld [vmem:[%s0 + $0x5c] sm:$0xf]
  %v38 = vld [vmem:[%s0 + $0x60] sm:$0xf]
  %v39 = vld [vmem:[%s0 + $0x64] sm:$0xf]
  %v40 = vld [vmem:[%s0 + $0x68] sm:$0xf]
  %v41 = vld [vmem:[%s0 + $0x6c] sm:$0xf]
  %v42 = vld [vmem:[%s0 + $0x70] sm:$0xf]
  %v43 = vld [vmem:[%s0 + $0x74] sm:$0xf]
  %v44 = vld [vmem:[%s0 + $0x78] sm:$0xf]
  %v45 = vld [vmem:[%s0 + $0x7c] sm:$0xf]
  %v46 = vld [vmem:[%s1] sm:$0xf]
  %v47 = vld [vmem:[%s1 + $0x4] sm:$0xf]
  %v48 = vld [vmem:[%s1 + $0x8] sm:$0xf]
  %v49 = vld [vmem:[%s1 + $0xc] sm:$0xf]
  %v50 = vld [vmem:[%s1 + $0x10] sm:$0xf]
  %v51 = vld [vmem:[%s1 + $0x14] sm:$0xf]
  %v52 = vld [vmem:[%s1 + $0x18] sm:$0xf]
  %v53 = vld [vmem:[%s1 + $0x1c] sm:$0xf]
  %v54 = vld [vmem:[%s1 + $0x20] sm:$0xf]
  %v55 = vld [vmem:[%s1 + $0x24] sm:$0xf]
  %v56 = vld [vmem:[%s1 + $0x28] sm:$0xf]
  %v57 = vld [vmem:[%s1 + $0x2c] sm:$0xf]
  %v58 = vld [vmem:[%s1 + $0x30] sm:$0xf]
  %v59 = vld [vmem:[%s1 + $0x34] sm:$0xf]
  %v60 = vld [vmem:[%s1 + $0x38] sm:$0xf]
  %v61 = vld [vmem:[%s1 + $0x3c] sm:$0xf]
  %v62 = vld [vmem:[%s2] sm:$0x1]
  %v64 = vperm.slane %v62, 0
  %v98 = vunpack.c.l.b16 %v14
  %v99 = vunpack.c.l.b16 %v15
  %v100 = vunpack.c.l.b16 %v16
  %v101 = vunpack.c.l.b16 %v17
  %v102 = vunpack.c.l.b16 %v18
  %v103 = vunpack.c.l.b16 %v19
  %v104 = vunpack.c.l.b16 %v20
  %v105 = vunpack.c.l.b16 %v21
  %v106 = vunpack.c.l.b16 %v22
  %v107 = vunpack.c.l.b16 %v23
  %v108 = vunpack.c.l.b16 %v24
  %v109 = vunpack.c.l.b16 %v25
  %v110 = vunpack.c.l.b16 %v26
  %v111 = vunpack.c.l.b16 %v27
  %v112 = vunpack.c.l.b16 %v28
  %v113 = vunpack.c.l.b16 %v29
  %v114 = vunpack.c.l.b16 %v30
  %v115 = vunpack.c.l.b16 %v31
  %v116 = vunpack.c.l.b16 %v32
  %v117 = vunpack.c.l.b16 %v33
  %v118 = vunpack.c.l.b16 %v34
  %v119 = vunpack.c.l.b16 %v35
  %v120 = vunpack.c.l.b16 %v36
  %v121 = vunpack.c.l.b16 %v37
  %v122 = vunpack.c.l.b16 %v38
  %v123 = vunpack.c.l.b16 %v39
  %v124 = vunpack.c.l.b16 %v40
  %v125 = vunpack.c.l.b16 %v41
  %v126 = vunpack.c.l.b16 %v42
  %v127 = vunpack.c.l.b16 %v43
  %v128 = vunpack.c.l.b16 %v44
  %v129 = vunpack.c.l.b16 %v45
  %v130 = vpack.c.b16 %v99, %v98
  %v131 = vpack.c.b16 %v101, %v100
  %v132 = vpack.c.b16 %v103, %v102
  %v133 = vpack.c.b16 %v105, %v104
  %v134 = vpack.c.b16 %v107, %v106
  %v135 = vpack.c.b16 %v109, %v108
  %v136 = vpack.c.b16 %v111, %v110
  %v137 = vpack.c.b16 %v113, %v112
  %v138 = vpack.c.b16 %v115, %v114
  %v139 = vpack.c.b16 %v117, %v116
  %v140 = vpack.c.b16 %v119, %v118
  %v141 = vpack.c.b16 %v121, %v120
  %v142 = vpack.c.b16 %v123, %v122
  %v143 = vpack.c.b16 %v125, %v124
  %v144 = vpack.c.b16 %v127, %v126
  %v145 = vpack.c.b16 %v129, %v128
  %v178 = vunpack.c.l.b16 %v46
  %v179 = vunpack.c.l.b16 %v47
  %v180 = vunpack.c.l.b16 %v48
  %v181 = vunpack.c.l.b16 %v49
  %v182 = vunpack.c.l.b16 %v50
  %v183 = vunpack.c.l.b16 %v51
  %v184 = vunpack.c.l.b16 %v52
  %v185 = vunpack.c.l.b16 %v53
  %v186 = vunpack.c.l.b16 %v54
  %v187 = vunpack.c.l.b16 %v55
  %v188 = vunpack.c.l.b16 %v56
  %v189 = vunpack.c.l.b16 %v57
  %v190 = vunpack.c.l.b16 %v58
  %v191 = vunpack.c.l.b16 %v59
  %v192 = vunpack.c.l.b16 %v60
  %v193 = vunpack.c.l.b16 %v61
  %v194 = vpack.c.b16 %v179, %v178
  %v195 = vpack.c.b16 %v181, %v180
  %v196 = vpack.c.b16 %v183, %v182
  %v197 = vpack.c.b16 %v185, %v184
  %v198 = vpack.c.b16 %v187, %v186
  %v199 = vpack.c.b16 %v189, %v188
  %v200 = vpack.c.b16 %v191, %v190
  %v201 = vpack.c.b16 %v193, %v192
  %210 = vmatpush.bf16.msra.mxu0 %v201
  %211 = vmatpush.bf16.msra.mxu0 %v200
  %212 = vmatpush.bf16.msra.mxu0 %v199
  %213 = vmatpush.bf16.msra.mxu0 %v198
  %214 = vmatpush.bf16.msra.mxu0 %v197
  %215 = vmatpush.bf16.msra.mxu0 %v196
  %216 = vmatpush.bf16.msra.mxu0 %v195
  %217 = vmatpush.bf16.msra.mxu0 %v194
  %218 = vmatmul.bf16.gmra.mxu0 %v130
  %v219 = vpop.f32.mrf.mxu0
  %v220 = vadd.f32 %v64, %v219
  %v221 = vpop.f32.mrf.mxu0
  %v222 = vadd.f32 %v64, %v221
  %223 = vmatmul.bf16.gmra.mxu0 %v131
  %v224 = vpop.f32.mrf.mxu0
  %v225 = vadd.f32 %v64, %v224
  %v226 = vpop.f32.mrf.mxu0
  %v227 = vadd.f32 %v64, %v226
  %228 = vmatmul.bf16.gmra.mxu0 %v132
  %v229 = vpop.f32.mrf.mxu0
  %v230 = vadd.f32 %v64, %v229
  %v231 = vpop.f32.mrf.mxu0
  %v232 = vadd.f32 %v64, %v231
  %233 = vmatmul.bf16.gmra.mxu0 %v133
  %v234 = vpop.f32.mrf.mxu0
  %v235 = vadd.f32 %v64, %v234
  %v236 = vpop.f32.mrf.mxu0
  %v237 = vadd.f32 %v64, %v236
  %238 = vmatmul.bf16.gmra.mxu0 %v134
  %v239 = vpop.f32.mrf.mxu0
  %v240 = vadd.f32 %v64, %v239
  %v241 = vpop.f32.mrf.mxu0
  %v242 = vadd.f32 %v64, %v241
  %243 = vmatmul.bf16.gmra.mxu0 %v135
  %v244 = vpop.f32.mrf.mxu0
  %v245 = vadd.f32 %v64, %v244
  %v246 = vpop.f32.mrf.mxu0
  %v247 = vadd.f32 %v64, %v246
  %248 = vmatmul.bf16.gmra.mxu0 %v136
  %v249 = vpop.f32.mrf.mxu0
  %v250 = vadd.f32 %v64, %v249
  %v251 = vpop.f32.mrf.mxu0
  %v252 = vadd.f32 %v64, %v251
  %253 = vmatmul.bf16.gmra.mxu0 %v137
  %v254 = vpop.f32.mrf.mxu0
  %v255 = vadd.f32 %v64, %v254
  %v256 = vpop.f32.mrf.mxu0
  %v257 = vadd.f32 %v64, %v256
  %258 = vmatmul.bf16.gmra.mxu0 %v138
  %v259 = vpop.f32.mrf.mxu0
  %v260 = vadd.f32 %v64, %v259
  %v261 = vpop.f32.mrf.mxu0
  %v262 = vadd.f32 %v64, %v261
  %263 = vmatmul.bf16.gmra.mxu0 %v139
  %v264 = vpop.f32.mrf.mxu0
  %v265 = vadd.f32 %v64, %v264
  %v266 = vpop.f32.mrf.mxu0
  %v267 = vadd.f32 %v64, %v266
  %268 = vmatmul.bf16.gmra.mxu0 %v140
  %v269 = vpop.f32.mrf.mxu0
  %v270 = vadd.f32 %v64, %v269
  %v271 = vpop.f32.mrf.mxu0
  %v272 = vadd.f32 %v64, %v271
  %273 = vmatmul.bf16.gmra.mxu0 %v141
  %v274 = vpop.f32.mrf.mxu0
  %v275 = vadd.f32 %v64, %v274
  %v276 = vpop.f32.mrf.mxu0
  %v277 = vadd.f32 %v64, %v276
  %278 = vmatmul.bf16.gmra.mxu0 %v142
  %v279 = vpop.f32.mrf.mxu0
  %v280 = vadd.f32 %v64, %v279
  %v281 = vpop.f32.mrf.mxu0
  %v282 = vadd.f32 %v64, %v281
  %283 = vmatmul.bf16.gmra.mxu0 %v143
  %v284 = vpop.f32.mrf.mxu0
  %v285 = vadd.f32 %v64, %v284
  %v286 = vpop.f32.mrf.mxu0
  %v287 = vadd.f32 %v64, %v286
  %288 = vmatmul.bf16.gmra.mxu0 %v144
  %v289 = vpop.f32.mrf.mxu0
  %v290 = vadd.f32 %v64, %v289
  %v291 = vpop.f32.mrf.mxu0
  %v292 = vadd.f32 %v64, %v291
  %293 = vmatmul.bf16.gmra.mxu0 %v145
  %v294 = vpop.f32.mrf.mxu0
  %v295 = vadd.f32 %v64, %v294
  %v296 = vpop.f32.mrf.mxu0
  %v297 = vadd.f32 %v64, %v296
  %298 = vdwg.mxu0
  %299 = vst [vmem:[%s3] sm:$0xff] %v220
  %300 = vst [vmem:[%s3 + $0x8] sm:$0xff] %v222
  %301 = vst [vmem:[%s3 + $0x10] sm:$0xff] %v225
  %302 = vst [vmem:[%s3 + $0x18] sm:$0xff] %v227
  %303 = vst [vmem:[%s3 + $0x20] sm:$0xff] %v230
  %304 = vst [vmem:[%s3 + $0x28] sm:$0xff] %v232
  %305 = vst [vmem:[%s3 + $0x30] sm:$0xff] %v235
  %306 = vst [vmem:[%s3 + $0x38] sm:$0xff] %v237
  %307 = vst [vmem:[%s3 + $0x40] sm:$0xff] %v240
  %308 = vst [vmem:[%s3 + $0x48] sm:$0xff] %v242
  %309 = vst [vmem:[%s3 + $0x50] sm:$0xff] %v245
  %310 = vst [vmem:[%s3 + $0x58] sm:$0xff] %v247
  %311 = vst [vmem:[%s3 + $0x60] sm:$0xff] %v250
  %312 = vst [vmem:[%s3 + $0x68] sm:$0xff] %v252
  %313 = vst [vmem:[%s3 + $0x70] sm:$0xff] %v255
  %314 = vst [vmem:[%s3 + $0x78] sm:$0xff] %v257
  %315 = vst [vmem:[%s3 + $0x80] sm:$0xff] %v260
  %316 = vst [vmem:[%s3 + $0x88] sm:$0xff] %v262
  %317 = vst [vmem:[%s3 + $0x90] sm:$0xff] %v265
  %318 = vst [vmem:[%s3 + $0x98] sm:$0xff] %v267
  %319 = vst [vmem:[%s3 + $0xa0] sm:$0xff] %v270
  %320 = vst [vmem:[%s3 + $0xa8] sm:$0xff] %v272
  %321 = vst [vmem:[%s3 + $0xb0] sm:$0xff] %v275
  %322 = vst [vmem:[%s3 + $0xb8] sm:$0xff] %v277
  %323 = vst [vmem:[%s3 + $0xc0] sm:$0xff] %v280
  %324 = vst [vmem:[%s3 + $0xc8] sm:$0xff] %v282
  %325 = vst [vmem:[%s3 + $0xd0] sm:$0xff] %v285
  %326 = vst [vmem:[%s3 + $0xd8] sm:$0xff] %v287
  %327 = vst [vmem:[%s3 + $0xe0] sm:$0xff] %v290
  %328 = vst [vmem:[%s3 + $0xe8] sm:$0xff] %v292
  %329 = vst [vmem:[%s3 + $0xf0] sm:$0xff] %v295
  %330 = vst [vmem:[%s3 + $0xf8] sm:$0xff] %v297
  // Predicated region
  $region14: #{rnnlm_forward.3} parent=0 // pred_check
    _
  $region15: #{rnnlm_forward.3} parent=0 // pred_check_branch
    %332 = sbr.rel (0) target = $region17
  $region16: #{rnnlm_forward.3} parent=0 // pred_region
    _
  $region17: #{rnnlm_forward.3} parent=0 // pred_fallthru
    _
  // Predicated region
  $region18: #{rnnlm_forward.3} parent=0 // pred_check
    _
  $region19: #{rnnlm_forward.3} parent=0 // pred_check_branch
    %334 = sbr.rel (0) target = $region21
  $region20: #{rnnlm_forward.3} parent=0 // pred_region
    _
  $region21: #{rnnlm_forward.3} parent=0 // pred_fallthru
    _

// kernel: rnnlm_forward.2
$region0: #{rnnlm_forward.2}
  #allocation0 [shape = 'u32[]', space=smem, size = 0x4, offset = 0x4, fixed_abs, tag = 'smem constant byte address 0x4 - core index']
  #allocation1 [shape = 'u32[72,128]{1,0:T(1,128)}', space=vmem, size = 0x9000, scoped, tag = 'internal scratch']
  #allocation2 [shape = 'bf16[8,16,128]{2,1,0:T(8,128)(2,1)}', space=vmem, size = 0x8000, scoped, tag = 'scratch operand']
  #allocation3 [shape = 'bf16[8,16,512]{2,1,0:T(8,128)(2,1)}', space=vmem, size = 0x20000, scoped, tag = 'scratch operand']
  %s0 = inlined_call_operand.vmem [shape: bf16[8,16,128], index: 0, kind: input, shape index: {}]
  %s1 = inlined_call_operand.vmem [shape: bf16[8,16,1], index: 1, kind: input, shape index: {}]
  %s2 = inlined_call_operand.vmem [shape: bf16[128,512], index: 2, kind: input, shape index: {}]
  %s3 = inlined_call_operand.vmem [shape: bf16[128,512], index: 3, kind: input, shape index: {}]
  %s4 = inlined_call_operand.vmem [shape: f32[1,512], index: 4, kind: input, shape index: {}]
  %s5 = inlined_call_operand.vmem [shape: bf16[128,512], index: 5, kind: input, shape index: {}]
  %s6 = inlined_call_operand.vmem [shape: bf16[128,512], index: 6, kind: input, shape index: {}]
  %s7 = inlined_call_operand.vmem [shape: f32[1,512], index: 7, kind: input, shape index: {}]
  %s8 = inlined_call_operand.vmem [shape: bf16[8,16,128], index: 8, kind: output, shape index: {}]
  %s9 = sld [smem:[#allocation0]]
  $region42: #{rnnlm_forward.2} parent=0
    _
  %s11 = ssub.s32 1, %s9
  %s12 = scalar_select 0, %s11, %s9
  // Predicated region
  $region2: #{rnnlm_forward.2} parent=0 // pred_check
    _
  $region3: #{rnnlm_forward.2} parent=0 // pred_check_branch
    %14 = sbr.rel (0) target = $region5
  $region4: #{rnnlm_forward.2} parent=0 // pred_region
    _
  $region5: #{rnnlm_forward.2} parent=0 // pred_fallthru
    _
  // Predicated region
  $region6: #{rnnlm_forward.2} parent=0 // pred_check
    _
  $region7: #{rnnlm_forward.2} parent=0 // pred_check_branch
    %16 = sbr.rel (0) target = $region9
  $region8: #{rnnlm_forward.2} parent=0 // pred_region
    _
  $region9: #{rnnlm_forward.2} parent=0 // pred_fallthru
    _
  // Predicated region
  $region10: #{rnnlm_forward.2} parent=0 // pred_check
    _
  $region11: #{rnnlm_forward.2} parent=0 // pred_check_branch
    %18 = sbr.rel (0) target = $region13
  $region12: #{rnnlm_forward.2} parent=0 // pred_region
    _
  $region13: #{rnnlm_forward.2} parent=0 // pred_fallthru
    _
  // Predicated region
  $region14: #{rnnlm_forward.2} parent=0 // pred_check
    _
  $region15: #{rnnlm_forward.2} parent=0 // pred_check_branch
    %20 = sbr.rel (0) target = $region17
  $region16: #{rnnlm_forward.2} parent=0 // pred_region
    _
  $region17: #{rnnlm_forward.2} parent=0 // pred_fallthru
    _
  // Predicated region
  $region18: #{rnnlm_forward.2} parent=0 // pred_check
    _
  $region19: #{rnnlm_forward.2} parent=0 // pred_check_branch
    %22 = sbr.rel (0) target = $region21
  $region20: #{rnnlm_forward.2} parent=0 // pred_region
    _
  $region21: #{rnnlm_forward.2} parent=0 // pred_fallthru
    _
  // Predicated region
  $region22: #{rnnlm_forward.2} parent=0 // pred_check
    _
  $region23: #{rnnlm_forward.2} parent=0 // pred_check_branch
    %24 = sbr.rel (0) target = $region25
  $region24: #{rnnlm_forward.2} parent=0 // pred_region
    _
  $region25: #{rnnlm_forward.2} parent=0 // pred_fallthru
    _
  // Predicated region
  $region26: #{rnnlm_forward.2} parent=0 // pred_check
    _
  $region27: #{rnnlm_forward.2} parent=0 // pred_check_branch
    %26 = sbr.rel (0) target = $region29
  $region28: #{rnnlm_forward.2} parent=0 // pred_region
    _
  $region29: #{rnnlm_forward.2} parent=0 // pred_fallthru
    _
  // Predicated region
  $region30: #{rnnlm_forward.2} parent=0 // pred_check
    _
  $region31: #{rnnlm_forward.2} parent=0 // pred_check_branch
    %28 = sbr.rel (0) target = $region33
  $region32: #{rnnlm_forward.2} parent=0 // pred_region
    _
  $region33: #{rnnlm_forward.2} parent=0 // pred_fallthru
    _
  %v30 = vld [vmem:[%s2] sm:$0xff]
  %v31 = vld [vmem:[%s2 + $0x8] sm:$0xff]
  %v32 = vld [vmem:[%s2 + $0x10] sm:$0xff]
  %v33 = vld [vmem:[%s2 + $0x18] sm:$0xff]
  %v34 = vld [vmem:[%s2 + $0x20] sm:$0xff]
  %v35 = vld [vmem:[%s2 + $0x28] sm:$0xff]
  %v36 = vld [vmem:[%s2 + $0x30] sm:$0xff]
  %v37 = vld [vmem:[%s2 + $0x38] sm:$0xff]
  %v38 = vld [vmem:[%s2 + $0x40] sm:$0xff]
  %v39 = vld [vmem:[%s2 + $0x48] sm:$0xff]
  %v40 = vld [vmem:[%s2 + $0x50] sm:$0xff]
  %v41 = vld [vmem:[%s2 + $0x58] sm:$0xff]
  %v42 = vld [vmem:[%s2 + $0x60] sm:$0xff]
  %v43 = vld [vmem:[%s2 + $0x68] sm:$0xff]
  %v44 = vld [vmem:[%s2 + $0x70] sm:$0xff]
  %v45 = vld [vmem:[%s2 + $0x78] sm:$0xff]
  %v46 = vld [vmem:[%s2 + $0x80] sm:$0xff]
  %v47 = vld [vmem:[%s2 + $0x88] sm:$0xff]
  %v48 = vld [vmem:[%s2 + $0x90] sm:$0xff]
  %v49 = vld [vmem:[%s2 + $0x98] sm:$0xff]
  %v50 = vld [vmem:[%s2 + $0xa0] sm:$0xff]
  %v51 = vld [vmem:[%s2 + $0xa8] sm:$0xff]
  %v52 = vld [vmem:[%s2 + $0xb0] sm:$0xff]
  %v53 = vld [vmem:[%s2 + $0xb8] sm:$0xff]
  %v54 = vld [vmem:[%s2 + $0xc0] sm:$0xff]
  %v55 = vld [vmem:[%s2 + $0xc8] sm:$0xff]
  %v56 = vld [vmem:[%s2 + $0xd0] sm:$0xff]
  %v57 = vld [vmem:[%s2 + $0xd8] sm:$0xff]
  %v58 = vld [vmem:[%s2 + $0xe0] sm:$0xff]
  %v59 = vld [vmem:[%s2 + $0xe8] sm:$0xff]
  %v60 = vld [vmem:[%s2 + $0xf0] sm:$0xff]
  %v61 = vld [vmem:[%s2 + $0xf8] sm:$0xff]
  %v62 = vld [vmem:[%s3] sm:$0xff]
  %v63 = vld [vmem:[%s3 + $0x8] sm:$0xff]
  %v64 = vld [vmem:[%s3 + $0x10] sm:$0xff]
  %v65 = vld [vmem:[%s3 + $0x18] sm:$0xff]
  %v66 = vld [vmem:[%s3 + $0x20] sm:$0xff]
  %v67 = vld [vmem:[%s3 + $0x28] sm:$0xff]
  %v68 = vld [vmem:[%s3 + $0x30] sm:$0xff]
  %v69 = vld [vmem:[%s3 + $0x38] sm:$0xff]
  %v70 = vld [vmem:[%s3 + $0x40] sm:$0xff]
  %v71 = vld [vmem:[%s3 + $0x48] sm:$0xff]
  %v72 = vld [vmem:[%s3 + $0x50] sm:$0xff]
  %v73 = vld [vmem:[%s3 + $0x58] sm:$0xff]
  %v74 = vld [vmem:[%s3 + $0x60] sm:$0xff]
  %v75 = vld [vmem:[%s3 + $0x68] sm:$0xff]
  %v76 = vld [vmem:[%s3 + $0x70] sm:$0xff]
  %v77 = vld [vmem:[%s3 + $0x78] sm:$0xff]
  %v78 = vld [vmem:[%s3 + $0x80] sm:$0xff]
  %v79 = vld [vmem:[%s3 + $0x88] sm:$0xff]
  %v80 = vld [vmem:[%s3 + $0x90] sm:$0xff]
  %v81 = vld [vmem:[%s3 + $0x98] sm:$0xff]
  %v82 = vld [vmem:[%s3 + $0xa0] sm:$0xff]
  %v83 = vld [vmem:[%s3 + $0xa8] sm:$0xff]
  %v84 = vld [vmem:[%s3 + $0xb0] sm:$0xff]
  %v85 = vld [vmem:[%s3 + $0xb8] sm:$0xff]
  %v86 = vld [vmem:[%s3 + $0xc0] sm:$0xff]
  %v87 = vld [vmem:[%s3 + $0xc8] sm:$0xff]
  %v88 = vld [vmem:[%s3 + $0xd0] sm:$0xff]
  %v89 = vld [vmem:[%s3 + $0xd8] sm:$0xff]
  %v90 = vld [vmem:[%s3 + $0xe0] sm:$0xff]
  %v91 = vld [vmem:[%s3 + $0xe8] sm:$0xff]
  %v92 = vld [vmem:[%s3 + $0xf0] sm:$0xff]
  %v93 = vld [vmem:[%s3 + $0xf8] sm:$0xff]
  %v94 = vld [vmem:[%s4] sm:$0xf]
  %v95 = vld [vmem:[%s0] sm:$0xf]
  %v96 = vld [vmem:[%s0 + $0x4] sm:$0xf]
  %v97 = vld [vmem:[%s0 + $0x8] sm:$0xf]
  %v98 = vld [vmem:[%s0 + $0xc] sm:$0xf]
  %v99 = vld [vmem:[%s0 + $0x10] sm:$0xf]
  %v100 = vld [vmem:[%s0 + $0x14] sm:$0xf]
  %v101 = vld [vmem:[%s0 + $0x18] sm:$0xf]
  %v102 = vld [vmem:[%s0 + $0x1c] sm:$0xf]
  %v103 = vld [vmem:[%s0 + $0x20] sm:$0xf]
  %v104 = vld [vmem:[%s0 + $0x24] sm:$0xf]
  %v105 = vld [vmem:[%s0 + $0x28] sm:$0xf]
  %v106 = vld [vmem:[%s0 + $0x2c] sm:$0xf]
  %v107 = vld [vmem:[%s0 + $0x30] sm:$0xf]
  %v108 = vld [vmem:[%s0 + $0x34] sm:$0xf]
  %v109 = vld [vmem:[%s0 + $0x38] sm:$0xf]
  %v110 = vld [vmem:[%s0 + $0x3c] sm:$0xf]
  %v112 = vperm.slane %v94, 0
  %v113 = vperm.slane %v94, 1
  %v114 = vperm.slane %v94, 2
  %v115 = vperm.slane %v94, 3
  %v136 = vunpack.c.l.b16 %v95
  %v137 = vunpack.c.l.b16 %v96
  %v138 = vunpack.c.l.b16 %v97
  %v139 = vunpack.c.l.b16 %v98
  %v140 = vunpack.c.l.b16 %v99
  %v141 = vunpack.c.l.b16 %v100
  %v142 = vunpack.c.l.b16 %v101
  %v143 = vunpack.c.l.b16 %v102
  %v144 = vunpack.c.l.b16 %v103
  %v145 = vunpack.c.l.b16 %v104
  %v146 = vunpack.c.l.b16 %v105
  %v147 = vunpack.c.l.b16 %v106
  %v148 = vunpack.c.l.b16 %v107
  %v149 = vunpack.c.l.b16 %v108
  %v150 = vunpack.c.l.b16 %v109
  %v151 = vunpack.c.l.b16 %v110
  %v152 = vpack.c.b16 %v137, %v136
  %v153 = vpack.c.b16 %v139, %v138
  %v154 = vpack.c.b16 %v141, %v140
  %v155 = vpack.c.b16 %v143, %v142
  %v156 = vpack.c.b16 %v145, %v144
  %v157 = vpack.c.b16 %v147, %v146
  %v158 = vpack.c.b16 %v149, %v148
  %v159 = vpack.c.b16 %v151, %v150
  %v200 = vunpack.c.l.b16 %v30
  %v201 = vunpack.c.h.b16 %v30
  %v202 = vunpack.c.l.b16 %v31
  %v203 = vunpack.c.h.b16 %v31
  %v204 = vunpack.c.l.b16 %v32
  %v205 = vunpack.c.h.b16 %v32
  %v206 = vunpack.c.l.b16 %v33
  %v207 = vunpack.c.h.b16 %v33
  %v208 = vunpack.c.l.b16 %v34
  %v209 = vunpack.c.h.b16 %v34
  %v210 = vunpack.c.l.b16 %v35
  %v211 = vunpack.c.h.b16 %v35
  %v212 = vunpack.c.l.b16 %v36
  %v213 = vunpack.c.h.b16 %v36
  %v214 = vunpack.c.l.b16 %v37
  %v215 = vunpack.c.h.b16 %v37
  %v216 = vunpack.c.l.b16 %v38
  %v217 = vunpack.c.h.b16 %v38
  %v218 = vunpack.c.l.b16 %v39
  %v219 = vunpack.c.h.b16 %v39
  %v220 = vunpack.c.l.b16 %v40
  %v221 = vunpack.c.h.b16 %v40
  %v222 = vunpack.c.l.b16 %v41
  %v223 = vunpack.c.h.b16 %v41
  %v224 = vunpack.c.l.b16 %v42
  %v225 = vunpack.c.h.b16 %v42
  %v226 = vunpack.c.l.b16 %v43
  %v227 = vunpack.c.h.b16 %v43
  %v228 = vunpack.c.l.b16 %v44
  %v229 = vunpack.c.h.b16 %v44
  %v230 = vunpack.c.l.b16 %v45
  %v231 = vunpack.c.h.b16 %v45
  %v232 = vunpack.c.l.b16 %v46
  %v233 = vunpack.c.h.b16 %v46
  %v234 = vunpack.c.l.b16 %v47
  %v235 = vunpack.c.h.b16 %v47
  %v236 = vunpack.c.l.b16 %v48
  %v237 = vunpack.c.h.b16 %v48
  %v238 = vunpack.c.l.b16 %v49
  %v239 = vunpack.c.h.b16 %v49
  %v240 = vunpack.c.l.b16 %v50
  %v241 = vunpack.c.h.b16 %v50
  %v242 = vunpack.c.l.b16 %v51
  %v243 = vunpack.c.h.b16 %v51
  %v244 = vunpack.c.l.b16 %v52
  %v245 = vunpack.c.h.b16 %v52
  %v246 = vunpack.c.l.b16 %v53
  %v247 = vunpack.c.h.b16 %v53
  %v248 = vunpack.c.l.b16 %v54
  %v249 = vunpack.c.h.b16 %v54
  %v250 = vunpack.c.l.b16 %v55
  %v251 = vunpack.c.h.b16 %v55
  %v252 = vunpack.c.l.b16 %v56
  %v253 = vunpack.c.h.b16 %v56
  %v254 = vunpack.c.l.b16 %v57
  %v255 = vunpack.c.h.b16 %v57
  %v256 = vunpack.c.l.b16 %v58
  %v257 = vunpack.c.h.b16 %v58
  %v258 = vunpack.c.l.b16 %v59
  %v259 = vunpack.c.h.b16 %v59
  %v260 = vunpack.c.l.b16 %v60
  %v261 = vunpack.c.h.b16 %v60
  %v262 = vunpack.c.l.b16 %v61
  %v263 = vunpack.c.h.b16 %v61
  %v264 = vpack.c.b16 %v204, %v200
  %v265 = vpack.c.b16 %v205, %v201
  %v266 = vpack.c.b16 %v206, %v202
  %v267 = vpack.c.b16 %v207, %v203
  %v268 = vpack.c.b16 %v212, %v208
  %v269 = vpack.c.b16 %v213, %v209
  %v270 = vpack.c.b16 %v214, %v210
  %v271 = vpack.c.b16 %v215, %v211
  %v272 = vpack.c.b16 %v220, %v216
  %v273 = vpack.c.b16 %v221, %v217
  %v274 = vpack.c.b16 %v222, %v218
  %v275 = vpack.c.b16 %v223, %v219
  %v276 = vpack.c.b16 %v228, %v224
  %v277 = vpack.c.b16 %v229, %v225
  %v278 = vpack.c.b16 %v230, %v226
  %v279 = vpack.c.b16 %v231, %v227
  %v280 = vpack.c.b16 %v236, %v232
  %v281 = vpack.c.b16 %v237, %v233
  %v282 = vpack.c.b16 %v238, %v234
  %v283 = vpack.c.b16 %v239, %v235
  %v284 = vpack.c.b16 %v244, %v240
  %v285 = vpack.c.b16 %v245, %v241
  %v286 = vpack.c.b16 %v246, %v242
  %v287 = vpack.c.b16 %v247, %v243
  %v288 = vpack.c.b16 %v252, %v248
  %v289 = vpack.c.b16 %v253, %v249
  %v290 = vpack.c.b16 %v254, %v250
  %v291 = vpack.c.b16 %v255, %v251
  %v292 = vpack.c.b16 %v260, %v256
  %v293 = vpack.c.b16 %v261, %v257
  %v294 = vpack.c.b16 %v262, %v258
  %v295 = vpack.c.b16 %v263, %v259
  %328 = vmatpush.bf16.msra.mxu0 %v292
  %329 = vmatpush.bf16.msra.mxu0 %v288
  %330 = vmatpush.bf16.msra.mxu0 %v284
  %331 = vmatpush.bf16.msra.mxu0 %v280
  %332 = vmatpush.bf16.msra.mxu0 %v276
  %333 = vmatpush.bf16.msra.mxu0 %v272
  %334 = vmatpush.bf16.msra.mxu0 %v268
  %335 = vmatpush.bf16.msra.mxu0 %v264
  %336 = vmatmul.bf16.gmra.mxu0 %v152
  %v337 = vpop.f32.mrf.mxu0
  %v338 = vadd.f32 %v112, %v337
  %v339 = vpop.f32.mrf.mxu0
  %v340 = vadd.f32 %v112, %v339
  %341 = vmatmul.bf16.gmra.mxu0 %v153
  %v342 = vpop.f32.mrf.mxu0
  %v343 = vadd.f32 %v112, %v342
  %v344 = vpop.f32.mrf.mxu0
  %v345 = vadd.f32 %v112, %v344
  %346 = vmatmul.bf16.gmra.mxu0 %v154
  %v347 = vpop.f32.mrf.mxu0
  %v348 = vadd.f32 %v112, %v347
  %v349 = vpop.f32.mrf.mxu0
  %v350 = vadd.f32 %v112, %v349
  %351 = vmatmul.bf16.gmra.mxu0 %v155
  %v352 = vpop.f32.mrf.mxu0
  %v353 = vadd.f32 %v112, %v352
  %v354 = vpop.f32.mrf.mxu0
  %v355 = vadd.f32 %v112, %v354
  %356 = vmatmul.bf16.gmra.mxu0 %v156
  %v357 = vpop.f32.mrf.mxu0
  %v358 = vadd.f32 %v112, %v357
  %v359 = vpop.f32.mrf.mxu0
  %v360 = vadd.f32 %v112, %v359
  %361 = vmatmul.bf16.gmra.mxu0 %v157
  %v362 = vpop.f32.mrf.mxu0
  %v363 = vadd.f32 %v112, %v362
  %v364 = vpop.f32.mrf.mxu0
  %v365 = vadd.f32 %v112, %v364
  %366 = vmatmul.bf16.gmra.mxu0 %v158
  %v367 = vpop.f32.mrf.mxu0
  %v368 = vadd.f32 %v112, %v367
  %v369 = vpop.f32.mrf.mxu0
  %v370 = vadd.f32 %v112, %v369
  %371 = vmatmul.bf16.gmra.mxu0 %v159
  %v372 = vpop.f32.mrf.mxu0
  %v373 = vadd.f32 %v112, %v372
  %v374 = vpop.f32.mrf.mxu0
  %v375 = vadd.f32 %v112, %v374
  %376 = vdwg.mxu0
  %377 = vmatpush.bf16.msra.mxu0 %v293
  %378 = vmatpush.bf16.msra.mxu0 %v289
  %379 = vmatpush.bf16.msra.mxu0 %v285
  %380 = vmatpush.bf16.msra.mxu0 %v281
  %381 = vmatpush.bf16.msra.mxu0 %v277
  %382 = vmatpush.bf16.msra.mxu0 %v273
  %383 = vmatpush.bf16.msra.mxu0 %v269
  %384 = vmatpush.bf16.msra.mxu0 %v265
  %385 = vmatmul.bf16.gmra.mxu0 %v152
  %v386 = vpop.f32.mrf.mxu0
  %v387 = vadd.f32 %v113, %v386
  %v388 = vpop.f32.mrf.mxu0
  %v389 = vadd.f32 %v113, %v388
  %390 = vmatmul.bf16.gmra.mxu0 %v153
  %v391 = vpop.f32.mrf.mxu0
  %v392 = vadd.f32 %v113, %v391
  %v393 = vpop.f32.mrf.mxu0
  %v394 = vadd.f32 %v113, %v393
  %395 = vmatmul.bf16.gmra.mxu0 %v154
  %v396 = vpop.f32.mrf.mxu0
  %v397 = vadd.f32 %v113, %v396
  %v398 = vpop.f32.mrf.mxu0
  %v399 = vadd.f32 %v113, %v398
  %400 = vmatmul.bf16.gmra.mxu0 %v155
  %v401 = vpop.f32.mrf.mxu0
  %v402 = vadd.f32 %v113, %v401
  %v403 = vpop.f32.mrf.mxu0
  %v404 = vadd.f32 %v113, %v403
  %405 = vmatmul.bf16.gmra.mxu0 %v156
  %v406 = vpop.f32.mrf.mxu0
  %v407 = vadd.f32 %v113, %v406
  %v408 = vpop.f32.mrf.mxu0
  %v409 = vadd.f32 %v113, %v408
  %410 = vmatmul.bf16.gmra.mxu0 %v157
  %v411 = vpop.f32.mrf.mxu0
  %v412 = vadd.f32 %v113, %v411
  %v413 = vpop.f32.mrf.mxu0
  %v414 = vadd.f32 %v113, %v413
  %415 = vmatmul.bf16.gmra.mxu0 %v158
  %v416 = vpop.f32.mrf.mxu0
  %v417 = vadd.f32 %v113, %v416
  %v418 = vpop.f32.mrf.mxu0
  %v419 = vadd.f32 %v113, %v418
  %420 = vmatmul.bf16.gmra.mxu0 %v159
  %v421 = vpop.f32.mrf.mxu0
  %v422 = vadd.f32 %v113, %v421
  %v423 = vpop.f32.mrf.mxu0
  %v424 = vadd.f32 %v113, %v423
  %425 = vdwg.mxu0
  %426 = vmatpush.bf16.msra.mxu0 %v294
  %427 = vmatpush.bf16.msra.mxu0 %v290
  %428 = vmatpush.bf16.msra.mxu0 %v286
  %429 = vmatpush.bf16.msra.mxu0 %v282
  %430 = vmatpush.bf16.msra.mxu0 %v278
  %431 = vmatpush.bf16.msra.mxu0 %v274
  %432 = vmatpush.bf16.msra.mxu0 %v270
  %433 = vmatpush.bf16.msra.mxu0 %v266
  %434 = vmatmul.bf16.gmra.mxu0 %v152
  %v435 = vpop.f32.mrf.mxu0
  %v436 = vadd.f32 %v114, %v435
  %v437 = vpop.f32.mrf.mxu0
  %v438 = vadd.f32 %v114, %v437
  %439 = vmatmul.bf16.gmra.mxu0 %v153
  %v440 = vpop.f32.mrf.mxu0
  %v441 = vadd.f32 %v114, %v440
  %v442 = vpop.f32.mrf.mxu0
  %v443 = vadd.f32 %v114, %v442
  %444 = vmatmul.bf16.gmra.mxu0 %v154
  %v445 = vpop.f32.mrf.mxu0
  %v446 = vadd.f32 %v114, %v445
  %v447 = vpop.f32.mrf.mxu0
  %v448 = vadd.f32 %v114, %v447
  %449 = vmatmul.bf16.gmra.mxu0 %v155
  %v450 = vpop.f32.mrf.mxu0
  %v451 = vadd.f32 %v114, %v450
  %v452 = vpop.f32.mrf.mxu0
  %v453 = vadd.f32 %v114, %v452
  %454 = vmatmul.bf16.gmra.mxu0 %v156
  %v455 = vpop.f32.mrf.mxu0
  %v456 = vadd.f32 %v114, %v455
  %v457 = vpop.f32.mrf.mxu0
  %v458 = vadd.f32 %v114, %v457
  %459 = vmatmul.bf16.gmra.mxu0 %v157
  %v460 = vpop.f32.mrf.mxu0
  %v461 = vadd.f32 %v114, %v460
  %v462 = vpop.f32.mrf.mxu0
  %v463 = vadd.f32 %v114, %v462
  %464 = vmatmul.bf16.gmra.mxu0 %v158
  %v465 = vpop.f32.mrf.mxu0
  %v466 = vadd.f32 %v114, %v465
  %v467 = vpop.f32.mrf.mxu0
  %v468 = vadd.f32 %v114, %v467
  %469 = vmatmul.bf16.gmra.mxu0 %v159
  %v470 = vpop.f32.mrf.mxu0
  %v471 = vadd.f32 %v114, %v470
  %v472 = vpop.f32.mrf.mxu0
  %v473 = vadd.f32 %v114, %v472
  %474 = vdwg.mxu0
  %475 = vmatpush.bf16.msra.mxu0 %v295
  %476 = vmatpush.bf16.msra.mxu0 %v291
  %477 = vmatpush.bf16.msra.mxu0 %v287
  %478 = vmatpush.bf16.msra.mxu0 %v283
  %479 = vmatpush.bf16.msra.mxu0 %v279
  %480 = vmatpush.bf16.msra.mxu0 %v275
  %481 = vmatpush.bf16.msra.mxu0 %v271
  %482 = vmatpush.bf16.msra.mxu0 %v267
  %483 = vmatmul.bf16.gmra.mxu0 %v152
  %v484 = vpop.f32.mrf.mxu0
  %v485 = vadd.f32 %v115, %v484
  %v486 = vpop.f32.mrf.mxu0
  %v487 = vadd.f32 %v115, %v486
  %488 = vmatmul.bf16.gmra.mxu0 %v153
  %v489 = vpop.f32.mrf.mxu0
  %v490 = vadd.f32 %v115, %v489
  %v491 = vpop.f32.mrf.mxu0
  %v492 = vadd.f32 %v115, %v491
  %493 = vmatmul.bf16.gmra.mxu0 %v154
  %v494 = vpop.f32.mrf.mxu0
  %v495 = vadd.f32 %v115, %v494
  %v496 = vpop.f32.mrf.mxu0
  %v497 = vadd.f32 %v115, %v496
  %498 = vmatmul.bf16.gmra.mxu0 %v155
  %v499 = vpop.f32.mrf.mxu0
  %v500 = vadd.f32 %v115, %v499
  %v501 = vpop.f32.mrf.mxu0
  %v502 = vadd.f32 %v115, %v501
  %503 = vmatmul.bf16.gmra.mxu0 %v156
  %v504 = vpop.f32.mrf.mxu0
  %v505 = vadd.f32 %v115, %v504
  %v506 = vpop.f32.mrf.mxu0
  %v507 = vadd.f32 %v115, %v506
  %508 = vmatmul.bf16.gmra.mxu0 %v157
  %v509 = vpop.f32.mrf.mxu0
  %v510 = vadd.f32 %v115, %v509
  %v511 = vpop.f32.mrf.mxu0
  %v512 = vadd.f32 %v115, %v511
  %513 = vmatmul.bf16.gmra.mxu0 %v158
  %v514 = vpop.f32.mrf.mxu0
  %v515 = vadd.f32 %v115, %v514
  %v516 = vpop.f32.mrf.mxu0
  %v517 = vadd.f32 %v115, %v516
  %518 = vmatmul.bf16.gmra.mxu0 %v159
  %v519 = vpop.f32.mrf.mxu0
  %v520 = vadd.f32 %v115, %v519
  %v521 = vpop.f32.mrf.mxu0
  %v522 = vadd.f32 %v115, %v521
  %523 = vdwg.mxu0
  %v524 = vpack.c.bf16 %v387, %v338
  %v525 = vpack.c.bf16 %v485, %v436
  %v526 = vpack.c.bf16 %v389, %v340
  %v527 = vpack.c.bf16 %v487, %v438
  %v528 = vpack.c.bf16 %v392, %v343
  %v529 = vpack.c.bf16 %v490, %v441
  %v530 = vpack.c.bf16 %v394, %v345
  %v531 = vpack.c.bf16 %v492, %v443
  %v532 = vpack.c.bf16 %v397, %v348
  %v533 = vpack.c.bf16 %v495, %v446
  %v534 = vpack.c.bf16 %v399, %v350
  %v535 = vpack.c.bf16 %v497, %v448
  %v536 = vpack.c.bf16 %v402, %v353
  %v537 = vpack.c.bf16 %v500, %v451
  %v538 = vpack.c.bf16 %v404, %v355
  %v539 = vpack.c.bf16 %v502, %v453
  %v540 = vpack.c.bf16 %v407, %v358
  %v541 = vpack.c.bf16 %v505, %v456
  %v542 = vpack.c.bf16 %v409, %v360
  %v543 = vpack.c.bf16 %v507, %v458
  %v544 = vpack.c.bf16 %v412, %v363
  %v545 = vpack.c.bf16 %v510, %v461
  %v546 = vpack.c.bf16 %v414, %v365
  %v547 = vpack.c.bf16 %v512, %v463
  %v548 = vpack.c.bf16 %v417, %v368
  %v549 = vpack.c.bf16 %v515, %v466
  %v550 = vpack.c.bf16 %v419, %v370
  %v551 = vpack.c.bf16 %v517, %v468
  %v552 = vpack.c.bf16 %v422, %v373
  %v553 = vpack.c.bf16 %v520, %v471
  %v554 = vpack.c.bf16 %v424, %v375
  %v555 = vpack.c.bf16 %v522, %v473
  %556 = vst [vmem:[#allocation3] sm:$0xff] %v524
  %557 = vst [vmem:[#allocation3 + $0x8] sm:$0xff] %v525
  %558 = vst [vmem:[#allocation3 + $0x10] sm:$0xff] %v526
  %559 = vst [vmem:[#allocation3 + $0x18] sm:$0xff] %v527
  %560 = vst [vmem:[#allocation3 + $0x20] sm:$0xff] %v528
  %561 = vst [vmem:[#allocation3 + $0x28] sm:$0xff] %v529
  %562 = vst [vmem:[#allocation3 + $0x30] sm:$0xff] %v530
  %563 = vst [vmem:[#allocation3 + $0x38] sm:$0xff] %v531
  %564 = vst [vmem:[#allocation3 + $0x40] sm:$0xff] %v532
  %565 = vst [vmem:[#allocation3 + $0x48] sm:$0xff] %v533
  %566 = vst [vmem:[#allocation3 + $0x50] sm:$0xff] %v534
  %567 = vst [vmem:[#allocation3 + $0x58] sm:$0xff] %v535
  %568 = vst [vmem:[#allocation3 + $0x60] sm:$0xff] %v536
  %569 = vst [vmem:[#allocation3 + $0x68] sm:$0xff] %v537
  %570 = vst [vmem:[#allocation3 + $0x70] sm:$0xff] %v538
  %571 = vst [vmem:[#allocation3 + $0x78] sm:$0xff] %v539
  %572 = vst [vmem:[#allocation3 + $0x80] sm:$0xff] %v540
  %573 = vst [vmem:[#allocation3 + $0x88] sm:$0xff] %v541
  %574 = vst [vmem:[#allocation3 + $0x90] sm:$0xff] %v542
  %575 = vst [vmem:[#allocation3 + $0x98] sm:$0xff] %v543
  %576 = vst [vmem:[#allocation3 + $0xa0] sm:$0xff] %v544
  %577 = vst [vmem:[#allocation3 + $0xa8] sm:$0xff] %v545
  %578 = vst [vmem:[#allocation3 + $0xb0] sm:$0xff] %v546
  %579 = vst [vmem:[#allocation3 + $0xb8] sm:$0xff] %v547
  %580 = vst [vmem:[#allocation3 + $0xc0] sm:$0xff] %v548
  %581 = vst [vmem:[#allocation3 + $0xc8] sm:$0xff] %v549
  %582 = vst [vmem:[#allocation3 + $0xd0] sm:$0xff] %v550
  %583 = vst [vmem:[#allocation3 + $0xd8] sm:$0xff] %v551
  %584 = vst [vmem:[#allocation3 + $0xe0] sm:$0xff] %v552
  %585 = vst [vmem:[#allocation3 + $0xe8] sm:$0xff] %v553
  %586 = vst [vmem:[#allocation3 + $0xf0] sm:$0xff] %v554
  %587 = vst [vmem:[#allocation3 + $0xf8] sm:$0xff] %v555
  %v588 = vld [vmem:[#allocation3] sm:$0xff]
  %v589 = vld [vmem:[#allocation3 + $0x8] sm:$0xff]
  %v590 = vld [vmem:[#allocation3 + $0x10] sm:$0xff]
  %v591 = vld [vmem:[#allocation3 + $0x18] sm:$0xff]
  %v592 = vunpack.c.l.bf16 %v588
  %v593 = vunpack.c.h.bf16 %v588
  %v594 = vunpack.c.l.bf16 %v589
  %v595 = vunpack.c.h.bf16 %v589
  %v596 = vunpack.c.l.bf16 %v590
  %v597 = vunpack.c.h.bf16 %v590
  %v598 = vunpack.c.l.bf16 %v591
  %v599 = vunpack.c.h.bf16 %v591
  %v632 = vunpack.c.l.b16 %v62
  %v633 = vunpack.c.h.b16 %v62
  %v634 = vunpack.c.l.b16 %v63
  %v635 = vunpack.c.h.b16 %v63
  %v636 = vunpack.c.l.b16 %v64
  %v637 = vunpack.c.h.b16 %v64
  %v638 = vunpack.c.l.b16 %v65
  %v639 = vunpack.c.h.b16 %v65
  %v640 = vunpack.c.l.b16 %v66
  %v641 = vunpack.c.h.b16 %v66
  %v642 = vunpack.c.l.b16 %v67
  %v643 = vunpack.c.h.b16 %v67
  %v644 = vunpack.c.l.b16 %v68
  %v645 = vunpack.c.h.b16 %v68
  %v646 = vunpack.c.l.b16 %v69
  %v647 = vunpack.c.h.b16 %v69
  %v648 = vunpack.c.l.b16 %v70
  %v649 = vunpack.c.h.b16 %v70
  %v650 = vunpack.c.l.b16 %v71
  %v651 = vunpack.c.h.b16 %v71
  %v652 = vunpack.c.l.b16 %v72
  %v653 = vunpack.c.h.b16 %v72
  %v654 = vunpack.c.l.b16 %v73
  %v655 = vunpack.c.h.b16 %v73
  %v656 = vunpack.c.l.b16 %v74
  %v657 = vunpack.c.h.b16 %v74
  %v658 = vunpack.c.l.b16 %v75
  %v659 = vunpack.c.h.b16 %v75
  %v660 = vunpack.c.l.b16 %v76
  %v661 = vunpack.c.h.b16 %v76
  %v662 = vunpack.c.l.b16 %v77
  %v663 = vunpack.c.h.b16 %v77
  %v664 = vunpack.c.l.b16 %v78
  %v665 = vunpack.c.h.b16 %v78
  %v666 = vunpack.c.l.b16 %v79
  %v667 = vunpack.c.h.b16 %v79
  %v668 = vunpack.c.l.b16 %v80
  %v669 = vunpack.c.h.b16 %v80
  %v670 = vunpack.c.l.b16 %v81
  %v671 = vunpack.c.h.b16 %v81
  %v672 = vunpack.c.l.b16 %v82
  %v673 = vunpack.c.h.b16 %v82
  %v674 = vunpack.c.l.b16 %v83
  %v675 = vunpack.c.h.b16 %v83
  %v676 = vunpack.c.l.b16 %v84
  %v677 = vunpack.c.h.b16 %v84
  %v678 = vunpack.c.l.b16 %v85
  %v679 = vunpack.c.h.b16 %v85
  %v680 = vunpack.c.l.b16 %v86
  %v681 = vunpack.c.h.b16 %v86
  %v682 = vunpack.c.l.b16 %v87
  %v683 = vunpack.c.h.b16 %v87
  %v684 = vunpack.c.l.b16 %v88
  %v685 = vunpack.c.h.b16 %v88
  %v686 = vunpack.c.l.b16 %v89
  %v687 = vunpack.c.h.b16 %v89
  %v688 = vunpack.c.l.b16 %v90
  %v689 = vunpack.c.h.b16 %v90
  %v690 = vunpack.c.l.b16 %v91
  %v691 = vunpack.c.h.b16 %v91
  %v692 = vunpack.c.l.b16 %v92
  %v693 = vunpack.c.h.b16 %v92
  %v694 = vunpack.c.l.b16 %v93
  %v695 = vunpack.c.h.b16 %v93
  %v696 = vpack.c.b16 %v636, %v632
  %v697 = vpack.c.b16 %v637, %v633
  %v698 = vpack.c.b16 %v638, %v634
  %v699 = vpack.c.b16 %v639, %v635
  %v700 = vpack.c.b16 %v644, %v640
  %v701 = vpack.c.b16 %v645, %v641
  %v702 = vpack.c.b16 %v646, %v642
  %v703 = vpack.c.b16 %v647, %v643
  %v704 = vpack.c.b16 %v652, %v648
  %v705 = vpack.c.b16 %v653, %v649
  %v706 = vpack.c.b16 %v654, %v650
  %v707 = vpack.c.b16 %v655, %v651
  %v708 = vpack.c.b16 %v660, %v656
  %v709 = vpack.c.b16 %v661, %v657
  %v710 = vpack.c.b16 %v662, %v658
  %v711 = vpack.c.b16 %v663, %v659
  %v712 = vpack.c.b16 %v668, %v664
  %v713 = vpack.c.b16 %v669, %v665
  %v714 = vpack.c.b16 %v670, %v666
  %v715 = vpack.c.b16 %v671, %v667
  %v716 = vpack.c.b16 %v676, %v672
  %v717 = vpack.c.b16 %v677, %v673
  %v718 = vpack.c.b16 %v678, %v674
  %v719 = vpack.c.b16 %v679, %v675
  %v720 = vpack.c.b16 %v684, %v680
  %v721 = vpack.c.b16 %v685, %v681
  %v722 = vpack.c.b16 %v686, %v682
  %v723 = vpack.c.b16 %v687, %v683
  %v724 = vpack.c.b16 %v692, %v688
  %v725 = vpack.c.b16 %v693, %v689
  %v726 = vpack.c.b16 %v694, %v690
  %v727 = vpack.c.b16 %v695, %v691
  %760 = vmatpush.bf16.msra.mxu0 %v724
  %761 = vmatpush.bf16.msra.mxu0 %v720
  %762 = vmatpush.bf16.msra.mxu0 %v716
  %763 = vmatpush.bf16.msra.mxu0 %v712
  %764 = vmatpush.bf16.msra.mxu0 %v708
  %765 = vmatpush.bf16.msra.mxu0 %v704
  %766 = vmatpush.bf16.msra.mxu0 %v700
  %767 = vmatpush.bf16.msra.mxu0 %v696
  %768 = vmatmul.bf16.gmra.mxu0 0
  %v769 = vpop.f32.mrf.mxu0
  %v770 = vadd.f32 0.0, %v769
  %v771 = vpop.f32.mrf.mxu0
  %v772 = vadd.f32 0.0, %v771
  %773 = vdwg.mxu0
  %774 = vmatpush.bf16.msra.mxu0 %v725
  %775 = vmatpush.bf16.msra.mxu0 %v721
  %776 = vmatpush.bf16.msra.mxu0 %v717
  %777 = vmatpush.bf16.msra.mxu0 %v713
  %778 = vmatpush.bf16.msra.mxu0 %v709
  %779 = vmatpush.bf16.msra.mxu0 %v705
  %780 = vmatpush.bf16.msra.mxu0 %v701
  %781 = vmatpush.bf16.msra.mxu0 %v697
  %782 = vmatmul.bf16.gmra.mxu0 0
  %v783 = vpop.f32.mrf.mxu0
  %v784 = vadd.f32 0.0, %v783
  %v785 = vpop.f32.mrf.mxu0
  %v786 = vadd.f32 0.0, %v785
  %787 = vdwg.mxu0
  %788 = vmatpush.bf16.msra.mxu0 %v726
  %789 = vmatpush.bf16.msra.mxu0 %v722
  %790 = vmatpush.bf16.msra.mxu0 %v718
  %791 = vmatpush.bf16.msra.mxu0 %v714
  %792 = vmatpush.bf16.msra.mxu0 %v710
  %793 = vmatpush.bf16.msra.mxu0 %v706
  %794 = vmatpush.bf16.msra.mxu0 %v702
  %795 = vmatpush.bf16.msra.mxu0 %v698
  %796 = vmatmul.bf16.gmra.mxu0 0
  %v797 = vpop.f32.mrf.mxu0
  %v798 = vadd.f32 0.0, %v797
  %v799 = vpop.f32.mrf.mxu0
  %v800 = vadd.f32 0.0, %v799
  %801 = vdwg.mxu0
  %802 = vmatpush.bf16.msra.mxu0 %v727
  %803 = vmatpush.bf16.msra.mxu0 %v723
  %804 = vmatpush.bf16.msra.mxu0 %v719
  %805 = vmatpush.bf16.msra.mxu0 %v715
  %806 = vmatpush.bf16.msra.mxu0 %v711
  %807 = vmatpush.bf16.msra.mxu0 %v707
  %808 = vmatpush.bf16.msra.mxu0 %v703
  %809 = vmatpush.bf16.msra.mxu0 %v699
  %810 = vmatmul.bf16.gmra.mxu0 0
  %v811 = vpop.f32.mrf.mxu0
  %v812 = vadd.f32 0.0, %v811
  %v813 = vpop.f32.mrf.mxu0
  %v814 = vadd.f32 0.0, %v813
  %815 = vdwg.mxu0
  %v816 = vadd.f32 %v592, %v770
  %v817 = vadd.f32 %v593, %v784
  %v818 = vadd.f32 %v594, %v798
  %v819 = vadd.f32 %v595, %v812
  %v820 = vadd.f32 %v596, %v772
  %v821 = vadd.f32 %v597, %v786
  %v822 = vadd.f32 %v598, %v800
  %v823 = vadd.f32 %v599, %v814
  %v824 = vtanh.pop %v816
  %v825 = vtanh.pop %v817
  %v826 = vtanh.pop %v818
  %v827 = vtanh.pop %v819
  %v828 = vtanh.pop %v820
  %v829 = vtanh.pop %v821
  %v830 = vtanh.pop %v822
  %v831 = vtanh.pop %v823
  %v832 = vmul.f32 %v824, 0.5
  %v833 = vmul.f32 %v825, 0.5
  %v834 = vmul.f32 %v826, 0.5
  %v835 = vmul.f32 %v828, 0.5
  %v836 = vmul.f32 %v829, 0.5
  %v837 = vmul.f32 %v830, 0.5
  %v838 = vadd.f32 %v832, 0.5
  %v839 = vadd.f32 %v833, 0.5
  %v840 = vadd.f32 %v834, 0.5
  %v841 = vadd.f32 %v835, 0.5
  %v842 = vadd.f32 %v836, 0.5
  %v843 = vadd.f32 %v837, 0.5
  %v844 = vmul.f32 %v839, 0.0
  %v845 = vmul.f32 %v842, 0.0
  %v846 = vmul.f32 %v838, %v827
  %v847 = vmul.f32 %v841, %v831
  %v848 = vadd.f32 %v844, %v846
  %v849 = vadd.f32 %v845, %v847
  %v850 = vtanh.pop %v848
  %v851 = vtanh.pop %v849
  %v852 = vmul.f32 %v840, %v850
  %v853 = vmul.f32 %v843, %v851
  %v854 = vpack.c.bf16 %v852, %v852
  %v855 = vpack.c.bf16 %v853, %v853
  %856 = vst [vmem:[#allocation2] sm:$0xf] %v854
  %857 = vst [vmem:[#allocation2 + $0x4] sm:$0xf] %v855
  %s858 = scalar_lea.vmem [#allocation3], 32
  %v859 = vld [vmem:[%s858] sm:$0xff]
  %v860 = vld [vmem:[%s858 + $0x8] sm:$0xff]
  %v861 = vld [vmem:[%s858 + $0x10] sm:$0xff]
  %v862 = vld [vmem:[%s858 + $0x18] sm:$0xff]
  %v863 = vunpack.c.l.bf16 %v859
  %v864 = vunpack.c.h.bf16 %v859
  %v865 = vunpack.c.l.bf16 %v860
  %v866 = vunpack.c.h.bf16 %v860
  %v867 = vunpack.c.l.bf16 %v861
  %v868 = vunpack.c.h.bf16 %v861
  %v869 = vunpack.c.l.bf16 %v862
  %v870 = vunpack.c.h.bf16 %v862
  %v873 = vunpack.c.l.b16 %v854
  %v874 = vunpack.c.l.b16 %v855
  %v875 = vpack.c.b16 %v874, %v873
  %877 = vmatpush.bf16.msra.mxu0 %v724
  %878 = vmatpush.bf16.msra.mxu0 %v720
  %879 = vmatpush.bf16.msra.mxu0 %v716
  %880 = vmatpush.bf16.msra.mxu0 %v712
  %881 = vmatpush.bf16.msra.mxu0 %v708
  %882 = vmatpush.bf16.msra.mxu0 %v704
  %883 = vmatpush.bf16.msra.mxu0 %v700
  %884 = vmatpush.bf16.msra.mxu0 %v696
  %885 = vmatmul.bf16.gmra.mxu0 %v875
  %v886 = vpop.f32.mrf.mxu0
  %v887 = vadd.f32 0.0, %v886
  %v888 = vpop.f32.mrf.mxu0
  %v889 = vadd.f32 0.0, %v888
  %890 = vdwg.mxu0
  %891 = vmatpush.bf16.msra.mxu0 %v725
  %892 = vmatpush.bf16.msra.mxu0 %v721
  %893 = vmatpush.bf16.msra.mxu0 %v717
  %894 = vmatpush.bf16.msra.mxu0 %v713
  %895 = vmatpush.bf16.msra.mxu0 %v709
  %896 = vmatpush.bf16.msra.mxu0 %v705
  %897 = vmatpush.bf16.msra.mxu0 %v701
  %898 = vmatpush.bf16.msra.mxu0 %v697
  %899 = vmatmul.bf16.gmra.mxu0 %v875
  %v900 = vpop.f32.mrf.mxu0
  %v901 = vadd.f32 0.0, %v900
  %v902 = vpop.f32.mrf.mxu0
  %v903 = vadd.f32 0.0, %v902
  %904 = vdwg.mxu0
  %905 = vmatpush.bf16.msra.mxu0 %v726
  %906 = vmatpush.bf16.msra.mxu0 %v722
  %907 = vmatpush.bf16.msra.mxu0 %v718
  %908 = vmatpush.bf16.msra.mxu0 %v714
  %909 = vmatpush.bf16.msra.mxu0 %v710
  %910 = vmatpush.bf16.msra.mxu0 %v706
  %911 = vmatpush.bf16.msra.mxu0 %v702
  %912 = vmatpush.bf16.msra.mxu0 %v698
  %913 = vmatmul.bf16.gmra.mxu0 %v875
  %v914 = vpop.f32.mrf.mxu0
  %v915 = vadd.f32 0.0, %v914
  %v916 = vpop.f32.mrf.mxu0
  %v917 = vadd.f32 0.0, %v916
  %918 = vdwg.mxu0
  %919 = vmatpush.bf16.msra.mxu0 %v727
  %920 = vmatpush.bf16.msra.mxu0 %v723
  %921 = vmatpush.bf16.msra.mxu0 %v719
  %922 = vmatpush.bf16.msra.mxu0 %v715
  %923 = vmatpush.bf16.msra.mxu0 %v711
  %924 = vmatpush.bf16.msra.mxu0 %v707
  %925 = vmatpush.bf16.msra.mxu0 %v703
  %926 = vmatpush.bf16.msra.mxu0 %v699
  %927 = vmatmul.bf16.gmra.mxu0 %v875
  %v928 = vpop.f32.mrf.mxu0
  %v929 = vadd.f32 0.0, %v928
  %v930 = vpop.f32.mrf.mxu0
  %v931 = vadd.f32 0.0, %v930
  %932 = vdwg.mxu0
  %v933 = vadd.f32 %v863, %v887
  %v934 = vadd.f32 %v864, %v901
  %v935 = vadd.f32 %v865, %v915
  %v936 = vadd.f32 %v866, %v929
  %v937 = vadd.f32 %v867, %v889
  %v938 = vadd.f32 %v868, %v903
  %v939 = vadd.f32 %v869, %v917
  %v940 = vadd.f32 %v870, %v931
  %v941 = vtanh.pop %v933
  %v942 = vtanh.pop %v934
  %v943 = vtanh.pop %v935
  %v944 = vtanh.pop %v936
  %v945 = vtanh.pop %v937
  %v946 = vtanh.pop %v938
  %v947 = vtanh.pop %v939
  %v948 = vtanh.pop %v940
  %v949 = vmul.f32 %v941, 0.5
  %v950 = vmul.f32 %v942, 0.5
  %v951 = vmul.f32 %v943, 0.5
  %v952 = vmul.f32 %v945, 0.5
  %v953 = vmul.f32 %v946, 0.5
  %v954 = vmul.f32 %v947, 0.5
  %v955 = vadd.f32 %v949, 0.5
  %v956 = vadd.f32 %v950, 0.5
  %v957 = vadd.f32 %v951, 0.5
  %v958 = vadd.f32 %v952, 0.5
  %v959 = vadd.f32 %v953, 0.5
  %v960 = vadd.f32 %v954, 0.5
  %v961 = vmul.f32 %v956, %v848
  %v962 = vmul.f32 %v959, %v849
  %v963 = vmul.f32 %v955, %v944
  %v964 = vmul.f32 %v958, %v948
  %v965 = vadd.f32 %v961, %v963
  %v966 = vadd.f32 %v962, %v964
  %v967 = vtanh.pop %v965
  %v968 = vtanh.pop %v966
  %v969 = vmul.f32 %v957, %v967
  %v970 = vmul.f32 %v960, %v968
  %v971 = vpack.c.bf16 %v969, %v969
  %v972 = vpack.c.bf16 %v970, %v970
  %s973 = scalar_lea.vmem [#allocation2], 8
  %974 = vst [vmem:[%s973] sm:$0xf] %v971
  %975 = vst [vmem:[%s973 + $0x4] sm:$0xf] %v972
  %s976 = scalar_lea.vmem [#allocation3], 64
  %v977 = vld [vmem:[%s976] sm:$0xff]
  %v978 = vld [vmem:[%s976 + $0x8] sm:$0xff]
  %v979 = vld [vmem:[%s976 + $0x10] sm:$0xff]
  %v980 = vld [vmem:[%s976 + $0x18] sm:$0xff]
  %v981 = vunpack.c.l.bf16 %v977
  %v982 = vunpack.c.h.bf16 %v977
  %v983 = vunpack.c.l.bf16 %v978
  %v984 = vunpack.c.h.bf16 %v978
  %v985 = vunpack.c.l.bf16 %v979
  %v986 = vunpack.c.h.bf16 %v979
  %v987 = vunpack.c.l.bf16 %v980
  %v988 = vunpack.c.h.bf16 %v980
  %v991 = vunpack.c.l.b16 %v971
  %v992 = vunpack.c.l.b16 %v972
  %v993 = vpack.c.b16 %v992, %v991
  %995 = vmatpush.bf16.msra.mxu0 %v724
  %996 = vmatpush.bf16.msra.mxu0 %v720
  %997 = vmatpush.bf16.msra.mxu0 %v716
  %998 = vmatpush.bf16.msra.mxu0 %v712
  %999 = vmatpush.bf16.msra.mxu0 %v708
  %1000 = vmatpush.bf16.msra.mxu0 %v704
  %1001 = vmatpush.bf16.msra.mxu0 %v700
  %1002 = vmatpush.bf16.msra.mxu0 %v696
  %1003 = vmatmul.bf16.gmra.mxu0 %v993
  %v1004 = vpop.f32.mrf.mxu0
  %v1005 = vadd.f32 0.0, %v1004
  %v1006 = vpop.f32.mrf.mxu0
  %v1007 = vadd.f32 0.0, %v1006
  %1008 = vdwg.mxu0
  %1009 = vmatpush.bf16.msra.mxu0 %v725
  %1010 = vmatpush.bf16.msra.mxu0 %v721
  %1011 = vmatpush.bf16.msra.mxu0 %v717
  %1012 = vmatpush.bf16.msra.mxu0 %v713
  %1013 = vmatpush.bf16.msra.mxu0 %v709
  %1014 = vmatpush.bf16.msra.mxu0 %v705
  %1015 = vmatpush.bf16.msra.mxu0 %v701
  %1016 = vmatpush.bf16.msra.mxu0 %v697
  %1017 = vmatmul.bf16.gmra.mxu0 %v993
  %v1018 = vpop.f32.mrf.mxu0
  %v1019 = vadd.f32 0.0, %v1018
  %v1020 = vpop.f32.mrf.mxu0
  %v1021 = vadd.f32 0.0, %v1020
  %1022 = vdwg.mxu0
  %1023 = vmatpush.bf16.msra.mxu0 %v726
  %1024 = vmatpush.bf16.msra.mxu0 %v722
  %1025 = vmatpush.bf16.msra.mxu0 %v718
  %1026 = vmatpush.bf16.msra.mxu0 %v714
  %1027 = vmatpush.bf16.msra.mxu0 %v710
  %1028 = vmatpush.bf16.msra.mxu0 %v706
  %1029 = vmatpush.bf16.msra.mxu0 %v702
  %1030 = vmatpush.bf16.msra.mxu0 %v698
  %1031 = vmatmul.bf16.gmra.mxu0 %v993
  %v1032 = vpop.f32.mrf.mxu0
  %v1033 = vadd.f32 0.0, %v1032
  %v1034 = vpop.f32.mrf.mxu0
  %v1035 = vadd.f32 0.0, %v1034
  %1036 = vdwg.mxu0
  %1037 = vmatpush.bf16.msra.mxu0 %v727
  %1038 = vmatpush.bf16.msra.mxu0 %v723
  %1039 = vmatpush.bf16.msra.mxu0 %v719
  %1040 = vmatpush.bf16.msra.mxu0 %v715
  %1041 = vmatpush.bf16.msra.mxu0 %v711
  %1042 = vmatpush.bf16.msra.mxu0 %v707
  %1043 = vmatpush.bf16.msra.mxu0 %v703
  %1044 = vmatpush.bf16.msra.mxu0 %v699
  %1045 = vmatmul.bf16.gmra.mxu0 %v993
  %v1046 = vpop.f32.mrf.mxu0
  %v1047 = vadd.f32 0.0, %v1046
  %v1048 = vpop.f32.mrf.mxu0
  %v1049 = vadd.f32 0.0, %v1048
  %1050 = vdwg.mxu0
  %v1051 = vadd.f32 %v981, %v1005
  %v1052 = vadd.f32 %v982, %v1019
  %v1053 = vadd.f32 %v983, %v1033
  %v1054 = vadd.f32 %v984, %v1047
  %v1055 = vadd.f32 %v985, %v1007
  %v1056 = vadd.f32 %v986, %v1021
  %v1057 = vadd.f32 %v987, %v1035
  %v1058 = vadd.f32 %v988, %v1049
  %v1059 = vtanh.pop %v1051
  %v1060 = vtanh.pop %v1052
  %v1061 = vtanh.pop %v1053
  %v1062 = vtanh.pop %v1054
  %v1063 = vtanh.pop %v1055
  %v1064 = vtanh.pop %v1056
  %v1065 = vtanh.pop %v1057
  %v1066 = vtanh.pop %v1058
  %v1067 = vmul.f32 %v1059, 0.5
  %v1068 = vmul.f32 %v1060, 0.5
  %v1069 = vmul.f32 %v1061, 0.5
  %v1070 = vmul.f32 %v1063, 0.5
  %v1071 = vmul.f32 %v1064, 0.5
  %v1072 = vmul.f32 %v1065, 0.5
  %v1073 = vadd.f32 %v1067, 0.5
  %v1074 = vadd.f32 %v1068, 0.5
  %v1075 = vadd.f32 %v1069, 0.5
  %v1076 = vadd.f32 %v1070, 0.5
  %v1077 = vadd.f32 %v1071, 0.5
  %v1078 = vadd.f32 %v1072, 0.5
  %v1079 = vmul.f32 %v1074, %v965
  %v1080 = vmul.f32 %v1077, %v966
  %v1081 = vmul.f32 %v1073, %v1062
  %v1082 = vmul.f32 %v1076, %v1066
  %v1083 = vadd.f32 %v1079, %v1081
  %v1084 = vadd.f32 %v1080, %v1082
  %v1085 = vtanh.pop %v1083
  %v1086 = vtanh.pop %v1084
  %v1087 = vmul.f32 %v1075, %v1085
  %v1088 = vmul.f32 %v1078, %v1086
  %v1089 = vpack.c.bf16 %v1087, %v1087
  %v1090 = vpack.c.bf16 %v1088, %v1088
  %s1091 = scalar_lea.vmem [#allocation2], 16
  %1092 = vst [vmem:[%s1091] sm:$0xf] %v1089
  %1093 = vst [vmem:[%s1091 + $0x4] sm:$0xf] %v1090
  %s1094 = scalar_lea.vmem [#allocation3], 96
  %v1095 = vld [vmem:[%s1094] sm:$0xff]
  %v1096 = vld [vmem:[%s1094 + $0x8] sm:$0xff]
  %v1097 = vld [vmem:[%s1094 + $0x10] sm:$0xff]
  %v1098 = vld [vmem:[%s1094 + $0x18] sm:$0xff]
  %v1099 = vunpack.c.l.bf16 %v1095
  %v1100 = vunpack.c.h.bf16 %v1095
  %v1101 = vunpack.c.l.bf16 %v1096
  %v1102 = vunpack.c.h.bf16 %v1096
  %v1103 = vunpack.c.l.bf16 %v1097
  %v1104 = vunpack.c.h.bf16 %v1097
  %v1105 = vunpack.c.l.bf16 %v1098
  %v1106 = vunpack.c.h.bf16 %v1098
  %v1109 = vunpack.c.l.b16 %v1089
  %v1110 = vunpack.c.l.b16 %v1090
  %v1111 = vpack.c.b16 %v1110, %v1109
  %1113 = vmatpush.bf16.msra.mxu0 %v724
  %1114 = vmatpush.bf16.msra.mxu0 %v720
  %1115 = vmatpush.bf16.msra.mxu0 %v716
  %1116 = vmatpush.bf16.msra.mxu0 %v712
  %1117 = vmatpush.bf16.msra.mxu0 %v708
  %1118 = vmatpush.bf16.msra.mxu0 %v704
  %1119 = vmatpush.bf16.msra.mxu0 %v700
  %1120 = vmatpush.bf16.msra.mxu0 %v696
  %1121 = vmatmul.bf16.gmra.mxu0 %v1111
  %v1122 = vpop.f32.mrf.mxu0
  %v1123 = vadd.f32 0.0, %v1122
  %v1124 = vpop.f32.mrf.mxu0
  %v1125 = vadd.f32 0.0, %v1124
  %1126 = vdwg.mxu0
  %1127 = vmatpush.bf16.msra.mxu0 %v725
  %1128 = vmatpush.bf16.msra.mxu0 %v721
  %1129 = vmatpush.bf16.msra.mxu0 %v717
  %1130 = vmatpush.bf16.msra.mxu0 %v713
  %1131 = vmatpush.bf16.msra.mxu0 %v709
  %1132 = vmatpush.bf16.msra.mxu0 %v705
  %1133 = vmatpush.bf16.msra.mxu0 %v701
  %1134 = vmatpush.bf16.msra.mxu0 %v697
  %1135 = vmatmul.bf16.gmra.mxu0 %v1111
  %v1136 = vpop.f32.mrf.mxu0
  %v1137 = vadd.f32 0.0, %v1136
  %v1138 = vpop.f32.mrf.mxu0
  %v1139 = vadd.f32 0.0, %v1138
  %1140 = vdwg.mxu0
  %1141 = vmatpush.bf16.msra.mxu0 %v726
  %1142 = vmatpush.bf16.msra.mxu0 %v722
  %1143 = vmatpush.bf16.msra.mxu0 %v718
  %1144 = vmatpush.bf16.msra.mxu0 %v714
  %1145 = vmatpush.bf16.msra.mxu0 %v710
  %1146 = vmatpush.bf16.msra.mxu0 %v706
  %1147 = vmatpush.bf16.msra.mxu0 %v702
  %1148 = vmatpush.bf16.msra.mxu0 %v698
  %1149 = vmatmul.bf16.gmra.mxu0 %v1111
  %v1150 = vpop.f32.mrf.mxu0
  %v1151 = vadd.f32 0.0, %v1150
  %v1152 = vpop.f32.mrf.mxu0
  %v1153 = vadd.f32 0.0, %v1152
  %1154 = vdwg.mxu0
  %1155 = vmatpush.bf16.msra.mxu0 %v727
  %1156 = vmatpush.bf16.msra.mxu0 %v723
  %1157 = vmatpush.bf16.msra.mxu0 %v719
  %1158 = vmatpush.bf16.msra.mxu0 %v715
  %1159 = vmatpush.bf16.msra.mxu0 %v711
  %1160 = vmatpush.bf16.msra.mxu0 %v707
  %1161 = vmatpush.bf16.msra.mxu0 %v703
  %1162 = vmatpush.bf16.msra.mxu0 %v699
  %1163 = vmatmul.bf16.gmra.mxu0 %v1111
  %v1164 = vpop.f32.mrf.mxu0
  %v1165 = vadd.f32 0.0, %v1164
  %v1166 = vpop.f32.mrf.mxu0
  %v1167 = vadd.f32 0.0, %v1166
  %1168 = vdwg.mxu0
  %v1169 = vadd.f32 %v1099, %v1123
  %v1170 = vadd.f32 %v1100, %v1137
  %v1171 = vadd.f32 %v1101, %v1151
  %v1172 = vadd.f32 %v1102, %v1165
  %v1173 = vadd.f32 %v1103, %v1125
  %v1174 = vadd.f32 %v1104, %v1139
  %v1175 = vadd.f32 %v1105, %v1153
  %v1176 = vadd.f32 %v1106, %v1167
  %v1177 = vtanh.pop %v1169
  %v1178 = vtanh.pop %v1170
  %v1179 = vtanh.pop %v1171
  %v1180 = vtanh.pop %v1172
  %v1181 = vtanh.pop %v1173
  %v1182 = vtanh.pop %v1174
  %v1183 = vtanh.pop %v1175
  %v1184 = vtanh.pop %v1176
  %v1185 = vmul.f32 %v1177, 0.5
  %v1186 = vmul.f32 %v1178, 0.5
  %v1187 = vmul.f32 %v1179, 0.5
  %v1188 = vmul.f32 %v1181, 0.5
  %v1189 = vmul.f32 %v1182, 0.5
  %v1190 = vmul.f32 %v1183, 0.5
  %v1191 = vadd.f32 %v1185, 0.5
  %v1192 = vadd.f32 %v1186, 0.5
  %v1193 = vadd.f32 %v1187, 0.5
  %v1194 = vadd.f32 %v1188, 0.5
  %v1195 = vadd.f32 %v1189, 0.5
  %v1196 = vadd.f32 %v1190, 0.5
  %v1197 = vmul.f32 %v1192, %v1083
  %v1198 = vmul.f32 %v1195, %v1084
  %v1199 = vmul.f32 %v1191, %v1180
  %v1200 = vmul.f32 %v1194, %v1184
  %v1201 = vadd.f32 %v1197, %v1199
  %v1202 = vadd.f32 %v1198, %v1200
  %v1203 = vtanh.pop %v1201
  %v1204 = vtanh.pop %v1202
  %v1205 = vmul.f32 %v1193, %v1203
  %v1206 = vmul.f32 %v1196, %v1204
  %v1207 = vpack.c.bf16 %v1205, %v1205
  %v1208 = vpack.c.bf16 %v1206, %v1206
  %s1209 = scalar_lea.vmem [#allocation2], 24
  %1210 = vst [vmem:[%s1209] sm:$0xf] %v1207
  %1211 = vst [vmem:[%s1209 + $0x4] sm:$0xf] %v1208
  %s1212 = scalar_lea.vmem [#allocation3], 128
  %v1213 = vld [vmem:[%s1212] sm:$0xff]
  %v1214 = vld [vmem:[%s1212 + $0x8] sm:$0xff]
  %v1215 = vld [vmem:[%s1212 + $0x10] sm:$0xff]
  %v1216 = vld [vmem:[%s1212 + $0x18] sm:$0xff]
  %v1217 = vunpack.c.l.bf16 %v1213
  %v1218 = vunpack.c.h.bf16 %v1213
  %v1219 = vunpack.c.l.bf16 %v1214
  %v1220 = vunpack.c.h.bf16 %v1214
  %v1221 = vunpack.c.l.bf16 %v1215
  %v1222 = vunpack.c.h.bf16 %v1215
  %v1223 = vunpack.c.l.bf16 %v1216
  %v1224 = vunpack.c.h.bf16 %v1216
  %v1227 = vunpack.c.l.b16 %v1207
  %v1228 = vunpack.c.l.b16 %v1208
  %v1229 = vpack.c.b16 %v1228, %v1227
  %1231 = vmatpush.bf16.msra.mxu0 %v724
  %1232 = vmatpush.bf16.msra.mxu0 %v720
  %1233 = vmatpush.bf16.msra.mxu0 %v716
  %1234 = vmatpush.bf16.msra.mxu0 %v712
  %1235 = vmatpush.bf16.msra.mxu0 %v708
  %1236 = vmatpush.bf16.msra.mxu0 %v704
  %1237 = vmatpush.bf16.msra.mxu0 %v700
  %1238 = vmatpush.bf16.msra.mxu0 %v696
  %1239 = vmatmul.bf16.gmra.mxu0 %v1229
  %v1240 = vpop.f32.mrf.mxu0
  %v1241 = vadd.f32 0.0, %v1240
  %v1242 = vpop.f32.mrf.mxu0
  %v1243 = vadd.f32 0.0, %v1242
  %1244 = vdwg.mxu0
  %1245 = vmatpush.bf16.msra.mxu0 %v725
  %1246 = vmatpush.bf16.msra.mxu0 %v721
  %1247 = vmatpush.bf16.msra.mxu0 %v717
  %1248 = vmatpush.bf16.msra.mxu0 %v713
  %1249 = vmatpush.bf16.msra.mxu0 %v709
  %1250 = vmatpush.bf16.msra.mxu0 %v705
  %1251 = vmatpush.bf16.msra.mxu0 %v701
  %1252 = vmatpush.bf16.msra.mxu0 %v697
  %1253 = vmatmul.bf16.gmra.mxu0 %v1229
  %v1254 = vpop.f32.mrf.mxu0
  %v1255 = vadd.f32 0.0, %v1254
  %v1256 = vpop.f32.mrf.mxu0
  %v1257 = vadd.f32 0.0, %v1256
  %1258 = vdwg.mxu0
  %1259 = vmatpush.bf16.msra.mxu0 %v726
  %1260 = vmatpush.bf16.msra.mxu0 %v722
  %1261 = vmatpush.bf16.msra.mxu0 %v718
  %1262 = vmatpush.bf16.msra.mxu0 %v714
  %1263 = vmatpush.bf16.msra.mxu0 %v710
  %1264 = vmatpush.bf16.msra.mxu0 %v706
  %1265 = vmatpush.bf16.msra.mxu0 %v702
  %1266 = vmatpush.bf16.msra.mxu0 %v698
  %1267 = vmatmul.bf16.gmra.mxu0 %v1229
  %v1268 = vpop.f32.mrf.mxu0
  %v1269 = vadd.f32 0.0, %v1268
  %v1270 = vpop.f32.mrf.mxu0
  %v1271 = vadd.f32 0.0, %v1270
  %1272 = vdwg.mxu0
  %1273 = vmatpush.bf16.msra.mxu0 %v727
  %1274 = vmatpush.bf16.msra.mxu0 %v723
  %1275 = vmatpush.bf16.msra.mxu0 %v719
  %1276 = vmatpush.bf16.msra.mxu0 %v715
  %1277 = vmatpush.bf16.msra.mxu0 %v711
  %1278 = vmatpush.bf16.msra.mxu0 %v707
  %1279 = vmatpush.bf16.msra.mxu0 %v703
  %1280 = vmatpush.bf16.msra.mxu0 %v699
  %1281 = vmatmul.bf16.gmra.mxu0 %v1229
  %v1282 = vpop.f32.mrf.mxu0
  %v1283 = vadd.f32 0.0, %v1282
  %v1284 = vpop.f32.mrf.mxu0
  %v1285 = vadd.f32 0.0, %v1284
  %1286 = vdwg.mxu0
  %v1287 = vadd.f32 %v1217, %v1241
  %v1288 = vadd.f32 %v1218, %v1255
  %v1289 = vadd.f32 %v1219, %v1269
  %v1290 = vadd.f32 %v1220, %v1283
  %v1291 = vadd.f32 %v1221, %v1243
  %v1292 = vadd.f32 %v1222, %v1257
  %v1293 = vadd.f32 %v1223, %v1271
  %v1294 = vadd.f32 %v1224, %v1285
  %v1295 = vtanh.pop %v1287
  %v1296 = vtanh.pop %v1288
  %v1297 = vtanh.pop %v1289
  %v1298 = vtanh.pop %v1290
  %v1299 = vtanh.pop %v1291
  %v1300 = vtanh.pop %v1292
  %v1301 = vtanh.pop %v1293
  %v1302 = vtanh.pop %v1294
  %v1303 = vmul.f32 %v1295, 0.5
  %v1304 = vmul.f32 %v1296, 0.5
  %v1305 = vmul.f32 %v1297, 0.5
  %v1306 = vmul.f32 %v1299, 0.5
  %v1307 = vmul.f32 %v1300, 0.5
  %v1308 = vmul.f32 %v1301, 0.5
  %v1309 = vadd.f32 %v1303, 0.5
  %v1310 = vadd.f32 %v1304, 0.5
  %v1311 = vadd.f32 %v1305, 0.5
  %v1312 = vadd.f32 %v1306, 0.5
  %v1313 = vadd.f32 %v1307, 0.5
  %v1314 = vadd.f32 %v1308, 0.5
  %v1315 = vmul.f32 %v1310, %v1201
  %v1316 = vmul.f32 %v1313, %v1202
  %v1317 = vmul.f32 %v1309, %v1298
  %v1318 = vmul.f32 %v1312, %v1302
  %v1319 = vadd.f32 %v1315, %v1317
  %v1320 = vadd.f32 %v1316, %v1318
  %v1321 = vtanh.pop %v1319
  %v1322 = vtanh.pop %v1320
  %v1323 = vmul.f32 %v1311, %v1321
  %v1324 = vmul.f32 %v1314, %v1322
  %v1325 = vpack.c.bf16 %v1323, %v1323
  %v1326 = vpack.c.bf16 %v1324, %v1324
  %s1327 = scalar_lea.vmem [#allocation2], 32
  %1328 = vst [vmem:[%s1327] sm:$0xf] %v1325
  %1329 = vst [vmem:[%s1327 + $0x4] sm:$0xf] %v1326
  %s1330 = scalar_lea.vmem [#allocation3], 160
  %v1331 = vld [vmem:[%s1330] sm:$0xff]
  %v1332 = vld [vmem:[%s1330 + $0x8] sm:$0xff]
  %v1333 = vld [vmem:[%s1330 + $0x10] sm:$0xff]
  %v1334 = vld [vmem:[%s1330 + $0x18] sm:$0xff]
  %v1335 = vunpack.c.l.bf16 %v1331
  %v1336 = vunpack.c.h.bf16 %v1331
  %v1337 = vunpack.c.l.bf16 %v1332
  %v1338 = vunpack.c.h.bf16 %v1332
  %v1339 = vunpack.c.l.bf16 %v1333
  %v1340 = vunpack.c.h.bf16 %v1333
  %v1341 = vunpack.c.l.bf16 %v1334
  %v1342 = vunpack.c.h.bf16 %v1334
  %v1345 = vunpack.c.l.b16 %v1325
  %v1346 = vunpack.c.l.b16 %v1326
  %v1347 = vpack.c.b16 %v1346, %v1345
  %1349 = vmatpush.bf16.msra.mxu0 %v724
  %1350 = vmatpush.bf16.msra.mxu0 %v720
  %1351 = vmatpush.bf16.msra.mxu0 %v716
  %1352 = vmatpush.bf16.msra.mxu0 %v712
  %1353 = vmatpush.bf16.msra.mxu0 %v708
  %1354 = vmatpush.bf16.msra.mxu0 %v704
  %1355 = vmatpush.bf16.msra.mxu0 %v700
  %1356 = vmatpush.bf16.msra.mxu0 %v696
  %1357 = vmatmul.bf16.gmra.mxu0 %v1347
  %v1358 = vpop.f32.mrf.mxu0
  %v1359 = vadd.f32 0.0, %v1358
  %v1360 = vpop.f32.mrf.mxu0
  %v1361 = vadd.f32 0.0, %v1360
  %1362 = vdwg.mxu0
  %1363 = vmatpush.bf16.msra.mxu0 %v725
  %1364 = vmatpush.bf16.msra.mxu0 %v721
  %1365 = vmatpush.bf16.msra.mxu0 %v717
  %1366 = vmatpush.bf16.msra.mxu0 %v713
  %1367 = vmatpush.bf16.msra.mxu0 %v709
  %1368 = vmatpush.bf16.msra.mxu0 %v705
  %1369 = vmatpush.bf16.msra.mxu0 %v701
  %1370 = vmatpush.bf16.msra.mxu0 %v697
  %1371 = vmatmul.bf16.gmra.mxu0 %v1347
  %v1372 = vpop.f32.mrf.mxu0
  %v1373 = vadd.f32 0.0, %v1372
  %v1374 = vpop.f32.mrf.mxu0
  %v1375 = vadd.f32 0.0, %v1374
  %1376 = vdwg.mxu0
  %1377 = vmatpush.bf16.msra.mxu0 %v726
  %1378 = vmatpush.bf16.msra.mxu0 %v722
  %1379 = vmatpush.bf16.msra.mxu0 %v718
  %1380 = vmatpush.bf16.msra.mxu0 %v714
  %1381 = vmatpush.bf16.msra.mxu0 %v710
  %1382 = vmatpush.bf16.msra.mxu0 %v706
  %1383 = vmatpush.bf16.msra.mxu0 %v702
  %1384 = vmatpush.bf16.msra.mxu0 %v698
  %1385 = vmatmul.bf16.gmra.mxu0 %v1347
  %v1386 = vpop.f32.mrf.mxu0
  %v1387 = vadd.f32 0.0, %v1386
  %v1388 = vpop.f32.mrf.mxu0
  %v1389 = vadd.f32 0.0, %v1388
  %1390 = vdwg.mxu0
  %1391 = vmatpush.bf16.msra.mxu0 %v727
  %1392 = vmatpush.bf16.msra.mxu0 %v723
  %1393 = vmatpush.bf16.msra.mxu0 %v719
  %1394 = vmatpush.bf16.msra.mxu0 %v715
  %1395 = vmatpush.bf16.msra.mxu0 %v711
  %1396 = vmatpush.bf16.msra.mxu0 %v707
  %1397 = vmatpush.bf16.msra.mxu0 %v703
  %1398 = vmatpush.bf16.msra.mxu0 %v699
  %1399 = vmatmul.bf16.gmra.mxu0 %v1347
  %v1400 = vpop.f32.mrf.mxu0
  %v1401 = vadd.f32 0.0, %v1400
  %v1402 = vpop.f32.mrf.mxu0
  %v1403 = vadd.f32 0.0, %v1402
  %1404 = vdwg.mxu0
  %v1405 = vadd.f32 %v1335, %v1359
  %v1406 = vadd.f32 %v1336, %v1373
  %v1407 = vadd.f32 %v1337, %v1387
  %v1408 = vadd.f32 %v1338, %v1401
  %v1409 = vadd.f32 %v1339, %v1361
  %v1410 = vadd.f32 %v1340, %v1375
  %v1411 = vadd.f32 %v1341, %v1389
  %v1412 = vadd.f32 %v1342, %v1403
  %v1413 = vtanh.pop %v1405
  %v1414 = vtanh.pop %v1406
  %v1415 = vtanh.pop %v1407
  %v1416 = vtanh.pop %v1408
  %v1417 = vtanh.pop %v1409
  %v1418 = vtanh.pop %v1410
  %v1419 = vtanh.pop %v1411
  %v1420 = vtanh.pop %v1412
  %v1421 = vmul.f32 %v1413, 0.5
  %v1422 = vmul.f32 %v1414, 0.5
  %v1423 = vmul.f32 %v1415, 0.5
  %v1424 = vmul.f32 %v1417, 0.5
  %v1425 = vmul.f32 %v1418, 0.5
  %v1426 = vmul.f32 %v1419, 0.5
  %v1427 = vadd.f32 %v1421, 0.5
  %v1428 = vadd.f32 %v1422, 0.5
  %v1429 = vadd.f32 %v1423, 0.5
  %v1430 = vadd.f32 %v1424, 0.5
  %v1431 = vadd.f32 %v1425, 0.5
  %v1432 = vadd.f32 %v1426, 0.5
  %v1433 = vmul.f32 %v1428, %v1319
  %v1434 = vmul.f32 %v1431, %v1320
  %v1435 = vmul.f32 %v1427, %v1416
  %v1436 = vmul.f32 %v1430, %v1420
  %v1437 = vadd.f32 %v1433, %v1435
  %v1438 = vadd.f32 %v1434, %v1436
  %v1439 = vtanh.pop %v1437
  %v1440 = vtanh.pop %v1438
  %v1441 = vmul.f32 %v1429, %v1439
  %v1442 = vmul.f32 %v1432, %v1440
  %v1443 = vpack.c.bf16 %v1441, %v1441
  %v1444 = vpack.c.bf16 %v1442, %v1442
  %s1445 = scalar_lea.vmem [#allocation2], 40
  %1446 = vst [vmem:[%s1445] sm:$0xf] %v1443
  %1447 = vst [vmem:[%s1445 + $0x4] sm:$0xf] %v1444
  %s1448 = scalar_lea.vmem [#allocation3], 192
  %v1449 = vld [vmem:[%s1448] sm:$0xff]
  %v1450 = vld [vmem:[%s1448 + $0x8] sm:$0xff]
  %v1451 = vld [vmem:[%s1448 + $0x10] sm:$0xff]
  %v1452 = vld [vmem:[%s1448 + $0x18] sm:$0xff]
  %v1453 = vunpack.c.l.bf16 %v1449
  %v1454 = vunpack.c.h.bf16 %v1449
  %v1455 = vunpack.c.l.bf16 %v1450
  %v1456 = vunpack.c.h.bf16 %v1450
  %v1457 = vunpack.c.l.bf16 %v1451
  %v1458 = vunpack.c.h.bf16 %v1451
  %v1459 = vunpack.c.l.bf16 %v1452
  %v1460 = vunpack.c.h.bf16 %v1452
  %v1463 = vunpack.c.l.b16 %v1443
  %v1464 = vunpack.c.l.b16 %v1444
  %v1465 = vpack.c.b16 %v1464, %v1463
  %1467 = vmatpush.bf16.msra.mxu0 %v724
  %1468 = vmatpush.bf16.msra.mxu0 %v720
  %1469 = vmatpush.bf16.msra.mxu0 %v716
  %1470 = vmatpush.bf16.msra.mxu0 %v712
  %1471 = vmatpush.bf16.msra.mxu0 %v708
  %1472 = vmatpush.bf16.msra.mxu0 %v704
  %1473 = vmatpush.bf16.msra.mxu0 %v700
  %1474 = vmatpush.bf16.msra.mxu0 %v696
  %1475 = vmatmul.bf16.gmra.mxu0 %v1465
  %v1476 = vpop.f32.mrf.mxu0
  %v1477 = vadd.f32 0.0, %v1476
  %v1478 = vpop.f32.mrf.mxu0
  %v1479 = vadd.f32 0.0, %v1478
  %1480 = vdwg.mxu0
  %1481 = vmatpush.bf16.msra.mxu0 %v725
  %1482 = vmatpush.bf16.msra.mxu0 %v721
  %1483 = vmatpush.bf16.msra.mxu0 %v717
  %1484 = vmatpush.bf16.msra.mxu0 %v713
  %1485 = vmatpush.bf16.msra.mxu0 %v709
  %1486 = vmatpush.bf16.msra.mxu0 %v705
  %1487 = vmatpush.bf16.msra.mxu0 %v701
  %1488 = vmatpush.bf16.msra.mxu0 %v697
  %1489 = vmatmul.bf16.gmra.mxu0 %v1465
  %v1490 = vpop.f32.mrf.mxu0
  %v1491 = vadd.f32 0.0, %v1490
  %v1492 = vpop.f32.mrf.mxu0
  %v1493 = vadd.f32 0.0, %v1492
  %1494 = vdwg.mxu0
  %1495 = vmatpush.bf16.msra.mxu0 %v726
  %1496 = vmatpush.bf16.msra.mxu0 %v722
  %1497 = vmatpush.bf16.msra.mxu0 %v718
  %1498 = vmatpush.bf16.msra.mxu0 %v714
  %1499 = vmatpush.bf16.msra.mxu0 %v710
  %1500 = vmatpush.bf16.msra.mxu0 %v706
  %1501 = vmatpush.bf16.msra.mxu0 %v702
  %1502 = vmatpush.bf16.msra.mxu0 %v698
  %1503 = vmatmul.bf16.gmra.mxu0 %v1465
  %v1504 = vpop.f32.mrf.mxu0
  %v1505 = vadd.f32 0.0, %v1504
  %v1506 = vpop.f32.mrf.mxu0
  %v1507 = vadd.f32 0.0, %v1506
  %1508 = vdwg.mxu0
  %1509 = vmatpush.bf16.msra.mxu0 %v727
  %1510 = vmatpush.bf16.msra.mxu0 %v723
  %1511 = vmatpush.bf16.msra.mxu0 %v719
  %1512 = vmatpush.bf16.msra.mxu0 %v715
  %1513 = vmatpush.bf16.msra.mxu0 %v711
  %1514 = vmatpush.bf16.msra.mxu0 %v707
  %1515 = vmatpush.bf16.msra.mxu0 %v703
  %1516 = vmatpush.bf16.msra.mxu0 %v699
  %1517 = vmatmul.bf16.gmra.mxu0 %v1465
  %v1518 = vpop.f32.mrf.mxu0
  %v1519 = vadd.f32 0.0, %v1518
  %v1520 = vpop.f32.mrf.mxu0
  %v1521 = vadd.f32 0.0, %v1520
  %1522 = vdwg.mxu0
  %v1523 = vadd.f32 %v1453, %v1477
  %v1524 = vadd.f32 %v1454, %v1491
  %v1525 = vadd.f32 %v1455, %v1505
  %v1526 = vadd.f32 %v1456, %v1519
  %v1527 = vadd.f32 %v1457, %v1479
  %v1528 = vadd.f32 %v1458, %v1493
  %v1529 = vadd.f32 %v1459, %v1507
  %v1530 = vadd.f32 %v1460, %v1521
  %v1531 = vtanh.pop %v1523
  %v1532 = vtanh.pop %v1524
  %v1533 = vtanh.pop %v1525
  %v1534 = vtanh.pop %v1526
  %v1535 = vtanh.pop %v1527
  %v1536 = vtanh.pop %v1528
  %v1537 = vtanh.pop %v1529
  %v1538 = vtanh.pop %v1530
  %v1539 = vmul.f32 %v1531, 0.5
  %v1540 = vmul.f32 %v1532, 0.5
  %v1541 = vmul.f32 %v1533, 0.5
  %v1542 = vmul.f32 %v1535, 0.5
  %v1543 = vmul.f32 %v1536, 0.5
  %v1544 = vmul.f32 %v1537, 0.5
  %v1545 = vadd.f32 %v1539, 0.5
  %v1546 = vadd.f32 %v1540, 0.5
  %v1547 = vadd.f32 %v1541, 0.5
  %v1548 = vadd.f32 %v1542, 0.5
  %v1549 = vadd.f32 %v1543, 0.5
  %v1550 = vadd.f32 %v1544, 0.5
  %v1551 = vmul.f32 %v1546, %v1437
  %v1552 = vmul.f32 %v1549, %v1438
  %v1553 = vmul.f32 %v1545, %v1534
  %v1554 = vmul.f32 %v1548, %v1538
  %v1555 = vadd.f32 %v1551, %v1553
  %v1556 = vadd.f32 %v1552, %v1554
  %v1557 = vtanh.pop %v1555
  %v1558 = vtanh.pop %v1556
  %v1559 = vmul.f32 %v1547, %v1557
  %v1560 = vmul.f32 %v1550, %v1558
  %v1561 = vpack.c.bf16 %v1559, %v1559
  %v1562 = vpack.c.bf16 %v1560, %v1560
  %s1563 = scalar_lea.vmem [#allocation2], 48
  %1564 = vst [vmem:[%s1563] sm:$0xf] %v1561
  %1565 = vst [vmem:[%s1563 + $0x4] sm:$0xf] %v1562
  %s1566 = scalar_lea.vmem [#allocation3], 224
  %v1567 = vld [vmem:[%s1566] sm:$0xff]
  %v1568 = vld [vmem:[%s1566 + $0x8] sm:$0xff]
  %v1569 = vld [vmem:[%s1566 + $0x10] sm:$0xff]
  %v1570 = vld [vmem:[%s1566 + $0x18] sm:$0xff]
  %v1571 = vunpack.c.l.bf16 %v1567
  %v1572 = vunpack.c.h.bf16 %v1567
  %v1573 = vunpack.c.l.bf16 %v1568
  %v1574 = vunpack.c.h.bf16 %v1568
  %v1575 = vunpack.c.l.bf16 %v1569
  %v1576 = vunpack.c.h.bf16 %v1569
  %v1577 = vunpack.c.l.bf16 %v1570
  %v1578 = vunpack.c.h.bf16 %v1570
  %v1581 = vunpack.c.l.b16 %v1561
  %v1582 = vunpack.c.l.b16 %v1562
  %v1583 = vpack.c.b16 %v1582, %v1581
  %1585 = vmatpush.bf16.msra.mxu0 %v724
  %1586 = vmatpush.bf16.msra.mxu0 %v720
  %1587 = vmatpush.bf16.msra.mxu0 %v716
  %1588 = vmatpush.bf16.msra.mxu0 %v712
  %1589 = vmatpush.bf16.msra.mxu0 %v708
  %1590 = vmatpush.bf16.msra.mxu0 %v704
  %1591 = vmatpush.bf16.msra.mxu0 %v700
  %1592 = vmatpush.bf16.msra.mxu0 %v696
  %1593 = vmatmul.bf16.gmra.mxu0 %v1583
  %v1594 = vpop.f32.mrf.mxu0
  %v1595 = vadd.f32 0.0, %v1594
  %v1596 = vpop.f32.mrf.mxu0
  %v1597 = vadd.f32 0.0, %v1596
  %1598 = vdwg.mxu0
  %1599 = vmatpush.bf16.msra.mxu0 %v725
  %1600 = vmatpush.bf16.msra.mxu0 %v721
  %1601 = vmatpush.bf16.msra.mxu0 %v717
  %1602 = vmatpush.bf16.msra.mxu0 %v713
  %1603 = vmatpush.bf16.msra.mxu0 %v709
  %1604 = vmatpush.bf16.msra.mxu0 %v705
  %1605 = vmatpush.bf16.msra.mxu0 %v701
  %1606 = vmatpush.bf16.msra.mxu0 %v697
  %1607 = vmatmul.bf16.gmra.mxu0 %v1583
  %v1608 = vpop.f32.mrf.mxu0
  %v1609 = vadd.f32 0.0, %v1608
  %v1610 = vpop.f32.mrf.mxu0
  %v1611 = vadd.f32 0.0, %v1610
  %1612 = vdwg.mxu0
  %1613 = vmatpush.bf16.msra.mxu0 %v726
  %1614 = vmatpush.bf16.msra.mxu0 %v722
  %1615 = vmatpush.bf16.msra.mxu0 %v718
  %1616 = vmatpush.bf16.msra.mxu0 %v714
  %1617 = vmatpush.bf16.msra.mxu0 %v710
  %1618 = vmatpush.bf16.msra.mxu0 %v706
  %1619 = vmatpush.bf16.msra.mxu0 %v702
  %1620 = vmatpush.bf16.msra.mxu0 %v698
  %1621 = vmatmul.bf16.gmra.mxu0 %v1583
  %v1622 = vpop.f32.mrf.mxu0
  %v1623 = vadd.f32 0.0, %v1622
  %v1624 = vpop.f32.mrf.mxu0
  %v1625 = vadd.f32 0.0, %v1624
  %1626 = vdwg.mxu0
  %1627 = vmatpush.bf16.msra.mxu0 %v727
  %1628 = vmatpush.bf16.msra.mxu0 %v723
  %1629 = vmatpush.bf16.msra.mxu0 %v719
  %1630 = vmatpush.bf16.msra.mxu0 %v715
  %1631 = vmatpush.bf16.msra.mxu0 %v711
  %1632 = vmatpush.bf16.msra.mxu0 %v707
  %1633 = vmatpush.bf16.msra.mxu0 %v703
  %1634 = vmatpush.bf16.msra.mxu0 %v699
  %1635 = vmatmul.bf16.gmra.mxu0 %v1583
  %v1636 = vpop.f32.mrf.mxu0
  %v1637 = vadd.f32 0.0, %v1636
  %v1638 = vpop.f32.mrf.mxu0
  %v1639 = vadd.f32 0.0, %v1638
  %1640 = vdwg.mxu0
  %v1641 = vadd.f32 %v1571, %v1595
  %v1642 = vadd.f32 %v1572, %v1609
  %v1643 = vadd.f32 %v1573, %v1623
  %v1644 = vadd.f32 %v1574, %v1637
  %v1645 = vadd.f32 %v1575, %v1597
  %v1646 = vadd.f32 %v1576, %v1611
  %v1647 = vadd.f32 %v1577, %v1625
  %v1648 = vadd.f32 %v1578, %v1639
  %v1649 = vtanh.pop %v1641
  %v1650 = vtanh.pop %v1642
  %v1651 = vtanh.pop %v1643
  %v1652 = vtanh.pop %v1644
  %v1653 = vtanh.pop %v1645
  %v1654 = vtanh.pop %v1646
  %v1655 = vtanh.pop %v1647
  %v1656 = vtanh.pop %v1648
  %v1657 = vmul.f32 %v1649, 0.5
  %v1658 = vmul.f32 %v1650, 0.5
  %v1659 = vmul.f32 %v1651, 0.5
  %v1660 = vmul.f32 %v1653, 0.5
  %v1661 = vmul.f32 %v1654, 0.5
  %v1662 = vmul.f32 %v1655, 0.5
  %v1663 = vadd.f32 %v1657, 0.5
  %v1664 = vadd.f32 %v1658, 0.5
  %v1665 = vadd.f32 %v1659, 0.5
  %v1666 = vadd.f32 %v1660, 0.5
  %v1667 = vadd.f32 %v1661, 0.5
  %v1668 = vadd.f32 %v1662, 0.5
  %v1669 = vmul.f32 %v1664, %v1555
  %v1670 = vmul.f32 %v1667, %v1556
  %v1671 = vmul.f32 %v1663, %v1652
  %v1672 = vmul.f32 %v1666, %v1656
  %v1673 = vadd.f32 %v1669, %v1671
  %v1674 = vadd.f32 %v1670, %v1672
  %v1675 = vtanh.pop %v1673
  %v1676 = vtanh.pop %v1674
  %v1677 = vmul.f32 %v1665, %v1675
  %v1678 = vmul.f32 %v1668, %v1676
  %v1679 = vpack.c.bf16 %v1677, %v1677
  %v1680 = vpack.c.bf16 %v1678, %v1678
  %s1681 = scalar_lea.vmem [#allocation2], 56
  %1682 = vst [vmem:[%s1681] sm:$0xf] %v1679
  %1683 = vst [vmem:[%s1681 + $0x4] sm:$0xf] %v1680
  %v1684 = vld [vmem:[%s5] sm:$0xff]
  %v1685 = vld [vmem:[%s5 + $0x8] sm:$0xff]
  %v1686 = vld [vmem:[%s5 + $0x10] sm:$0xff]
  %v1687 = vld [vmem:[%s5 + $0x18] sm:$0xff]
  %v1688 = vld [vmem:[%s5 + $0x20] sm:$0xff]
  %v1689 = vld [vmem:[%s5 + $0x28] sm:$0xff]
  %v1690 = vld [vmem:[%s5 + $0x30] sm:$0xff]
  %v1691 = vld [vmem:[%s5 + $0x38] sm:$0xff]
  %v1692 = vld [vmem:[%s5 + $0x40] sm:$0xff]
  %v1693 = vld [vmem:[%s5 + $0x48] sm:$0xff]
  %v1694 = vld [vmem:[%s5 + $0x50] sm:$0xff]
  %v1695 = vld [vmem:[%s5 + $0x58] sm:$0xff]
  %v1696 = vld [vmem:[%s5 + $0x60] sm:$0xff]
  %v1697 = vld [vmem:[%s5 + $0x68] sm:$0xff]
  %v1698 = vld [vmem:[%s5 + $0x70] sm:$0xff]
  %v1699 = vld [vmem:[%s5 + $0x78] sm:$0xff]
  %v1700 = vld [vmem:[%s5 + $0x80] sm:$0xff]
  %v1701 = vld [vmem:[%s5 + $0x88] sm:$0xff]
  %v1702 = vld [vmem:[%s5 + $0x90] sm:$0xff]
  %v1703 = vld [vmem:[%s5 + $0x98] sm:$0xff]
  %v1704 = vld [vmem:[%s5 + $0xa0] sm:$0xff]
  %v1705 = vld [vmem:[%s5 + $0xa8] sm:$0xff]
  %v1706 = vld [vmem:[%s5 + $0xb0] sm:$0xff]
  %v1707 = vld [vmem:[%s5 + $0xb8] sm:$0xff]
  %v1708 = vld [vmem:[%s5 + $0xc0] sm:$0xff]
  %v1709 = vld [vmem:[%s5 + $0xc8] sm:$0xff]
  %v1710 = vld [vmem:[%s5 + $0xd0] sm:$0xff]
  %v1711 = vld [vmem:[%s5 + $0xd8] sm:$0xff]
  %v1712 = vld [vmem:[%s5 + $0xe0] sm:$0xff]
  %v1713 = vld [vmem:[%s5 + $0xe8] sm:$0xff]
  %v1714 = vld [vmem:[%s5 + $0xf0] sm:$0xff]
  %v1715 = vld [vmem:[%s5 + $0xf8] sm:$0xff]
  %v1716 = vld [vmem:[%s6] sm:$0xff]
  %v1717 = vld [vmem:[%s6 + $0x8] sm:$0xff]
  %v1718 = vld [vmem:[%s6 + $0x10] sm:$0xff]
  %v1719 = vld [vmem:[%s6 + $0x18] sm:$0xff]
  %v1720 = vld [vmem:[%s6 + $0x20] sm:$0xff]
  %v1721 = vld [vmem:[%s6 + $0x28] sm:$0xff]
  %v1722 = vld [vmem:[%s6 + $0x30] sm:$0xff]
  %v1723 = vld [vmem:[%s6 + $0x38] sm:$0xff]
  %v1724 = vld [vmem:[%s6 + $0x40] sm:$0xff]
  %v1725 = vld [vmem:[%s6 + $0x48] sm:$0xff]
  %v1726 = vld [vmem:[%s6 + $0x50] sm:$0xff]
  %v1727 = vld [vmem:[%s6 + $0x58] sm:$0xff]
  %v1728 = vld [vmem:[%s6 + $0x60] sm:$0xff]
  %v1729 = vld [vmem:[%s6 + $0x68] sm:$0xff]
  %v1730 = vld [vmem:[%s6 + $0x70] sm:$0xff]
  %v1731 = vld [vmem:[%s6 + $0x78] sm:$0xff]
  %v1732 = vld [vmem:[%s6 + $0x80] sm:$0xff]
  %v1733 = vld [vmem:[%s6 + $0x88] sm:$0xff]
  %v1734 = vld [vmem:[%s6 + $0x90] sm:$0xff]
  %v1735 = vld [vmem:[%s6 + $0x98] sm:$0xff]
  %v1736 = vld [vmem:[%s6 + $0xa0] sm:$0xff]
  %v1737 = vld [vmem:[%s6 + $0xa8] sm:$0xff]
  %v1738 = vld [vmem:[%s6 + $0xb0] sm:$0xff]
  %v1739 = vld [vmem:[%s6 + $0xb8] sm:$0xff]
  %v1740 = vld [vmem:[%s6 + $0xc0] sm:$0xff]
  %v1741 = vld [vmem:[%s6 + $0xc8] sm:$0xff]
  %v1742 = vld [vmem:[%s6 + $0xd0] sm:$0xff]
  %v1743 = vld [vmem:[%s6 + $0xd8] sm:$0xff]
  %v1744 = vld [vmem:[%s6 + $0xe0] sm:$0xff]
  %v1745 = vld [vmem:[%s6 + $0xe8] sm:$0xff]
  %v1746 = vld [vmem:[%s6 + $0xf0] sm:$0xff]
  %v1747 = vld [vmem:[%s6 + $0xf8] sm:$0xff]
  %v1748 = vld [vmem:[%s7] sm:$0xf]
  %v1749 = vld [vmem:[#allocation2] sm:$0xf]
  %v1750 = vld [vmem:[#allocation2 + $0x4] sm:$0xf]
  %v1751 = vld [vmem:[#allocation2 + $0x8] sm:$0xf]
  %v1752 = vld [vmem:[#allocation2 + $0xc] sm:$0xf]
  %v1753 = vld [vmem:[#allocation2 + $0x10] sm:$0xf]
  %v1754 = vld [vmem:[#allocation2 + $0x14] sm:$0xf]
  %v1755 = vld [vmem:[#allocation2 + $0x18] sm:$0xf]
  %v1756 = vld [vmem:[#allocation2 + $0x1c] sm:$0xf]
  %v1757 = vld [vmem:[#allocation2 + $0x20] sm:$0xf]
  %v1758 = vld [vmem:[#allocation2 + $0x24] sm:$0xf]
  %v1759 = vld [vmem:[#allocation2 + $0x28] sm:$0xf]
  %v1760 = vld [vmem:[#allocation2 + $0x2c] sm:$0xf]
  %v1761 = vld [vmem:[#allocation2 + $0x30] sm:$0xf]
  %v1762 = vld [vmem:[#allocation2 + $0x34] sm:$0xf]
  %v1763 = vld [vmem:[#allocation2 + $0x38] sm:$0xf]
  %v1764 = vld [vmem:[#allocation2 + $0x3c] sm:$0xf]
  %v1766 = vperm.slane %v1748, 0
  %v1767 = vperm.slane %v1748, 1
  %v1768 = vperm.slane %v1748, 2
  %v1769 = vperm.slane %v1748, 3
  %v1790 = vunpack.c.l.b16 %v1749
  %v1791 = vunpack.c.l.b16 %v1750
  %v1792 = vunpack.c.l.b16 %v1751
  %v1793 = vunpack.c.l.b16 %v1752
  %v1794 = vunpack.c.l.b16 %v1753
  %v1795 = vunpack.c.l.b16 %v1754
  %v1796 = vunpack.c.l.b16 %v1755
  %v1797 = vunpack.c.l.b16 %v1756
  %v1798 = vunpack.c.l.b16 %v1757
  %v1799 = vunpack.c.l.b16 %v1758
  %v1800 = vunpack.c.l.b16 %v1759
  %v1801 = vunpack.c.l.b16 %v1760
  %v1802 = vunpack.c.l.b16 %v1761
  %v1803 = vunpack.c.l.b16 %v1762
  %v1804 = vunpack.c.l.b16 %v1763
  %v1805 = vunpack.c.l.b16 %v1764
  %v1806 = vpack.c.b16 %v1791, %v1790
  %v1807 = vpack.c.b16 %v1793, %v1792
  %v1808 = vpack.c.b16 %v1795, %v1794
  %v1809 = vpack.c.b16 %v1797, %v1796
  %v1810 = vpack.c.b16 %v1799, %v1798
  %v1811 = vpack.c.b16 %v1801, %v1800
  %v1812 = vpack.c.b16 %v1803, %v1802
  %v1813 = vpack.c.b16 %v1805, %v1804
  %v1854 = vunpack.c.l.b16 %v1684
  %v1855 = vunpack.c.h.b16 %v1684
  %v1856 = vunpack.c.l.b16 %v1685
  %v1857 = vunpack.c.h.b16 %v1685
  %v1858 = vunpack.c.l.b16 %v1686
  %v1859 = vunpack.c.h.b16 %v1686
  %v1860 = vunpack.c.l.b16 %v1687
  %v1861 = vunpack.c.h.b16 %v1687
  %v1862 = vunpack.c.l.b16 %v1688
  %v1863 = vunpack.c.h.b16 %v1688
  %v1864 = vunpack.c.l.b16 %v1689
  %v1865 = vunpack.c.h.b16 %v1689
  %v1866 = vunpack.c.l.b16 %v1690
  %v1867 = vunpack.c.h.b16 %v1690
  %v1868 = vunpack.c.l.b16 %v1691
  %v1869 = vunpack.c.h.b16 %v1691
  %v1870 = vunpack.c.l.b16 %v1692
  %v1871 = vunpack.c.h.b16 %v1692
  %v1872 = vunpack.c.l.b16 %v1693
  %v1873 = vunpack.c.h.b16 %v1693
  %v1874 = vunpack.c.l.b16 %v1694
  %v1875 = vunpack.c.h.b16 %v1694
  %v1876 = vunpack.c.l.b16 %v1695
  %v1877 = vunpack.c.h.b16 %v1695
  %v1878 = vunpack.c.l.b16 %v1696
  %v1879 = vunpack.c.h.b16 %v1696
  %v1880 = vunpack.c.l.b16 %v1697
  %v1881 = vunpack.c.h.b16 %v1697
  %v1882 = vunpack.c.l.b16 %v1698
  %v1883 = vunpack.c.h.b16 %v1698
  %v1884 = vunpack.c.l.b16 %v1699
  %v1885 = vunpack.c.h.b16 %v1699
  %v1886 = vunpack.c.l.b16 %v1700
  %v1887 = vunpack.c.h.b16 %v1700
  %v1888 = vunpack.c.l.b16 %v1701
  %v1889 = vunpack.c.h.b16 %v1701
  %v1890 = vunpack.c.l.b16 %v1702
  %v1891 = vunpack.c.h.b16 %v1702
  %v1892 = vunpack.c.l.b16 %v1703
  %v1893 = vunpack.c.h.b16 %v1703
  %v1894 = vunpack.c.l.b16 %v1704
  %v1895 = vunpack.c.h.b16 %v1704
  %v1896 = vunpack.c.l.b16 %v1705
  %v1897 = vunpack.c.h.b16 %v1705
  %v1898 = vunpack.c.l.b16 %v1706
  %v1899 = vunpack.c.h.b16 %v1706
  %v1900 = vunpack.c.l.b16 %v1707
  %v1901 = vunpack.c.h.b16 %v1707
  %v1902 = vunpack.c.l.b16 %v1708
  %v1903 = vunpack.c.h.b16 %v1708
  %v1904 = vunpack.c.l.b16 %v1709
  %v1905 = vunpack.c.h.b16 %v1709
  %v1906 = vunpack.c.l.b16 %v1710
  %v1907 = vunpack.c.h.b16 %v1710
  %v1908 = vunpack.c.l.b16 %v1711
  %v1909 = vunpack.c.h.b16 %v1711
  %v1910 = vunpack.c.l.b16 %v1712
  %v1911 = vunpack.c.h.b16 %v1712
  %v1912 = vunpack.c.l.b16 %v1713
  %v1913 = vunpack.c.h.b16 %v1713
  %v1914 = vunpack.c.l.b16 %v1714
  %v1915 = vunpack.c.h.b16 %v1714
  %v1916 = vunpack.c.l.b16 %v1715
  %v1917 = vunpack.c.h.b16 %v1715
  %v1918 = vpack.c.b16 %v1858, %v1854
  %v1919 = vpack.c.b16 %v1859, %v1855
  %v1920 = vpack.c.b16 %v1860, %v1856
  %v1921 = vpack.c.b16 %v1861, %v1857
  %v1922 = vpack.c.b16 %v1866, %v1862
  %v1923 = vpack.c.b16 %v1867, %v1863
  %v1924 = vpack.c.b16 %v1868, %v1864
  %v1925 = vpack.c.b16 %v1869, %v1865
  %v1926 = vpack.c.b16 %v1874, %v1870
  %v1927 = vpack.c.b16 %v1875, %v1871
  %v1928 = vpack.c.b16 %v1876, %v1872
  %v1929 = vpack.c.b16 %v1877, %v1873
  %v1930 = vpack.c.b16 %v1882, %v1878
  %v1931 = vpack.c.b16 %v1883, %v1879
  %v1932 = vpack.c.b16 %v1884, %v1880
  %v1933 = vpack.c.b16 %v1885, %v1881
  %v1934 = vpack.c.b16 %v1890, %v1886
  %v1935 = vpack.c.b16 %v1891, %v1887
  %v1936 = vpack.c.b16 %v1892, %v1888
  %v1937 = vpack.c.b16 %v1893, %v1889
  %v1938 = vpack.c.b16 %v1898, %v1894
  %v1939 = vpack.c.b16 %v1899, %v1895
  %v1940 = vpack.c.b16 %v1900, %v1896
  %v1941 = vpack.c.b16 %v1901, %v1897
  %v1942 = vpack.c.b16 %v1906, %v1902
  %v1943 = vpack.c.b16 %v1907, %v1903
  %v1944 = vpack.c.b16 %v1908, %v1904
  %v1945 = vpack.c.b16 %v1909, %v1905
  %v1946 = vpack.c.b16 %v1914, %v1910
  %v1947 = vpack.c.b16 %v1915, %v1911
  %v1948 = vpack.c.b16 %v1916, %v1912
  %v1949 = vpack.c.b16 %v1917, %v1913
  %1982 = vmatpush.bf16.msra.mxu0 %v1946
  %1983 = vmatpush.bf16.msra.mxu0 %v1942
  %1984 = vmatpush.bf16.msra.mxu0 %v1938
  %1985 = vmatpush.bf16.msra.mxu0 %v1934
  %1986 = vmatpush.bf16.msra.mxu0 %v1930
  %1987 = vmatpush.bf16.msra.mxu0 %v1926
  %1988 = vmatpush.bf16.msra.mxu0 %v1922
  %1989 = vmatpush.bf16.msra.mxu0 %v1918
  %1990 = vmatmul.bf16.gmra.mxu0 %v1806
  %v1991 = vpop.f32.mrf.mxu0
  %v1992 = vadd.f32 %v1766, %v1991
  %v1993 = vpop.f32.mrf.mxu0
  %v1994 = vadd.f32 %v1766, %v1993
  %1995 = vmatmul.bf16.gmra.mxu0 %v1807
  %v1996 = vpop.f32.mrf.mxu0
  %v1997 = vadd.f32 %v1766, %v1996
  %v1998 = vpop.f32.mrf.mxu0
  %v1999 = vadd.f32 %v1766, %v1998
  %2000 = vmatmul.bf16.gmra.mxu0 %v1808
  %v2001 = vpop.f32.mrf.mxu0
  %v2002 = vadd.f32 %v1766, %v2001
  %v2003 = vpop.f32.mrf.mxu0
  %v2004 = vadd.f32 %v1766, %v2003
  %2005 = vmatmul.bf16.gmra.mxu0 %v1809
  %v2006 = vpop.f32.mrf.mxu0
  %v2007 = vadd.f32 %v1766, %v2006
  %v2008 = vpop.f32.mrf.mxu0
  %v2009 = vadd.f32 %v1766, %v2008
  %2010 = vmatmul.bf16.gmra.mxu0 %v1810
  %v2011 = vpop.f32.mrf.mxu0
  %v2012 = vadd.f32 %v1766, %v2011
  %v2013 = vpop.f32.mrf.mxu0
  %v2014 = vadd.f32 %v1766, %v2013
  %2015 = vmatmul.bf16.gmra.mxu0 %v1811
  %v2016 = vpop.f32.mrf.mxu0
  %v2017 = vadd.f32 %v1766, %v2016
  %v2018 = vpop.f32.mrf.mxu0
  %v2019 = vadd.f32 %v1766, %v2018
  %2020 = vmatmul.bf16.gmra.mxu0 %v1812
  %v2021 = vpop.f32.mrf.mxu0
  %v2022 = vadd.f32 %v1766, %v2021
  %v2023 = vpop.f32.mrf.mxu0
  %v2024 = vadd.f32 %v1766, %v2023
  %2025 = vmatmul.bf16.gmra.mxu0 %v1813
  %v2026 = vpop.f32.mrf.mxu0
  %v2027 = vadd.f32 %v1766, %v2026
  %v2028 = vpop.f32.mrf.mxu0
  %v2029 = vadd.f32 %v1766, %v2028
  %2030 = vdwg.mxu0
  %2031 = vmatpush.bf16.msra.mxu0 %v1947
  %2032 = vmatpush.bf16.msra.mxu0 %v1943
  %2033 = vmatpush.bf16.msra.mxu0 %v1939
  %2034 = vmatpush.bf16.msra.mxu0 %v1935
  %2035 = vmatpush.bf16.msra.mxu0 %v1931
  %2036 = vmatpush.bf16.msra.mxu0 %v1927
  %2037 = vmatpush.bf16.msra.mxu0 %v1923
  %2038 = vmatpush.bf16.msra.mxu0 %v1919
  %2039 = vmatmul.bf16.gmra.mxu0 %v1806
  %v2040 = vpop.f32.mrf.mxu0
  %v2041 = vadd.f32 %v1767, %v2040
  %v2042 = vpop.f32.mrf.mxu0
  %v2043 = vadd.f32 %v1767, %v2042
  %2044 = vmatmul.bf16.gmra.mxu0 %v1807
  %v2045 = vpop.f32.mrf.mxu0
  %v2046 = vadd.f32 %v1767, %v2045
  %v2047 = vpop.f32.mrf.mxu0
  %v2048 = vadd.f32 %v1767, %v2047
  %2049 = vmatmul.bf16.gmra.mxu0 %v1808
  %v2050 = vpop.f32.mrf.mxu0
  %v2051 = vadd.f32 %v1767, %v2050
  %v2052 = vpop.f32.mrf.mxu0
  %v2053 = vadd.f32 %v1767, %v2052
  %2054 = vmatmul.bf16.gmra.mxu0 %v1809
  %v2055 = vpop.f32.mrf.mxu0
  %v2056 = vadd.f32 %v1767, %v2055
  %v2057 = vpop.f32.mrf.mxu0
  %v2058 = vadd.f32 %v1767, %v2057
  %2059 = vmatmul.bf16.gmra.mxu0 %v1810
  %v2060 = vpop.f32.mrf.mxu0
  %v2061 = vadd.f32 %v1767, %v2060
  %v2062 = vpop.f32.mrf.mxu0
  %v2063 = vadd.f32 %v1767, %v2062
  %2064 = vmatmul.bf16.gmra.mxu0 %v1811
  %v2065 = vpop.f32.mrf.mxu0
  %v2066 = vadd.f32 %v1767, %v2065
  %v2067 = vpop.f32.mrf.mxu0
  %v2068 = vadd.f32 %v1767, %v2067
  %2069 = vmatmul.bf16.gmra.mxu0 %v1812
  %v2070 = vpop.f32.mrf.mxu0
  %v2071 = vadd.f32 %v1767, %v2070
  %v2072 = vpop.f32.mrf.mxu0
  %v2073 = vadd.f32 %v1767, %v2072
  %2074 = vmatmul.bf16.gmra.mxu0 %v1813
  %v2075 = vpop.f32.mrf.mxu0
  %v2076 = vadd.f32 %v1767, %v2075
  %v2077 = vpop.f32.mrf.mxu0
  %v2078 = vadd.f32 %v1767, %v2077
  %2079 = vdwg.mxu0
  %2080 = vmatpush.bf16.msra.mxu0 %v1948
  %2081 = vmatpush.bf16.msra.mxu0 %v1944
  %2082 = vmatpush.bf16.msra.mxu0 %v1940
  %2083 = vmatpush.bf16.msra.mxu0 %v1936
  %2084 = vmatpush.bf16.msra.mxu0 %v1932
  %2085 = vmatpush.bf16.msra.mxu0 %v1928
  %2086 = vmatpush.bf16.msra.mxu0 %v1924
  %2087 = vmatpush.bf16.msra.mxu0 %v1920
  %2088 = vmatmul.bf16.gmra.mxu0 %v1806
  %v2089 = vpop.f32.mrf.mxu0
  %v2090 = vadd.f32 %v1768, %v2089
  %v2091 = vpop.f32.mrf.mxu0
  %v2092 = vadd.f32 %v1768, %v2091
  %2093 = vmatmul.bf16.gmra.mxu0 %v1807
  %v2094 = vpop.f32.mrf.mxu0
  %v2095 = vadd.f32 %v1768, %v2094
  %v2096 = vpop.f32.mrf.mxu0
  %v2097 = vadd.f32 %v1768, %v2096
  %2098 = vmatmul.bf16.gmra.mxu0 %v1808
  %v2099 = vpop.f32.mrf.mxu0
  %v2100 = vadd.f32 %v1768, %v2099
  %v2101 = vpop.f32.mrf.mxu0
  %v2102 = vadd.f32 %v1768, %v2101
  %2103 = vmatmul.bf16.gmra.mxu0 %v1809
  %v2104 = vpop.f32.mrf.mxu0
  %v2105 = vadd.f32 %v1768, %v2104
  %v2106 = vpop.f32.mrf.mxu0
  %v2107 = vadd.f32 %v1768, %v2106
  %2108 = vmatmul.bf16.gmra.mxu0 %v1810
  %v2109 = vpop.f32.mrf.mxu0
  %v2110 = vadd.f32 %v1768, %v2109
  %v2111 = vpop.f32.mrf.mxu0
  %v2112 = vadd.f32 %v1768, %v2111
  %2113 = vmatmul.bf16.gmra.mxu0 %v1811
  %v2114 = vpop.f32.mrf.mxu0
  %v2115 = vadd.f32 %v1768, %v2114
  %v2116 = vpop.f32.mrf.mxu0
  %v2117 = vadd.f32 %v1768, %v2116
  %2118 = vmatmul.bf16.gmra.mxu0 %v1812
  %v2119 = vpop.f32.mrf.mxu0
  %v2120 = vadd.f32 %v1768, %v2119
  %v2121 = vpop.f32.mrf.mxu0
  %v2122 = vadd.f32 %v1768, %v2121
  %2123 = vmatmul.bf16.gmra.mxu0 %v1813
  %v2124 = vpop.f32.mrf.mxu0
  %v2125 = vadd.f32 %v1768, %v2124
  %v2126 = vpop.f32.mrf.mxu0
  %v2127 = vadd.f32 %v1768, %v2126
  %2128 = vdwg.mxu0
  %2129 = vmatpush.bf16.msra.mxu0 %v1949
  %2130 = vmatpush.bf16.msra.mxu0 %v1945
  %2131 = vmatpush.bf16.msra.mxu0 %v1941
  %2132 = vmatpush.bf16.msra.mxu0 %v1937
  %2133 = vmatpush.bf16.msra.mxu0 %v1933
  %2134 = vmatpush.bf16.msra.mxu0 %v1929
  %2135 = vmatpush.bf16.msra.mxu0 %v1925
  %2136 = vmatpush.bf16.msra.mxu0 %v1921
  %2137 = vmatmul.bf16.gmra.mxu0 %v1806
  %v2138 = vpop.f32.mrf.mxu0
  %v2139 = vadd.f32 %v1769, %v2138
  %v2140 = vpop.f32.mrf.mxu0
  %v2141 = vadd.f32 %v1769, %v2140
  %2142 = vmatmul.bf16.gmra.mxu0 %v1807
  %v2143 = vpop.f32.mrf.mxu0
  %v2144 = vadd.f32 %v1769, %v2143
  %v2145 = vpop.f32.mrf.mxu0
  %v2146 = vadd.f32 %v1769, %v2145
  %2147 = vmatmul.bf16.gmra.mxu0 %v1808
  %v2148 = vpop.f32.mrf.mxu0
  %v2149 = vadd.f32 %v1769, %v2148
  %v2150 = vpop.f32.mrf.mxu0
  %v2151 = vadd.f32 %v1769, %v2150
  %2152 = vmatmul.bf16.gmra.mxu0 %v1809
  %v2153 = vpop.f32.mrf.mxu0
  %v2154 = vadd.f32 %v1769, %v2153
  %v2155 = vpop.f32.mrf.mxu0
  %v2156 = vadd.f32 %v1769, %v2155
  %2157 = vmatmul.bf16.gmra.mxu0 %v1810
  %v2158 = vpop.f32.mrf.mxu0
  %v2159 = vadd.f32 %v1769, %v2158
  %v2160 = vpop.f32.mrf.mxu0
  %v2161 = vadd.f32 %v1769, %v2160
  %2162 = vmatmul.bf16.gmra.mxu0 %v1811
  %v2163 = vpop.f32.mrf.mxu0
  %v2164 = vadd.f32 %v1769, %v2163
  %v2165 = vpop.f32.mrf.mxu0
  %v2166 = vadd.f32 %v1769, %v2165
  %2167 = vmatmul.bf16.gmra.mxu0 %v1812
  %v2168 = vpop.f32.mrf.mxu0
  %v2169 = vadd.f32 %v1769, %v2168
  %v2170 = vpop.f32.mrf.mxu0
  %v2171 = vadd.f32 %v1769, %v2170
  %2172 = vmatmul.bf16.gmra.mxu0 %v1813
  %v2173 = vpop.f32.mrf.mxu0
  %v2174 = vadd.f32 %v1769, %v2173
  %v2175 = vpop.f32.mrf.mxu0
  %v2176 = vadd.f32 %v1769, %v2175
  %2177 = vdwg.mxu0
  %v2178 = vpack.c.bf16 %v2041, %v1992
  %v2179 = vpack.c.bf16 %v2139, %v2090
  %v2180 = vpack.c.bf16 %v2043, %v1994
  %v2181 = vpack.c.bf16 %v2141, %v2092
  %v2182 = vpack.c.bf16 %v2046, %v1997
  %v2183 = vpack.c.bf16 %v2144, %v2095
  %v2184 = vpack.c.bf16 %v2048, %v1999
  %v2185 = vpack.c.bf16 %v2146, %v2097
  %v2186 = vpack.c.bf16 %v2051, %v2002
  %v2187 = vpack.c.bf16 %v2149, %v2100
  %v2188 = vpack.c.bf16 %v2053, %v2004
  %v2189 = vpack.c.bf16 %v2151, %v2102
  %v2190 = vpack.c.bf16 %v2056, %v2007
  %v2191 = vpack.c.bf16 %v2154, %v2105
  %v2192 = vpack.c.bf16 %v2058, %v2009
  %v2193 = vpack.c.bf16 %v2156, %v2107
  %v2194 = vpack.c.bf16 %v2061, %v2012
  %v2195 = vpack.c.bf16 %v2159, %v2110
  %v2196 = vpack.c.bf16 %v2063, %v2014
  %v2197 = vpack.c.bf16 %v2161, %v2112
  %v2198 = vpack.c.bf16 %v2066, %v2017
  %v2199 = vpack.c.bf16 %v2164, %v2115
  %v2200 = vpack.c.bf16 %v2068, %v2019
  %v2201 = vpack.c.bf16 %v2166, %v2117
  %v2202 = vpack.c.bf16 %v2071, %v2022
  %v2203 = vpack.c.bf16 %v2169, %v2120
  %v2204 = vpack.c.bf16 %v2073, %v2024
  %v2205 = vpack.c.bf16 %v2171, %v2122
  %v2206 = vpack.c.bf16 %v2076, %v2027
  %v2207 = vpack.c.bf16 %v2174, %v2125
  %v2208 = vpack.c.bf16 %v2078, %v2029
  %v2209 = vpack.c.bf16 %v2176, %v2127
  %2210 = vst [vmem:[#allocation3] sm:$0xff] %v2178
  %2211 = vst [vmem:[#allocation3 + $0x8] sm:$0xff] %v2179
  %2212 = vst [vmem:[#allocation3 + $0x10] sm:$0xff] %v2180
  %2213 = vst [vmem:[#allocation3 + $0x18] sm:$0xff] %v2181
  %2214 = vst [vmem:[#allocation3 + $0x20] sm:$0xff] %v2182
  %2215 = vst [vmem:[#allocation3 + $0x28] sm:$0xff] %v2183
  %2216 = vst [vmem:[#allocation3 + $0x30] sm:$0xff] %v2184
  %2217 = vst [vmem:[#allocation3 + $0x38] sm:$0xff] %v2185
  %2218 = vst [vmem:[#allocation3 + $0x40] sm:$0xff] %v2186
  %2219 = vst [vmem:[#allocation3 + $0x48] sm:$0xff] %v2187
  %2220 = vst [vmem:[#allocation3 + $0x50] sm:$0xff] %v2188
  %2221 = vst [vmem:[#allocation3 + $0x58] sm:$0xff] %v2189
  %2222 = vst [vmem:[#allocation3 + $0x60] sm:$0xff] %v2190
  %2223 = vst [vmem:[#allocation3 + $0x68] sm:$0xff] %v2191
  %2224 = vst [vmem:[#allocation3 + $0x70] sm:$0xff] %v2192
  %2225 = vst [vmem:[#allocation3 + $0x78] sm:$0xff] %v2193
  %2226 = vst [vmem:[#allocation3 + $0x80] sm:$0xff] %v2194
  %2227 = vst [vmem:[#allocation3 + $0x88] sm:$0xff] %v2195
  %2228 = vst [vmem:[#allocation3 + $0x90] sm:$0xff] %v2196
  %2229 = vst [vmem:[#allocation3 + $0x98] sm:$0xff] %v2197
  %2230 = vst [vmem:[#allocation3 + $0xa0] sm:$0xff] %v2198
  %2231 = vst [vmem:[#allocation3 + $0xa8] sm:$0xff] %v2199
  %2232 = vst [vmem:[#allocation3 + $0xb0] sm:$0xff] %v2200
  %2233 = vst [vmem:[#allocation3 + $0xb8] sm:$0xff] %v2201
  %2234 = vst [vmem:[#allocation3 + $0xc0] sm:$0xff] %v2202
  %2235 = vst [vmem:[#allocation3 + $0xc8] sm:$0xff] %v2203
  %2236 = vst [vmem:[#allocation3 + $0xd0] sm:$0xff] %v2204
  %2237 = vst [vmem:[#allocation3 + $0xd8] sm:$0xff] %v2205
  %2238 = vst [vmem:[#allocation3 + $0xe0] sm:$0xff] %v2206
  %2239 = vst [vmem:[#allocation3 + $0xe8] sm:$0xff] %v2207
  %2240 = vst [vmem:[#allocation3 + $0xf0] sm:$0xff] %v2208
  %2241 = vst [vmem:[#allocation3 + $0xf8] sm:$0xff] %v2209
  %v2242 = vld [vmem:[#allocation3] sm:$0xff]
  %v2243 = vld [vmem:[#allocation3 + $0x8] sm:$0xff]
  %v2244 = vld [vmem:[#allocation3 + $0x10] sm:$0xff]
  %v2245 = vld [vmem:[#allocation3 + $0x18] sm:$0xff]
  %v2246 = vunpack.c.l.bf16 %v2242
  %v2247 = vunpack.c.h.bf16 %v2242
  %v2248 = vunpack.c.l.bf16 %v2243
  %v2249 = vunpack.c.h.bf16 %v2243
  %v2250 = vunpack.c.l.bf16 %v2244
  %v2251 = vunpack.c.h.bf16 %v2244
  %v2252 = vunpack.c.l.bf16 %v2245
  %v2253 = vunpack.c.h.bf16 %v2245
  %v2286 = vunpack.c.l.b16 %v1716
  %v2287 = vunpack.c.h.b16 %v1716
  %v2288 = vunpack.c.l.b16 %v1717
  %v2289 = vunpack.c.h.b16 %v1717
  %v2290 = vunpack.c.l.b16 %v1718
  %v2291 = vunpack.c.h.b16 %v1718
  %v2292 = vunpack.c.l.b16 %v1719
  %v2293 = vunpack.c.h.b16 %v1719
  %v2294 = vunpack.c.l.b16 %v1720
  %v2295 = vunpack.c.h.b16 %v1720
  %v2296 = vunpack.c.l.b16 %v1721
  %v2297 = vunpack.c.h.b16 %v1721
  %v2298 = vunpack.c.l.b16 %v1722
  %v2299 = vunpack.c.h.b16 %v1722
  %v2300 = vunpack.c.l.b16 %v1723
  %v2301 = vunpack.c.h.b16 %v1723
  %v2302 = vunpack.c.l.b16 %v1724
  %v2303 = vunpack.c.h.b16 %v1724
  %v2304 = vunpack.c.l.b16 %v1725
  %v2305 = vunpack.c.h.b16 %v1725
  %v2306 = vunpack.c.l.b16 %v1726
  %v2307 = vunpack.c.h.b16 %v1726
  %v2308 = vunpack.c.l.b16 %v1727
  %v2309 = vunpack.c.h.b16 %v1727
  %v2310 = vunpack.c.l.b16 %v1728
  %v2311 = vunpack.c.h.b16 %v1728
  %v2312 = vunpack.c.l.b16 %v1729
  %v2313 = vunpack.c.h.b16 %v1729
  %v2314 = vunpack.c.l.b16 %v1730
  %v2315 = vunpack.c.h.b16 %v1730
  %v2316 = vunpack.c.l.b16 %v1731
  %v2317 = vunpack.c.h.b16 %v1731
  %v2318 = vunpack.c.l.b16 %v1732
  %v2319 = vunpack.c.h.b16 %v1732
  %v2320 = vunpack.c.l.b16 %v1733
  %v2321 = vunpack.c.h.b16 %v1733
  %v2322 = vunpack.c.l.b16 %v1734
  %v2323 = vunpack.c.h.b16 %v1734
  %v2324 = vunpack.c.l.b16 %v1735
  %v2325 = vunpack.c.h.b16 %v1735
  %v2326 = vunpack.c.l.b16 %v1736
  %v2327 = vunpack.c.h.b16 %v1736
  %v2328 = vunpack.c.l.b16 %v1737
  %v2329 = vunpack.c.h.b16 %v1737
  %v2330 = vunpack.c.l.b16 %v1738
  %v2331 = vunpack.c.h.b16 %v1738
  %v2332 = vunpack.c.l.b16 %v1739
  %v2333 = vunpack.c.h.b16 %v1739
  %v2334 = vunpack.c.l.b16 %v1740
  %v2335 = vunpack.c.h.b16 %v1740
  %v2336 = vunpack.c.l.b16 %v1741
  %v2337 = vunpack.c.h.b16 %v1741
  %v2338 = vunpack.c.l.b16 %v1742
  %v2339 = vunpack.c.h.b16 %v1742
  %v2340 = vunpack.c.l.b16 %v1743
  %v2341 = vunpack.c.h.b16 %v1743
  %v2342 = vunpack.c.l.b16 %v1744
  %v2343 = vunpack.c.h.b16 %v1744
  %v2344 = vunpack.c.l.b16 %v1745
  %v2345 = vunpack.c.h.b16 %v1745
  %v2346 = vunpack.c.l.b16 %v1746
  %v2347 = vunpack.c.h.b16 %v1746
  %v2348 = vunpack.c.l.b16 %v1747
  %v2349 = vunpack.c.h.b16 %v1747
  %v2350 = vpack.c.b16 %v2290, %v2286
  %v2351 = vpack.c.b16 %v2291, %v2287
  %v2352 = vpack.c.b16 %v2292, %v2288
  %v2353 = vpack.c.b16 %v2293, %v2289
  %v2354 = vpack.c.b16 %v2298, %v2294
  %v2355 = vpack.c.b16 %v2299, %v2295
  %v2356 = vpack.c.b16 %v2300, %v2296
  %v2357 = vpack.c.b16 %v2301, %v2297
  %v2358 = vpack.c.b16 %v2306, %v2302
  %v2359 = vpack.c.b16 %v2307, %v2303
  %v2360 = vpack.c.b16 %v2308, %v2304
  %v2361 = vpack.c.b16 %v2309, %v2305
  %v2362 = vpack.c.b16 %v2314, %v2310
  %v2363 = vpack.c.b16 %v2315, %v2311
  %v2364 = vpack.c.b16 %v2316, %v2312
  %v2365 = vpack.c.b16 %v2317, %v2313
  %v2366 = vpack.c.b16 %v2322, %v2318
  %v2367 = vpack.c.b16 %v2323, %v2319
  %v2368 = vpack.c.b16 %v2324, %v2320
  %v2369 = vpack.c.b16 %v2325, %v2321
  %v2370 = vpack.c.b16 %v2330, %v2326
  %v2371 = vpack.c.b16 %v2331, %v2327
  %v2372 = vpack.c.b16 %v2332, %v2328
  %v2373 = vpack.c.b16 %v2333, %v2329
  %v2374 = vpack.c.b16 %v2338, %v2334
  %v2375 = vpack.c.b16 %v2339, %v2335
  %v2376 = vpack.c.b16 %v2340, %v2336
  %v2377 = vpack.c.b16 %v2341, %v2337
  %v2378 = vpack.c.b16 %v2346, %v2342
  %v2379 = vpack.c.b16 %v2347, %v2343
  %v2380 = vpack.c.b16 %v2348, %v2344
  %v2381 = vpack.c.b16 %v2349, %v2345
  %2414 = vmatpush.bf16.msra.mxu0 %v2378
  %2415 = vmatpush.bf16.msra.mxu0 %v2374
  %2416 = vmatpush.bf16.msra.mxu0 %v2370
  %2417 = vmatpush.bf16.msra.mxu0 %v2366
  %2418 = vmatpush.bf16.msra.mxu0 %v2362
  %2419 = vmatpush.bf16.msra.mxu0 %v2358
  %2420 = vmatpush.bf16.msra.mxu0 %v2354
  %2421 = vmatpush.bf16.msra.mxu0 %v2350
  %2422 = vmatmul.bf16.gmra.mxu0 0
  %v2423 = vpop.f32.mrf.mxu0
  %v2424 = vadd.f32 0.0, %v2423
  %v2425 = vpop.f32.mrf.mxu0
  %v2426 = vadd.f32 0.0, %v2425
  %2427 = vdwg.mxu0
  %2428 = vmatpush.bf16.msra.mxu0 %v2379
  %2429 = vmatpush.bf16.msra.mxu0 %v2375
  %2430 = vmatpush.bf16.msra.mxu0 %v2371
  %2431 = vmatpush.bf16.msra.mxu0 %v2367
  %2432 = vmatpush.bf16.msra.mxu0 %v2363
  %2433 = vmatpush.bf16.msra.mxu0 %v2359
  %2434 = vmatpush.bf16.msra.mxu0 %v2355
  %2435 = vmatpush.bf16.msra.mxu0 %v2351
  %2436 = vmatmul.bf16.gmra.mxu0 0
  %v2437 = vpop.f32.mrf.mxu0
  %v2438 = vadd.f32 0.0, %v2437
  %v2439 = vpop.f32.mrf.mxu0
  %v2440 = vadd.f32 0.0, %v2439
  %2441 = vdwg.mxu0
  %2442 = vmatpush.bf16.msra.mxu0 %v2380
  %2443 = vmatpush.bf16.msra.mxu0 %v2376
  %2444 = vmatpush.bf16.msra.mxu0 %v2372
  %2445 = vmatpush.bf16.msra.mxu0 %v2368
  %2446 = vmatpush.bf16.msra.mxu0 %v2364
  %2447 = vmatpush.bf16.msra.mxu0 %v2360
  %2448 = vmatpush.bf16.msra.mxu0 %v2356
  %2449 = vmatpush.bf16.msra.mxu0 %v2352
  %2450 = vmatmul.bf16.gmra.mxu0 0
  %v2451 = vpop.f32.mrf.mxu0
  %v2452 = vadd.f32 0.0, %v2451
  %v2453 = vpop.f32.mrf.mxu0
  %v2454 = vadd.f32 0.0, %v2453
  %2455 = vdwg.mxu0
  %2456 = vmatpush.bf16.msra.mxu0 %v2381
  %2457 = vmatpush.bf16.msra.mxu0 %v2377
  %2458 = vmatpush.bf16.msra.mxu0 %v2373
  %2459 = vmatpush.bf16.msra.mxu0 %v2369
  %2460 = vmatpush.bf16.msra.mxu0 %v2365
  %2461 = vmatpush.bf16.msra.mxu0 %v2361
  %2462 = vmatpush.bf16.msra.mxu0 %v2357
  %2463 = vmatpush.bf16.msra.mxu0 %v2353
  %2464 = vmatmul.bf16.gmra.mxu0 0
  %v2465 = vpop.f32.mrf.mxu0
  %v2466 = vadd.f32 0.0, %v2465
  %v2467 = vpop.f32.mrf.mxu0
  %v2468 = vadd.f32 0.0, %v2467
  %2469 = vdwg.mxu0
  %v2470 = vadd.f32 %v2246, %v2424
  %v2471 = vadd.f32 %v2247, %v2438
  %v2472 = vadd.f32 %v2248, %v2452
  %v2473 = vadd.f32 %v2249, %v2466
  %v2474 = vadd.f32 %v2250, %v2426
  %v2475 = vadd.f32 %v2251, %v2440
  %v2476 = vadd.f32 %v2252, %v2454
  %v2477 = vadd.f32 %v2253, %v2468
  %v2478 = vtanh.pop %v2470
  %v2479 = vtanh.pop %v2471
  %v2480 = vtanh.pop %v2472
  %v2481 = vtanh.pop %v2473
  %v2482 = vtanh.pop %v2474
  %v2483 = vtanh.pop %v2475
  %v2484 = vtanh.pop %v2476
  %v2485 = vtanh.pop %v2477
  %v2486 = vmul.f32 %v2478, 0.5
  %v2487 = vmul.f32 %v2479, 0.5
  %v2488 = vmul.f32 %v2480, 0.5
  %v2489 = vmul.f32 %v2482, 0.5
  %v2490 = vmul.f32 %v2483, 0.5
  %v2491 = vmul.f32 %v2484, 0.5
  %v2492 = vadd.f32 %v2486, 0.5
  %v2493 = vadd.f32 %v2487, 0.5
  %v2494 = vadd.f32 %v2488, 0.5
  %v2495 = vadd.f32 %v2489, 0.5
  %v2496 = vadd.f32 %v2490, 0.5
  %v2497 = vadd.f32 %v2491, 0.5
  %v2498 = vmul.f32 %v2493, 0.0
  %v2499 = vmul.f32 %v2496, 0.0
  %v2500 = vmul.f32 %v2492, %v2481
  %v2501 = vmul.f32 %v2495, %v2485
  %v2502 = vadd.f32 %v2498, %v2500
  %v2503 = vadd.f32 %v2499, %v2501
  %v2504 = vtanh.pop %v2502
  %v2505 = vtanh.pop %v2503
  %v2506 = vmul.f32 %v2494, %v2504
  %v2507 = vmul.f32 %v2497, %v2505
  %v2508 = vpack.c.bf16 %v2506, %v2506
  %v2509 = vpack.c.bf16 %v2507, %v2507
  %2510 = vst [vmem:[%s8] sm:$0xf] %v2508
  %2511 = vst [vmem:[%s8 + $0x4] sm:$0xf] %v2509
  %v2512 = vld [vmem:[%s858] sm:$0xff]
  %v2513 = vld [vmem:[%s858 + $0x8] sm:$0xff]
  %v2514 = vld [vmem:[%s858 + $0x10] sm:$0xff]
  %v2515 = vld [vmem:[%s858 + $0x18] sm:$0xff]
  %v2516 = vunpack.c.l.bf16 %v2512
  %v2517 = vunpack.c.h.bf16 %v2512
  %v2518 = vunpack.c.l.bf16 %v2513
  %v2519 = vunpack.c.h.bf16 %v2513
  %v2520 = vunpack.c.l.bf16 %v2514
  %v2521 = vunpack.c.h.bf16 %v2514
  %v2522 = vunpack.c.l.bf16 %v2515
  %v2523 = vunpack.c.h.bf16 %v2515
  %v2526 = vunpack.c.l.b16 %v2508
  %v2527 = vunpack.c.l.b16 %v2509
  %v2528 = vpack.c.b16 %v2527, %v2526
  %2530 = vmatpush.bf16.msra.mxu0 %v2378
  %2531 = vmatpush.bf16.msra.mxu0 %v2374
  %2532 = vmatpush.bf16.msra.mxu0 %v2370
  %2533 = vmatpush.bf16.msra.mxu0 %v2366
  %2534 = vmatpush.bf16.msra.mxu0 %v2362
  %2535 = vmatpush.bf16.msra.mxu0 %v2358
  %2536 = vmatpush.bf16.msra.mxu0 %v2354
  %2537 = vmatpush.bf16.msra.mxu0 %v2350
  %2538 = vmatmul.bf16.gmra.mxu0 %v2528
  %v2539 = vpop.f32.mrf.mxu0
  %v2540 = vadd.f32 0.0, %v2539
  %v2541 = vpop.f32.mrf.mxu0
  %v2542 = vadd.f32 0.0, %v2541
  %2543 = vdwg.mxu0
  %2544 = vmatpush.bf16.msra.mxu0 %v2379
  %2545 = vmatpush.bf16.msra.mxu0 %v2375
  %2546 = vmatpush.bf16.msra.mxu0 %v2371
  %2547 = vmatpush.bf16.msra.mxu0 %v2367
  %2548 = vmatpush.bf16.msra.mxu0 %v2363
  %2549 = vmatpush.bf16.msra.mxu0 %v2359
  %2550 = vmatpush.bf16.msra.mxu0 %v2355
  %2551 = vmatpush.bf16.msra.mxu0 %v2351
  %2552 = vmatmul.bf16.gmra.mxu0 %v2528
  %v2553 = vpop.f32.mrf.mxu0
  %v2554 = vadd.f32 0.0, %v2553
  %v2555 = vpop.f32.mrf.mxu0
  %v2556 = vadd.f32 0.0, %v2555
  %2557 = vdwg.mxu0
  %2558 = vmatpush.bf16.msra.mxu0 %v2380
  %2559 = vmatpush.bf16.msra.mxu0 %v2376
  %2560 = vmatpush.bf16.msra.mxu0 %v2372
  %2561 = vmatpush.bf16.msra.mxu0 %v2368
  %2562 = vmatpush.bf16.msra.mxu0 %v2364
  %2563 = vmatpush.bf16.msra.mxu0 %v2360
  %2564 = vmatpush.bf16.msra.mxu0 %v2356
  %2565 = vmatpush.bf16.msra.mxu0 %v2352
  %2566 = vmatmul.bf16.gmra.mxu0 %v2528
  %v2567 = vpop.f32.mrf.mxu0
  %v2568 = vadd.f32 0.0, %v2567
  %v2569 = vpop.f32.mrf.mxu0
  %v2570 = vadd.f32 0.0, %v2569
  %2571 = vdwg.mxu0
  %2572 = vmatpush.bf16.msra.mxu0 %v2381
  %2573 = vmatpush.bf16.msra.mxu0 %v2377
  %2574 = vmatpush.bf16.msra.mxu0 %v2373
  %2575 = vmatpush.bf16.msra.mxu0 %v2369
  %2576 = vmatpush.bf16.msra.mxu0 %v2365
  %2577 = vmatpush.bf16.msra.mxu0 %v2361
  %2578 = vmatpush.bf16.msra.mxu0 %v2357
  %2579 = vmatpush.bf16.msra.mxu0 %v2353
  %2580 = vmatmul.bf16.gmra.mxu0 %v2528
  %v2581 = vpop.f32.mrf.mxu0
  %v2582 = vadd.f32 0.0, %v2581
  %v2583 = vpop.f32.mrf.mxu0
  %v2584 = vadd.f32 0.0, %v2583
  %2585 = vdwg.mxu0
  %v2586 = vadd.f32 %v2516, %v2540
  %v2587 = vadd.f32 %v2517, %v2554
  %v2588 = vadd.f32 %v2518, %v2568
  %v2589 = vadd.f32 %v2519, %v2582
  %v2590 = vadd.f32 %v2520, %v2542
  %v2591 = vadd.f32 %v2521, %v2556
  %v2592 = vadd.f32 %v2522, %v2570
  %v2593 = vadd.f32 %v2523, %v2584
  %v2594 = vtanh.pop %v2586
  %v2595 = vtanh.pop %v2587
  %v2596 = vtanh.pop %v2588
  %v2597 = vtanh.pop %v2589
  %v2598 = vtanh.pop %v2590
  %v2599 = vtanh.pop %v2591
  %v2600 = vtanh.pop %v2592
  %v2601 = vtanh.pop %v2593
  %v2602 = vmul.f32 %v2594, 0.5
  %v2603 = vmul.f32 %v2595, 0.5
  %v2604 = vmul.f32 %v2596, 0.5
  %v2605 = vmul.f32 %v2598, 0.5
  %v2606 = vmul.f32 %v2599, 0.5
  %v2607 = vmul.f32 %v2600, 0.5
  %v2608 = vadd.f32 %v2602, 0.5
  %v2609 = vadd.f32 %v2603, 0.5
  %v2610 = vadd.f32 %v2604, 0.5
  %v2611 = vadd.f32 %v2605, 0.5
  %v2612 = vadd.f32 %v2606, 0.5
  %v2613 = vadd.f32 %v2607, 0.5
  %v2614 = vmul.f32 %v2609, %v2502
  %v2615 = vmul.f32 %v2612, %v2503
  %v2616 = vmul.f32 %v2608, %v2597
  %v2617 = vmul.f32 %v2611, %v2601
  %v2618 = vadd.f32 %v2614, %v2616
  %v2619 = vadd.f32 %v2615, %v2617
  %v2620 = vtanh.pop %v2618
  %v2621 = vtanh.pop %v2619
  %v2622 = vmul.f32 %v2610, %v2620
  %v2623 = vmul.f32 %v2613, %v2621
  %v2624 = vpack.c.bf16 %v2622, %v2622
  %v2625 = vpack.c.bf16 %v2623, %v2623
  %s2626 = scalar_lea.vmem %s8, 8
  %2627 = vst [vmem:[%s2626] sm:$0xf] %v2624
  %2628 = vst [vmem:[%s2626 + $0x4] sm:$0xf] %v2625
  %v2629 = vld [vmem:[%s976] sm:$0xff]
  %v2630 = vld [vmem:[%s976 + $0x8] sm:$0xff]
  %v2631 = vld [vmem:[%s976 + $0x10] sm:$0xff]
  %v2632 = vld [vmem:[%s976 + $0x18] sm:$0xff]
  %v2633 = vunpack.c.l.bf16 %v2629
  %v2634 = vunpack.c.h.bf16 %v2629
  %v2635 = vunpack.c.l.bf16 %v2630
  %v2636 = vunpack.c.h.bf16 %v2630
  %v2637 = vunpack.c.l.bf16 %v2631
  %v2638 = vunpack.c.h.bf16 %v2631
  %v2639 = vunpack.c.l.bf16 %v2632
  %v2640 = vunpack.c.h.bf16 %v2632
  %v2643 = vunpack.c.l.b16 %v2624
  %v2644 = vunpack.c.l.b16 %v2625
  %v2645 = vpack.c.b16 %v2644, %v2643
  %2647 = vmatpush.bf16.msra.mxu0 %v2378
  %2648 = vmatpush.bf16.msra.mxu0 %v2374
  %2649 = vmatpush.bf16.msra.mxu0 %v2370
  %2650 = vmatpush.bf16.msra.mxu0 %v2366
  %2651 = vmatpush.bf16.msra.mxu0 %v2362
  %2652 = vmatpush.bf16.msra.mxu0 %v2358
  %2653 = vmatpush.bf16.msra.mxu0 %v2354
  %2654 = vmatpush.bf16.msra.mxu0 %v2350
  %2655 = vmatmul.bf16.gmra.mxu0 %v2645
  %v2656 = vpop.f32.mrf.mxu0
  %v2657 = vadd.f32 0.0, %v2656
  %v2658 = vpop.f32.mrf.mxu0
  %v2659 = vadd.f32 0.0, %v2658
  %2660 = vdwg.mxu0
  %2661 = vmatpush.bf16.msra.mxu0 %v2379
  %2662 = vmatpush.bf16.msra.mxu0 %v2375
  %2663 = vmatpush.bf16.msra.mxu0 %v2371
  %2664 = vmatpush.bf16.msra.mxu0 %v2367
  %2665 = vmatpush.bf16.msra.mxu0 %v2363
  %2666 = vmatpush.bf16.msra.mxu0 %v2359
  %2667 = vmatpush.bf16.msra.mxu0 %v2355
  %2668 = vmatpush.bf16.msra.mxu0 %v2351
  %2669 = vmatmul.bf16.gmra.mxu0 %v2645
  %v2670 = vpop.f32.mrf.mxu0
  %v2671 = vadd.f32 0.0, %v2670
  %v2672 = vpop.f32.mrf.mxu0
  %v2673 = vadd.f32 0.0, %v2672
  %2674 = vdwg.mxu0
  %2675 = vmatpush.bf16.msra.mxu0 %v2380
  %2676 = vmatpush.bf16.msra.mxu0 %v2376
  %2677 = vmatpush.bf16.msra.mxu0 %v2372
  %2678 = vmatpush.bf16.msra.mxu0 %v2368
  %2679 = vmatpush.bf16.msra.mxu0 %v2364
  %2680 = vmatpush.bf16.msra.mxu0 %v2360
  %2681 = vmatpush.bf16.msra.mxu0 %v2356
  %2682 = vmatpush.bf16.msra.mxu0 %v2352
  %2683 = vmatmul.bf16.gmra.mxu0 %v2645
  %v2684 = vpop.f32.mrf.mxu0
  %v2685 = vadd.f32 0.0, %v2684
  %v2686 = vpop.f32.mrf.mxu0
  %v2687 = vadd.f32 0.0, %v2686
  %2688 = vdwg.mxu0
  %2689 = vmatpush.bf16.msra.mxu0 %v2381
  %2690 = vmatpush.bf16.msra.mxu0 %v2377
  %2691 = vmatpush.bf16.msra.mxu0 %v2373
  %2692 = vmatpush.bf16.msra.mxu0 %v2369
  %2693 = vmatpush.bf16.msra.mxu0 %v2365
  %2694 = vmatpush.bf16.msra.mxu0 %v2361
  %2695 = vmatpush.bf16.msra.mxu0 %v2357
  %2696 = vmatpush.bf16.msra.mxu0 %v2353
  %2697 = vmatmul.bf16.gmra.mxu0 %v2645
  %v2698 = vpop.f32.mrf.mxu0
  %v2699 = vadd.f32 0.0, %v2698
  %v2700 = vpop.f32.mrf.mxu0
  %v2701 = vadd.f32 0.0, %v2700
  %2702 = vdwg.mxu0
  %v2703 = vadd.f32 %v2633, %v2657
  %v2704 = vadd.f32 %v2634, %v2671
  %v2705 = vadd.f32 %v2635, %v2685
  %v2706 = vadd.f32 %v2636, %v2699
  %v2707 = vadd.f32 %v2637, %v2659
  %v2708 = vadd.f32 %v2638, %v2673
  %v2709 = vadd.f32 %v2639, %v2687
  %v2710 = vadd.f32 %v2640, %v2701
  %v2711 = vtanh.pop %v2703
  %v2712 = vtanh.pop %v2704
  %v2713 = vtanh.pop %v2705
  %v2714 = vtanh.pop %v2706
  %v2715 = vtanh.pop %v2707
  %v2716 = vtanh.pop %v2708
  %v2717 = vtanh.pop %v2709
  %v2718 = vtanh.pop %v2710
  %v2719 = vmul.f32 %v2711, 0.5
  %v2720 = vmul.f32 %v2712, 0.5
  %v2721 = vmul.f32 %v2713, 0.5
  %v2722 = vmul.f32 %v2715, 0.5
  %v2723 = vmul.f32 %v2716, 0.5
  %v2724 = vmul.f32 %v2717, 0.5
  %v2725 = vadd.f32 %v2719, 0.5
  %v2726 = vadd.f32 %v2720, 0.5
  %v2727 = vadd.f32 %v2721, 0.5
  %v2728 = vadd.f32 %v2722, 0.5
  %v2729 = vadd.f32 %v2723, 0.5
  %v2730 = vadd.f32 %v2724, 0.5
  %v2731 = vmul.f32 %v2726, %v2618
  %v2732 = vmul.f32 %v2729, %v2619
  %v2733 = vmul.f32 %v2725, %v2714
  %v2734 = vmul.f32 %v2728, %v2718
  %v2735 = vadd.f32 %v2731, %v2733
  %v2736 = vadd.f32 %v2732, %v2734
  %v2737 = vtanh.pop %v2735
  %v2738 = vtanh.pop %v2736
  %v2739 = vmul.f32 %v2727, %v2737
  %v2740 = vmul.f32 %v2730, %v2738
  %v2741 = vpack.c.bf16 %v2739, %v2739
  %v2742 = vpack.c.bf16 %v2740, %v2740
  %s2743 = scalar_lea.vmem %s8, 16
  %2744 = vst [vmem:[%s2743] sm:$0xf] %v2741
  %2745 = vst [vmem:[%s2743 + $0x4] sm:$0xf] %v2742
  %v2746 = vld [vmem:[%s1094] sm:$0xff]
  %v2747 = vld [vmem:[%s1094 + $0x8] sm:$0xff]
  %v2748 = vld [vmem:[%s1094 + $0x10] sm:$0xff]
  %v2749 = vld [vmem:[%s1094 + $0x18] sm:$0xff]
  %v2750 = vunpack.c.l.bf16 %v2746
  %v2751 = vunpack.c.h.bf16 %v2746
  %v2752 = vunpack.c.l.bf16 %v2747
  %v2753 = vunpack.c.h.bf16 %v2747
  %v2754 = vunpack.c.l.bf16 %v2748
  %v2755 = vunpack.c.h.bf16 %v2748
  %v2756 = vunpack.c.l.bf16 %v2749
  %v2757 = vunpack.c.h.bf16 %v2749
  %v2760 = vunpack.c.l.b16 %v2741
  %v2761 = vunpack.c.l.b16 %v2742
  %v2762 = vpack.c.b16 %v2761, %v2760
  %2764 = vmatpush.bf16.msra.mxu0 %v2378
  %2765 = vmatpush.bf16.msra.mxu0 %v2374
  %2766 = vmatpush.bf16.msra.mxu0 %v2370
  %2767 = vmatpush.bf16.msra.mxu0 %v2366
  %2768 = vmatpush.bf16.msra.mxu0 %v2362
  %2769 = vmatpush.bf16.msra.mxu0 %v2358
  %2770 = vmatpush.bf16.msra.mxu0 %v2354
  %2771 = vmatpush.bf16.msra.mxu0 %v2350
  %2772 = vmatmul.bf16.gmra.mxu0 %v2762
  %v2773 = vpop.f32.mrf.mxu0
  %v2774 = vadd.f32 0.0, %v2773
  %v2775 = vpop.f32.mrf.mxu0
  %v2776 = vadd.f32 0.0, %v2775
  %2777 = vdwg.mxu0
  %2778 = vmatpush.bf16.msra.mxu0 %v2379
  %2779 = vmatpush.bf16.msra.mxu0 %v2375
  %2780 = vmatpush.bf16.msra.mxu0 %v2371
  %2781 = vmatpush.bf16.msra.mxu0 %v2367
  %2782 = vmatpush.bf16.msra.mxu0 %v2363
  %2783 = vmatpush.bf16.msra.mxu0 %v2359
  %2784 = vmatpush.bf16.msra.mxu0 %v2355
  %2785 = vmatpush.bf16.msra.mxu0 %v2351
  %2786 = vmatmul.bf16.gmra.mxu0 %v2762
  %v2787 = vpop.f32.mrf.mxu0
  %v2788 = vadd.f32 0.0, %v2787
  %v2789 = vpop.f32.mrf.mxu0
  %v2790 = vadd.f32 0.0, %v2789
  %2791 = vdwg.mxu0
  %2792 = vmatpush.bf16.msra.mxu0 %v2380
  %2793 = vmatpush.bf16.msra.mxu0 %v2376
  %2794 = vmatpush.bf16.msra.mxu0 %v2372
  %2795 = vmatpush.bf16.msra.mxu0 %v2368
  %2796 = vmatpush.bf16.msra.mxu0 %v2364
  %2797 = vmatpush.bf16.msra.mxu0 %v2360
  %2798 = vmatpush.bf16.msra.mxu0 %v2356
  %2799 = vmatpush.bf16.msra.mxu0 %v2352
  %2800 = vmatmul.bf16.gmra.mxu0 %v2762
  %v2801 = vpop.f32.mrf.mxu0
  %v2802 = vadd.f32 0.0, %v2801
  %v2803 = vpop.f32.mrf.mxu0
  %v2804 = vadd.f32 0.0, %v2803
  %2805 = vdwg.mxu0
  %2806 = vmatpush.bf16.msra.mxu0 %v2381
  %2807 = vmatpush.bf16.msra.mxu0 %v2377
  %2808 = vmatpush.bf16.msra.mxu0 %v2373
  %2809 = vmatpush.bf16.msra.mxu0 %v2369
  %2810 = vmatpush.bf16.msra.mxu0 %v2365
  %2811 = vmatpush.bf16.msra.mxu0 %v2361
  %2812 = vmatpush.bf16.msra.mxu0 %v2357
  %2813 = vmatpush.bf16.msra.mxu0 %v2353
  %2814 = vmatmul.bf16.gmra.mxu0 %v2762
  %v2815 = vpop.f32.mrf.mxu0
  %v2816 = vadd.f32 0.0, %v2815
  %v2817 = vpop.f32.mrf.mxu0
  %v2818 = vadd.f32 0.0, %v2817
  %2819 = vdwg.mxu0
  %v2820 = vadd.f32 %v2750, %v2774
  %v2821 = vadd.f32 %v2751, %v2788
  %v2822 = vadd.f32 %v2752, %v2802
  %v2823 = vadd.f32 %v2753, %v2816
  %v2824 = vadd.f32 %v2754, %v2776
  %v2825 = vadd.f32 %v2755, %v2790
  %v2826 = vadd.f32 %v2756, %v2804
  %v2827 = vadd.f32 %v2757, %v2818
  %v2828 = vtanh.pop %v2820
  %v2829 = vtanh.pop %v2821
  %v2830 = vtanh.pop %v2822
  %v2831 = vtanh.pop %v2823
  %v2832 = vtanh.pop %v2824
  %v2833 = vtanh.pop %v2825
  %v2834 = vtanh.pop %v2826
  %v2835 = vtanh.pop %v2827
  %v2836 = vmul.f32 %v2828, 0.5
  %v2837 = vmul.f32 %v2829, 0.5
  %v2838 = vmul.f32 %v2830, 0.5
  %v2839 = vmul.f32 %v2832, 0.5
  %v2840 = vmul.f32 %v2833, 0.5
  %v2841 = vmul.f32 %v2834, 0.5
  %v2842 = vadd.f32 %v2836, 0.5
  %v2843 = vadd.f32 %v2837, 0.5
  %v2844 = vadd.f32 %v2838, 0.5
  %v2845 = vadd.f32 %v2839, 0.5
  %v2846 = vadd.f32 %v2840, 0.5
  %v2847 = vadd.f32 %v2841, 0.5
  %v2848 = vmul.f32 %v2843, %v2735
  %v2849 = vmul.f32 %v2846, %v2736
  %v2850 = vmul.f32 %v2842, %v2831
  %v2851 = vmul.f32 %v2845, %v2835
  %v2852 = vadd.f32 %v2848, %v2850
  %v2853 = vadd.f32 %v2849, %v2851
  %v2854 = vtanh.pop %v2852
  %v2855 = vtanh.pop %v2853
  %v2856 = vmul.f32 %v2844, %v2854
  %v2857 = vmul.f32 %v2847, %v2855
  %v2858 = vpack.c.bf16 %v2856, %v2856
  %v2859 = vpack.c.bf16 %v2857, %v2857
  %s2860 = scalar_lea.vmem %s8, 24
  %2861 = vst [vmem:[%s2860] sm:$0xf] %v2858
  %2862 = vst [vmem:[%s2860 + $0x4] sm:$0xf] %v2859
  %v2863 = vld [vmem:[%s1212] sm:$0xff]
  %v2864 = vld [vmem:[%s1212 + $0x8] sm:$0xff]
  %v2865 = vld [vmem:[%s1212 + $0x10] sm:$0xff]
  %v2866 = vld [vmem:[%s1212 + $0x18] sm:$0xff]
  %v2867 = vunpack.c.l.bf16 %v2863
  %v2868 = vunpack.c.h.bf16 %v2863
  %v2869 = vunpack.c.l.bf16 %v2864
  %v2870 = vunpack.c.h.bf16 %v2864
  %v2871 = vunpack.c.l.bf16 %v2865
  %v2872 = vunpack.c.h.bf16 %v2865
  %v2873 = vunpack.c.l.bf16 %v2866
  %v2874 = vunpack.c.h.bf16 %v2866
  %v2877 = vunpack.c.l.b16 %v2858
  %v2878 = vunpack.c.l.b16 %v2859
  %v2879 = vpack.c.b16 %v2878, %v2877
  %2881 = vmatpush.bf16.msra.mxu0 %v2378
  %2882 = vmatpush.bf16.msra.mxu0 %v2374
  %2883 = vmatpush.bf16.msra.mxu0 %v2370
  %2884 = vmatpush.bf16.msra.mxu0 %v2366
  %2885 = vmatpush.bf16.msra.mxu0 %v2362
  %2886 = vmatpush.bf16.msra.mxu0 %v2358
  %2887 = vmatpush.bf16.msra.mxu0 %v2354
  %2888 = vmatpush.bf16.msra.mxu0 %v2350
  %2889 = vmatmul.bf16.gmra.mxu0 %v2879
  %v2890 = vpop.f32.mrf.mxu0
  %v2891 = vadd.f32 0.0, %v2890
  %v2892 = vpop.f32.mrf.mxu0
  %v2893 = vadd.f32 0.0, %v2892
  %2894 = vdwg.mxu0
  %2895 = vmatpush.bf16.msra.mxu0 %v2379
  %2896 = vmatpush.bf16.msra.mxu0 %v2375
  %2897 = vmatpush.bf16.msra.mxu0 %v2371
  %2898 = vmatpush.bf16.msra.mxu0 %v2367
  %2899 = vmatpush.bf16.msra.mxu0 %v2363
  %2900 = vmatpush.bf16.msra.mxu0 %v2359
  %2901 = vmatpush.bf16.msra.mxu0 %v2355
  %2902 = vmatpush.bf16.msra.mxu0 %v2351
  %2903 = vmatmul.bf16.gmra.mxu0 %v2879
  %v2904 = vpop.f32.mrf.mxu0
  %v2905 = vadd.f32 0.0, %v2904
  %v2906 = vpop.f32.mrf.mxu0
  %v2907 = vadd.f32 0.0, %v2906
  %2908 = vdwg.mxu0
  %2909 = vmatpush.bf16.msra.mxu0 %v2380
  %2910 = vmatpush.bf16.msra.mxu0 %v2376
  %2911 = vmatpush.bf16.msra.mxu0 %v2372
  %2912 = vmatpush.bf16.msra.mxu0 %v2368
  %2913 = vmatpush.bf16.msra.mxu0 %v2364
  %2914 = vmatpush.bf16.msra.mxu0 %v2360
  %2915 = vmatpush.bf16.msra.mxu0 %v2356
  %2916 = vmatpush.bf16.msra.mxu0 %v2352
  %2917 = vmatmul.bf16.gmra.mxu0 %v2879
  %v2918 = vpop.f32.mrf.mxu0
  %v2919 = vadd.f32 0.0, %v2918
  %v2920 = vpop.f32.mrf.mxu0
  %v2921 = vadd.f32 0.0, %v2920
  %2922 = vdwg.mxu0
  %2923 = vmatpush.bf16.msra.mxu0 %v2381
  %2924 = vmatpush.bf16.msra.mxu0 %v2377
  %2925 = vmatpush.bf16.msra.mxu0 %v2373
  %2926 = vmatpush.bf16.msra.mxu0 %v2369
  %2927 = vmatpush.bf16.msra.mxu0 %v2365
  %2928 = vmatpush.bf16.msra.mxu0 %v2361
  %2929 = vmatpush.bf16.msra.mxu0 %v2357
  %2930 = vmatpush.bf16.msra.mxu0 %v2353
  %2931 = vmatmul.bf16.gmra.mxu0 %v2879
  %v2932 = vpop.f32.mrf.mxu0
  %v2933 = vadd.f32 0.0, %v2932
  %v2934 = vpop.f32.mrf.mxu0
  %v2935 = vadd.f32 0.0, %v2934
  %2936 = vdwg.mxu0
  %v2937 = vadd.f32 %v2867, %v2891
  %v2938 = vadd.f32 %v2868, %v2905
  %v2939 = vadd.f32 %v2869, %v2919
  %v2940 = vadd.f32 %v2870, %v2933
  %v2941 = vadd.f32 %v2871, %v2893
  %v2942 = vadd.f32 %v2872, %v2907
  %v2943 = vadd.f32 %v2873, %v2921
  %v2944 = vadd.f32 %v2874, %v2935
  %v2945 = vtanh.pop %v2937
  %v2946 = vtanh.pop %v2938
  %v2947 = vtanh.pop %v2939
  %v2948 = vtanh.pop %v2940
  %v2949 = vtanh.pop %v2941
  %v2950 = vtanh.pop %v2942
  %v2951 = vtanh.pop %v2943
  %v2952 = vtanh.pop %v2944
  %v2953 = vmul.f32 %v2945, 0.5
  %v2954 = vmul.f32 %v2946, 0.5
  %v2955 = vmul.f32 %v2947, 0.5
  %v2956 = vmul.f32 %v2949, 0.5
  %v2957 = vmul.f32 %v2950, 0.5
  %v2958 = vmul.f32 %v2951, 0.5
  %v2959 = vadd.f32 %v2953, 0.5
  %v2960 = vadd.f32 %v2954, 0.5
  %v2961 = vadd.f32 %v2955, 0.5
  %v2962 = vadd.f32 %v2956, 0.5
  %v2963 = vadd.f32 %v2957, 0.5
  %v2964 = vadd.f32 %v2958, 0.5
  %v2965 = vmul.f32 %v2960, %v2852
  %v2966 = vmul.f32 %v2963, %v2853
  %v2967 = vmul.f32 %v2959, %v2948
  %v2968 = vmul.f32 %v2962, %v2952
  %v2969 = vadd.f32 %v2965, %v2967
  %v2970 = vadd.f32 %v2966, %v2968
  %v2971 = vtanh.pop %v2969
  %v2972 = vtanh.pop %v2970
  %v2973 = vmul.f32 %v2961, %v2971
  %v2974 = vmul.f32 %v2964, %v2972
  %v2975 = vpack.c.bf16 %v2973, %v2973
  %v2976 = vpack.c.bf16 %v2974, %v2974
  %s2977 = scalar_lea.vmem %s8, 32
  %2978 = vst [vmem:[%s2977] sm:$0xf] %v2975
  %2979 = vst [vmem:[%s2977 + $0x4] sm:$0xf] %v2976
  %v2980 = vld [vmem:[%s1330] sm:$0xff]
  %v2981 = vld [vmem:[%s1330 + $0x8] sm:$0xff]
  %v2982 = vld [vmem:[%s1330 + $0x10] sm:$0xff]
  %v2983 = vld [vmem:[%s1330 + $0x18] sm:$0xff]
  %v2984 = vunpack.c.l.bf16 %v2980
  %v2985 = vunpack.c.h.bf16 %v2980
  %v2986 = vunpack.c.l.bf16 %v2981
  %v2987 = vunpack.c.h.bf16 %v2981
  %v2988 = vunpack.c.l.bf16 %v2982
  %v2989 = vunpack.c.h.bf16 %v2982
  %v2990 = vunpack.c.l.bf16 %v2983
  %v2991 = vunpack.c.h.bf16 %v2983
  %v2994 = vunpack.c.l.b16 %v2975
  %v2995 = vunpack.c.l.b16 %v2976
  %v2996 = vpack.c.b16 %v2995, %v2994
  %2998 = vmatpush.bf16.msra.mxu0 %v2378
  %2999 = vmatpush.bf16.msra.mxu0 %v2374
  %3000 = vmatpush.bf16.msra.mxu0 %v2370
  %3001 = vmatpush.bf16.msra.mxu0 %v2366
  %3002 = vmatpush.bf16.msra.mxu0 %v2362
  %3003 = vmatpush.bf16.msra.mxu0 %v2358
  %3004 = vmatpush.bf16.msra.mxu0 %v2354
  %3005 = vmatpush.bf16.msra.mxu0 %v2350
  %3006 = vmatmul.bf16.gmra.mxu0 %v2996
  %v3007 = vpop.f32.mrf.mxu0
  %v3008 = vadd.f32 0.0, %v3007
  %v3009 = vpop.f32.mrf.mxu0
  %v3010 = vadd.f32 0.0, %v3009
  %3011 = vdwg.mxu0
  %3012 = vmatpush.bf16.msra.mxu0 %v2379
  %3013 = vmatpush.bf16.msra.mxu0 %v2375
  %3014 = vmatpush.bf16.msra.mxu0 %v2371
  %3015 = vmatpush.bf16.msra.mxu0 %v2367
  %3016 = vmatpush.bf16.msra.mxu0 %v2363
  %3017 = vmatpush.bf16.msra.mxu0 %v2359
  %3018 = vmatpush.bf16.msra.mxu0 %v2355
  %3019 = vmatpush.bf16.msra.mxu0 %v2351
  %3020 = vmatmul.bf16.gmra.mxu0 %v2996
  %v3021 = vpop.f32.mrf.mxu0
  %v3022 = vadd.f32 0.0, %v3021
  %v3023 = vpop.f32.mrf.mxu0
  %v3024 = vadd.f32 0.0, %v3023
  %3025 = vdwg.mxu0
  %3026 = vmatpush.bf16.msra.mxu0 %v2380
  %3027 = vmatpush.bf16.msra.mxu0 %v2376
  %3028 = vmatpush.bf16.msra.mxu0 %v2372
  %3029 = vmatpush.bf16.msra.mxu0 %v2368
  %3030 = vmatpush.bf16.msra.mxu0 %v2364
  %3031 = vmatpush.bf16.msra.mxu0 %v2360
  %3032 = vmatpush.bf16.msra.mxu0 %v2356
  %3033 = vmatpush.bf16.msra.mxu0 %v2352
  %3034 = vmatmul.bf16.gmra.mxu0 %v2996
  %v3035 = vpop.f32.mrf.mxu0
  %v3036 = vadd.f32 0.0, %v3035
  %v3037 = vpop.f32.mrf.mxu0
  %v3038 = vadd.f32 0.0, %v3037
  %3039 = vdwg.mxu0
  %3040 = vmatpush.bf16.msra.mxu0 %v2381
  %3041 = vmatpush.bf16.msra.mxu0 %v2377
  %3042 = vmatpush.bf16.msra.mxu0 %v2373
  %3043 = vmatpush.bf16.msra.mxu0 %v2369
  %3044 = vmatpush.bf16.msra.mxu0 %v2365
  %3045 = vmatpush.bf16.msra.mxu0 %v2361
  %3046 = vmatpush.bf16.msra.mxu0 %v2357
  %3047 = vmatpush.bf16.msra.mxu0 %v2353
  %3048 = vmatmul.bf16.gmra.mxu0 %v2996
  %v3049 = vpop.f32.mrf.mxu0
  %v3050 = vadd.f32 0.0, %v3049
  %v3051 = vpop.f32.mrf.mxu0
  %v3052 = vadd.f32 0.0, %v3051
  %3053 = vdwg.mxu0
  %v3054 = vadd.f32 %v2984, %v3008
  %v3055 = vadd.f32 %v2985, %v3022
  %v3056 = vadd.f32 %v2986, %v3036
  %v3057 = vadd.f32 %v2987, %v3050
  %v3058 = vadd.f32 %v2988, %v3010
  %v3059 = vadd.f32 %v2989, %v3024
  %v3060 = vadd.f32 %v2990, %v3038
  %v3061 = vadd.f32 %v2991, %v3052
  %v3062 = vtanh.pop %v3054
  %v3063 = vtanh.pop %v3055
  %v3064 = vtanh.pop %v3056
  %v3065 = vtanh.pop %v3057
  %v3066 = vtanh.pop %v3058
  %v3067 = vtanh.pop %v3059
  %v3068 = vtanh.pop %v3060
  %v3069 = vtanh.pop %v3061
  %v3070 = vmul.f32 %v3062, 0.5
  %v3071 = vmul.f32 %v3063, 0.5
  %v3072 = vmul.f32 %v3064, 0.5
  %v3073 = vmul.f32 %v3066, 0.5
  %v3074 = vmul.f32 %v3067, 0.5
  %v3075 = vmul.f32 %v3068, 0.5
  %v3076 = vadd.f32 %v3070, 0.5
  %v3077 = vadd.f32 %v3071, 0.5
  %v3078 = vadd.f32 %v3072, 0.5
  %v3079 = vadd.f32 %v3073, 0.5
  %v3080 = vadd.f32 %v3074, 0.5
  %v3081 = vadd.f32 %v3075, 0.5
  %v3082 = vmul.f32 %v3077, %v2969
  %v3083 = vmul.f32 %v3080, %v2970
  %v3084 = vmul.f32 %v3076, %v3065
  %v3085 = vmul.f32 %v3079, %v3069
  %v3086 = vadd.f32 %v3082, %v3084
  %v3087 = vadd.f32 %v3083, %v3085
  %v3088 = vtanh.pop %v3086
  %v3089 = vtanh.pop %v3087
  %v3090 = vmul.f32 %v3078, %v3088
  %v3091 = vmul.f32 %v3081, %v3089
  %v3092 = vpack.c.bf16 %v3090, %v3090
  %v3093 = vpack.c.bf16 %v3091, %v3091
  %s3094 = scalar_lea.vmem %s8, 40
  %3095 = vst [vmem:[%s3094] sm:$0xf] %v3092
  %3096 = vst [vmem:[%s3094 + $0x4] sm:$0xf] %v3093
  %v3097 = vld [vmem:[%s1448] sm:$0xff]
  %v3098 = vld [vmem:[%s1448 + $0x8] sm:$0xff]
  %v3099 = vld [vmem:[%s1448 + $0x10] sm:$0xff]
  %v3100 = vld [vmem:[%s1448 + $0x18] sm:$0xff]
  %v3101 = vunpack.c.l.bf16 %v3097
  %v3102 = vunpack.c.h.bf16 %v3097
  %v3103 = vunpack.c.l.bf16 %v3098
  %v3104 = vunpack.c.h.bf16 %v3098
  %v3105 = vunpack.c.l.bf16 %v3099
  %v3106 = vunpack.c.h.bf16 %v3099
  %v3107 = vunpack.c.l.bf16 %v3100
  %v3108 = vunpack.c.h.bf16 %v3100
  %v3111 = vunpack.c.l.b16 %v3092
  %v3112 = vunpack.c.l.b16 %v3093
  %v3113 = vpack.c.b16 %v3112, %v3111
  %3115 = vmatpush.bf16.msra.mxu0 %v2378
  %3116 = vmatpush.bf16.msra.mxu0 %v2374
  %3117 = vmatpush.bf16.msra.mxu0 %v2370
  %3118 = vmatpush.bf16.msra.mxu0 %v2366
  %3119 = vmatpush.bf16.msra.mxu0 %v2362
  %3120 = vmatpush.bf16.msra.mxu0 %v2358
  %3121 = vmatpush.bf16.msra.mxu0 %v2354
  %3122 = vmatpush.bf16.msra.mxu0 %v2350
  %3123 = vmatmul.bf16.gmra.mxu0 %v3113
  %v3124 = vpop.f32.mrf.mxu0
  %v3125 = vadd.f32 0.0, %v3124
  %v3126 = vpop.f32.mrf.mxu0
  %v3127 = vadd.f32 0.0, %v3126
  %3128 = vdwg.mxu0
  %3129 = vmatpush.bf16.msra.mxu0 %v2379
  %3130 = vmatpush.bf16.msra.mxu0 %v2375
  %3131 = vmatpush.bf16.msra.mxu0 %v2371
  %3132 = vmatpush.bf16.msra.mxu0 %v2367
  %3133 = vmatpush.bf16.msra.mxu0 %v2363
  %3134 = vmatpush.bf16.msra.mxu0 %v2359
  %3135 = vmatpush.bf16.msra.mxu0 %v2355
  %3136 = vmatpush.bf16.msra.mxu0 %v2351
  %3137 = vmatmul.bf16.gmra.mxu0 %v3113
  %v3138 = vpop.f32.mrf.mxu0
  %v3139 = vadd.f32 0.0, %v3138
  %v3140 = vpop.f32.mrf.mxu0
  %v3141 = vadd.f32 0.0, %v3140
  %3142 = vdwg.mxu0
  %3143 = vmatpush.bf16.msra.mxu0 %v2380
  %3144 = vmatpush.bf16.msra.mxu0 %v2376
  %3145 = vmatpush.bf16.msra.mxu0 %v2372
  %3146 = vmatpush.bf16.msra.mxu0 %v2368
  %3147 = vmatpush.bf16.msra.mxu0 %v2364
  %3148 = vmatpush.bf16.msra.mxu0 %v2360
  %3149 = vmatpush.bf16.msra.mxu0 %v2356
  %3150 = vmatpush.bf16.msra.mxu0 %v2352
  %3151 = vmatmul.bf16.gmra.mxu0 %v3113
  %v3152 = vpop.f32.mrf.mxu0
  %v3153 = vadd.f32 0.0, %v3152
  %v3154 = vpop.f32.mrf.mxu0
  %v3155 = vadd.f32 0.0, %v3154
  %3156 = vdwg.mxu0
  %3157 = vmatpush.bf16.msra.mxu0 %v2381
  %3158 = vmatpush.bf16.msra.mxu0 %v2377
  %3159 = vmatpush.bf16.msra.mxu0 %v2373
  %3160 = vmatpush.bf16.msra.mxu0 %v2369
  %3161 = vmatpush.bf16.msra.mxu0 %v2365
  %3162 = vmatpush.bf16.msra.mxu0 %v2361
  %3163 = vmatpush.bf16.msra.mxu0 %v2357
  %3164 = vmatpush.bf16.msra.mxu0 %v2353
  %3165 = vmatmul.bf16.gmra.mxu0 %v3113
  %v3166 = vpop.f32.mrf.mxu0
  %v3167 = vadd.f32 0.0, %v3166
  %v3168 = vpop.f32.mrf.mxu0
  %v3169 = vadd.f32 0.0, %v3168
  %3170 = vdwg.mxu0
  %v3171 = vadd.f32 %v3101, %v3125
  %v3172 = vadd.f32 %v3102, %v3139
  %v3173 = vadd.f32 %v3103, %v3153
  %v3174 = vadd.f32 %v3104, %v3167
  %v3175 = vadd.f32 %v3105, %v3127
  %v3176 = vadd.f32 %v3106, %v3141
  %v3177 = vadd.f32 %v3107, %v3155
  %v3178 = vadd.f32 %v3108, %v3169
  %v3179 = vtanh.pop %v3171
  %v3180 = vtanh.pop %v3172
  %v3181 = vtanh.pop %v3173
  %v3182 = vtanh.pop %v3174
  %v3183 = vtanh.pop %v3175
  %v3184 = vtanh.pop %v3176
  %v3185 = vtanh.pop %v3177
  %v3186 = vtanh.pop %v3178
  %v3187 = vmul.f32 %v3179, 0.5
  %v3188 = vmul.f32 %v3180, 0.5
  %v3189 = vmul.f32 %v3181, 0.5
  %v3190 = vmul.f32 %v3183, 0.5
  %v3191 = vmul.f32 %v3184, 0.5
  %v3192 = vmul.f32 %v3185, 0.5
  %v3193 = vadd.f32 %v3187, 0.5
  %v3194 = vadd.f32 %v3188, 0.5
  %v3195 = vadd.f32 %v3189, 0.5
  %v3196 = vadd.f32 %v3190, 0.5
  %v3197 = vadd.f32 %v3191, 0.5
  %v3198 = vadd.f32 %v3192, 0.5
  %v3199 = vmul.f32 %v3194, %v3086
  %v3200 = vmul.f32 %v3197, %v3087
  %v3201 = vmul.f32 %v3193, %v3182
  %v3202 = vmul.f32 %v3196, %v3186
  %v3203 = vadd.f32 %v3199, %v3201
  %v3204 = vadd.f32 %v3200, %v3202
  %v3205 = vtanh.pop %v3203
  %v3206 = vtanh.pop %v3204
  %v3207 = vmul.f32 %v3195, %v3205
  %v3208 = vmul.f32 %v3198, %v3206
  %v3209 = vpack.c.bf16 %v3207, %v3207
  %v3210 = vpack.c.bf16 %v3208, %v3208
  %s3211 = scalar_lea.vmem %s8, 48
  %3212 = vst [vmem:[%s3211] sm:$0xf] %v3209
  %3213 = vst [vmem:[%s3211 + $0x4] sm:$0xf] %v3210
  %v3214 = vld [vmem:[%s1566] sm:$0xff]
  %v3215 = vld [vmem:[%s1566 + $0x8] sm:$0xff]
  %v3216 = vld [vmem:[%s1566 + $0x10] sm:$0xff]
  %v3217 = vld [vmem:[%s1566 + $0x18] sm:$0xff]
  %v3218 = vunpack.c.l.bf16 %v3214
  %v3219 = vunpack.c.h.bf16 %v3214
  %v3220 = vunpack.c.l.bf16 %v3215
  %v3221 = vunpack.c.h.bf16 %v3215
  %v3222 = vunpack.c.l.bf16 %v3216
  %v3223 = vunpack.c.h.bf16 %v3216
  %v3224 = vunpack.c.l.bf16 %v3217
  %v3225 = vunpack.c.h.bf16 %v3217
  %v3228 = vunpack.c.l.b16 %v3209
  %v3229 = vunpack.c.l.b16 %v3210
  %v3230 = vpack.c.b16 %v3229, %v3228
  %3232 = vmatpush.bf16.msra.mxu0 %v2378
  %3233 = vmatpush.bf16.msra.mxu0 %v2374
  %3234 = vmatpush.bf16.msra.mxu0 %v2370
  %3235 = vmatpush.bf16.msra.mxu0 %v2366
  %3236 = vmatpush.bf16.msra.mxu0 %v2362
  %3237 = vmatpush.bf16.msra.mxu0 %v2358
  %3238 = vmatpush.bf16.msra.mxu0 %v2354
  %3239 = vmatpush.bf16.msra.mxu0 %v2350
  %3240 = vmatmul.bf16.gmra.mxu0 %v3230
  %v3241 = vpop.f32.mrf.mxu0
  %v3242 = vadd.f32 0.0, %v3241
  %v3243 = vpop.f32.mrf.mxu0
  %v3244 = vadd.f32 0.0, %v3243
  %3245 = vdwg.mxu0
  %3246 = vmatpush.bf16.msra.mxu0 %v2379
  %3247 = vmatpush.bf16.msra.mxu0 %v2375
  %3248 = vmatpush.bf16.msra.mxu0 %v2371
  %3249 = vmatpush.bf16.msra.mxu0 %v2367
  %3250 = vmatpush.bf16.msra.mxu0 %v2363
  %3251 = vmatpush.bf16.msra.mxu0 %v2359
  %3252 = vmatpush.bf16.msra.mxu0 %v2355
  %3253 = vmatpush.bf16.msra.mxu0 %v2351
  %3254 = vmatmul.bf16.gmra.mxu0 %v3230
  %v3255 = vpop.f32.mrf.mxu0
  %v3256 = vadd.f32 0.0, %v3255
  %v3257 = vpop.f32.mrf.mxu0
  %v3258 = vadd.f32 0.0, %v3257
  %3259 = vdwg.mxu0
  %3260 = vmatpush.bf16.msra.mxu0 %v2380
  %3261 = vmatpush.bf16.msra.mxu0 %v2376
  %3262 = vmatpush.bf16.msra.mxu0 %v2372
  %3263 = vmatpush.bf16.msra.mxu0 %v2368
  %3264 = vmatpush.bf16.msra.mxu0 %v2364
  %3265 = vmatpush.bf16.msra.mxu0 %v2360
  %3266 = vmatpush.bf16.msra.mxu0 %v2356
  %3267 = vmatpush.bf16.msra.mxu0 %v2352
  %3268 = vmatmul.bf16.gmra.mxu0 %v3230
  %v3269 = vpop.f32.mrf.mxu0
  %v3270 = vadd.f32 0.0, %v3269
  %v3271 = vpop.f32.mrf.mxu0
  %v3272 = vadd.f32 0.0, %v3271
  %3273 = vdwg.mxu0
  %3274 = vmatpush.bf16.msra.mxu0 %v2381
  %3275 = vmatpush.bf16.msra.mxu0 %v2377
  %3276 = vmatpush.bf16.msra.mxu0 %v2373
  %3277 = vmatpush.bf16.msra.mxu0 %v2369
  %3278 = vmatpush.bf16.msra.mxu0 %v2365
  %3279 = vmatpush.bf16.msra.mxu0 %v2361
  %3280 = vmatpush.bf16.msra.mxu0 %v2357
  %3281 = vmatpush.bf16.msra.mxu0 %v2353
  %3282 = vmatmul.bf16.gmra.mxu0 %v3230
  %v3283 = vpop.f32.mrf.mxu0
  %v3284 = vadd.f32 0.0, %v3283
  %v3285 = vpop.f32.mrf.mxu0
  %v3286 = vadd.f32 0.0, %v3285
  %3287 = vdwg.mxu0
  %v3288 = vadd.f32 %v3218, %v3242
  %v3289 = vadd.f32 %v3219, %v3256
  %v3290 = vadd.f32 %v3220, %v3270
  %v3291 = vadd.f32 %v3221, %v3284
  %v3292 = vadd.f32 %v3222, %v3244
  %v3293 = vadd.f32 %v3223, %v3258
  %v3294 = vadd.f32 %v3224, %v3272
  %v3295 = vadd.f32 %v3225, %v3286
  %v3296 = vtanh.pop %v3288
  %v3297 = vtanh.pop %v3289
  %v3298 = vtanh.pop %v3290
  %v3299 = vtanh.pop %v3291
  %v3300 = vtanh.pop %v3292
  %v3301 = vtanh.pop %v3293
  %v3302 = vtanh.pop %v3294
  %v3303 = vtanh.pop %v3295
  %v3304 = vmul.f32 %v3296, 0.5
  %v3305 = vmul.f32 %v3297, 0.5
  %v3306 = vmul.f32 %v3298, 0.5
  %v3307 = vmul.f32 %v3300, 0.5
  %v3308 = vmul.f32 %v3301, 0.5
  %v3309 = vmul.f32 %v3302, 0.5
  %v3310 = vadd.f32 %v3304, 0.5
  %v3311 = vadd.f32 %v3305, 0.5
  %v3312 = vadd.f32 %v3306, 0.5
  %v3313 = vadd.f32 %v3307, 0.5
  %v3314 = vadd.f32 %v3308, 0.5
  %v3315 = vadd.f32 %v3309, 0.5
  %v3316 = vmul.f32 %v3311, %v3203
  %v3317 = vmul.f32 %v3314, %v3204
  %v3318 = vmul.f32 %v3310, %v3299
  %v3319 = vmul.f32 %v3313, %v3303
  %v3320 = vadd.f32 %v3316, %v3318
  %v3321 = vadd.f32 %v3317, %v3319
  %v3322 = vtanh.pop %v3320
  %v3323 = vtanh.pop %v3321
  %v3324 = vmul.f32 %v3312, %v3322
  %v3325 = vmul.f32 %v3315, %v3323
  %v3326 = vpack.c.bf16 %v3324, %v3324
  %v3327 = vpack.c.bf16 %v3325, %v3325
  %s3328 = scalar_lea.vmem %s8, 56
  %3329 = vst [vmem:[%s3328] sm:$0xf] %v3326
  %3330 = vst [vmem:[%s3328 + $0x4] sm:$0xf] %v3327
  %v3331 = vld [vmem:[%s8] sm:$0xf]
  %v3332 = vld [vmem:[%s8 + $0x4] sm:$0xf]
  %v3333 = vld [vmem:[%s8 + $0x8] sm:$0xf]
  %v3334 = vld [vmem:[%s8 + $0xc] sm:$0xf]
  %v3335 = vld [vmem:[%s8 + $0x10] sm:$0xf]
  %v3336 = vld [vmem:[%s8 + $0x14] sm:$0xf]
  %v3337 = vld [vmem:[%s8 + $0x18] sm:$0xf]
  %v3338 = vld [vmem:[%s8 + $0x1c] sm:$0xf]
  %v3339 = vld [vmem:[%s8 + $0x20] sm:$0xf]
  %v3340 = vld [vmem:[%s8 + $0x24] sm:$0xf]
  %v3341 = vld [vmem:[%s8 + $0x28] sm:$0xf]
  %v3342 = vld [vmem:[%s8 + $0x2c] sm:$0xf]
  %v3343 = vld [vmem:[%s8 + $0x30] sm:$0xf]
  %v3344 = vld [vmem:[%s8 + $0x34] sm:$0xf]
  %v3345 = vld [vmem:[%s8 + $0x38] sm:$0xf]
  %v3346 = vld [vmem:[%s8 + $0x3c] sm:$0xf]
  %v3347 = vld [vmem:[%s1] sm:$0xf]
  %v3348 = vld [vmem:[%s1 + $0x4] sm:$0xf]
  %v3349 = vld [vmem:[%s1 + $0x8] sm:$0xf]
  %v3350 = vld [vmem:[%s1 + $0xc] sm:$0xf]
  %v3351 = vld [vmem:[%s1 + $0x10] sm:$0xf]
  %v3352 = vld [vmem:[%s1 + $0x14] sm:$0xf]
  %v3353 = vld [vmem:[%s1 + $0x18] sm:$0xf]
  %v3354 = vld [vmem:[%s1 + $0x1c] sm:$0xf]
  %v3355 = vld [vmem:[%s1 + $0x20] sm:$0xf]
  %v3356 = vld [vmem:[%s1 + $0x24] sm:$0xf]
  %v3357 = vld [vmem:[%s1 + $0x28] sm:$0xf]
  %v3358 = vld [vmem:[%s1 + $0x2c] sm:$0xf]
  %v3359 = vld [vmem:[%s1 + $0x30] sm:$0xf]
  %v3360 = vld [vmem:[%s1 + $0x34] sm:$0xf]
  %v3361 = vld [vmem:[%s1 + $0x38] sm:$0xf]
  %v3362 = vld [vmem:[%s1 + $0x3c] sm:$0xf]
  %3364 = vset.pattern.permute.xlu0 0
  %3365 = vperm.xlu0 %3364, %v3347
  %v3366 = vpop.permute.xlu0 %3365
  %v3369 = vunpack.c.l.s4 839922192
  %v3370 = vunpack.c.0.s8 %v3369
  %v3371 = vperm.slane %v3366, %v3370
  %3373 = vset.pattern.permute.xlu0 0
  %3374 = vperm.xlu0 %3373, %v3348
  %v3375 = vpop.permute.xlu0 %3374
  %v3378 = vunpack.c.l.s4 839922192
  %v3379 = vunpack.c.0.s8 %v3378
  %v3380 = vperm.slane %v3375, %v3379
  %3382 = vset.pattern.permute.xlu0 0
  %3383 = vperm.xlu0 %3382, %v3349
  %v3384 = vpop.permute.xlu0 %3383
  %v3387 = vunpack.c.l.s4 839922192
  %v3388 = vunpack.c.0.s8 %v3387
  %v3389 = vperm.slane %v3384, %v3388
  %3391 = vset.pattern.permute.xlu0 0
  %3392 = vperm.xlu0 %3391, %v3350
  %v3393 = vpop.permute.xlu0 %3392
  %v3396 = vunpack.c.l.s4 839922192
  %v3397 = vunpack.c.0.s8 %v3396
  %v3398 = vperm.slane %v3393, %v3397
  %3400 = vset.pattern.permute.xlu0 0
  %3401 = vperm.xlu0 %3400, %v3351
  %v3402 = vpop.permute.xlu0 %3401
  %v3405 = vunpack.c.l.s4 839922192
  %v3406 = vunpack.c.0.s8 %v3405
  %v3407 = vperm.slane %v3402, %v3406
  %3409 = vset.pattern.permute.xlu0 0
  %3410 = vperm.xlu0 %3409, %v3352
  %v3411 = vpop.permute.xlu0 %3410
  %v3414 = vunpack.c.l.s4 839922192
  %v3415 = vunpack.c.0.s8 %v3414
  %v3416 = vperm.slane %v3411, %v3415
  %3418 = vset.pattern.permute.xlu0 0
  %3419 = vperm.xlu0 %3418, %v3353
  %v3420 = vpop.permute.xlu0 %3419
  %v3423 = vunpack.c.l.s4 839922192
  %v3424 = vunpack.c.0.s8 %v3423
  %v3425 = vperm.slane %v3420, %v3424
  %3427 = vset.pattern.permute.xlu0 0
  %3428 = vperm.xlu0 %3427, %v3354
  %v3429 = vpop.permute.xlu0 %3428
  %v3432 = vunpack.c.l.s4 839922192
  %v3433 = vunpack.c.0.s8 %v3432
  %v3434 = vperm.slane %v3429, %v3433
  %3436 = vset.pattern.permute.xlu0 0
  %3437 = vperm.xlu0 %3436, %v3355
  %v3438 = vpop.permute.xlu0 %3437
  %v3441 = vunpack.c.l.s4 839922192
  %v3442 = vunpack.c.0.s8 %v3441
  %v3443 = vperm.slane %v3438, %v3442
  %3445 = vset.pattern.permute.xlu0 0
  %3446 = vperm.xlu0 %3445, %v3356
  %v3447 = vpop.permute.xlu0 %3446
  %v3450 = vunpack.c.l.s4 839922192
  %v3451 = vunpack.c.0.s8 %v3450
  %v3452 = vperm.slane %v3447, %v3451
  %3454 = vset.pattern.permute.xlu0 0
  %3455 = vperm.xlu0 %3454, %v3357
  %v3456 = vpop.permute.xlu0 %3455
  %v3459 = vunpack.c.l.s4 839922192
  %v3460 = vunpack.c.0.s8 %v3459
  %v3461 = vperm.slane %v3456, %v3460
  %3463 = vset.pattern.permute.xlu0 0
  %3464 = vperm.xlu0 %3463, %v3358
  %v3465 = vpop.permute.xlu0 %3464
  %v3468 = vunpack.c.l.s4 839922192
  %v3469 = vunpack.c.0.s8 %v3468
  %v3470 = vperm.slane %v3465, %v3469
  %3472 = vset.pattern.permute.xlu0 0
  %3473 = vperm.xlu0 %3472, %v3359
  %v3474 = vpop.permute.xlu0 %3473
  %v3477 = vunpack.c.l.s4 839922192
  %v3478 = vunpack.c.0.s8 %v3477
  %v3479 = vperm.slane %v3474, %v3478
  %3481 = vset.pattern.permute.xlu0 0
  %3482 = vperm.xlu0 %3481, %v3360
  %v3483 = vpop.permute.xlu0 %3482
  %v3486 = vunpack.c.l.s4 839922192
  %v3487 = vunpack.c.0.s8 %v3486
  %v3488 = vperm.slane %v3483, %v3487
  %3490 = vset.pattern.permute.xlu0 0
  %3491 = vperm.xlu0 %3490, %v3361
  %v3492 = vpop.permute.xlu0 %3491
  %v3495 = vunpack.c.l.s4 839922192
  %v3496 = vunpack.c.0.s8 %v3495
  %v3497 = vperm.slane %v3492, %v3496
  %3499 = vset.pattern.permute.xlu0 0
  %3500 = vperm.xlu0 %3499, %v3362
  %v3501 = vpop.permute.xlu0 %3500
  %v3504 = vunpack.c.l.s4 839922192
  %v3505 = vunpack.c.0.s8 %v3504
  %v3506 = vperm.slane %v3501, %v3505
  %v3507 = vunpack.c.l.bf16 %v3331
  %v3508 = vunpack.c.l.bf16 %v3332
  %v3509 = vunpack.c.l.bf16 %v3333
  %v3510 = vunpack.c.l.bf16 %v3334
  %v3511 = vunpack.c.l.bf16 %v3335
  %v3512 = vunpack.c.l.bf16 %v3336
  %v3513 = vunpack.c.l.bf16 %v3337
  %v3514 = vunpack.c.l.bf16 %v3338
  %v3515 = vunpack.c.l.bf16 %v3339
  %v3516 = vunpack.c.l.bf16 %v3340
  %v3517 = vunpack.c.l.bf16 %v3341
  %v3518 = vunpack.c.l.bf16 %v3342
  %v3519 = vunpack.c.l.bf16 %v3343
  %v3520 = vunpack.c.l.bf16 %v3344
  %v3521 = vunpack.c.l.bf16 %v3345
  %v3522 = vunpack.c.l.bf16 %v3346
  %v3523 = vunpack.c.l.bf16 %v3371
  %v3524 = vunpack.c.l.bf16 %v3380
  %v3525 = vunpack.c.l.bf16 %v3389
  %v3526 = vunpack.c.l.bf16 %v3398
  %v3527 = vunpack.c.l.bf16 %v3407
  %v3528 = vunpack.c.l.bf16 %v3416
  %v3529 = vunpack.c.l.bf16 %v3425
  %v3530 = vunpack.c.l.bf16 %v3434
  %v3531 = vunpack.c.l.bf16 %v3443
  %v3532 = vunpack.c.l.bf16 %v3452
  %v3533 = vunpack.c.l.bf16 %v3461
  %v3534 = vunpack.c.l.bf16 %v3470
  %v3535 = vunpack.c.l.bf16 %v3479
  %v3536 = vunpack.c.l.bf16 %v3488
  %v3537 = vunpack.c.l.bf16 %v3497
  %v3538 = vunpack.c.l.bf16 %v3506
  %v3539 = vmul.f32 %v3507, %v3523
  %v3540 = vmul.f32 %v3508, %v3524
  %v3541 = vmul.f32 %v3509, %v3525
  %v3542 = vmul.f32 %v3510, %v3526
  %v3543 = vmul.f32 %v3511, %v3527
  %v3544 = vmul.f32 %v3512, %v3528
  %v3545 = vmul.f32 %v3513, %v3529
  %v3546 = vmul.f32 %v3514, %v3530
  %v3547 = vmul.f32 %v3515, %v3531
  %v3548 = vmul.f32 %v3516, %v3532
  %v3549 = vmul.f32 %v3517, %v3533
  %v3550 = vmul.f32 %v3518, %v3534
  %v3551 = vmul.f32 %v3519, %v3535
  %v3552 = vmul.f32 %v3520, %v3536
  %v3553 = vmul.f32 %v3521, %v3537
  %v3554 = vmul.f32 %v3522, %v3538
  %v3555 = vpack.c.bf16 %v3539, %v3539
  %v3556 = vpack.c.bf16 %v3540, %v3540
  %v3557 = vpack.c.bf16 %v3541, %v3541
  %v3558 = vpack.c.bf16 %v3542, %v3542
  %v3559 = vpack.c.bf16 %v3543, %v3543
  %v3560 = vpack.c.bf16 %v3544, %v3544
  %v3561 = vpack.c.bf16 %v3545, %v3545
  %v3562 = vpack.c.bf16 %v3546, %v3546
  %v3563 = vpack.c.bf16 %v3547, %v3547
  %v3564 = vpack.c.bf16 %v3548, %v3548
  %v3565 = vpack.c.bf16 %v3549, %v3549
  %v3566 = vpack.c.bf16 %v3550, %v3550
  %v3567 = vpack.c.bf16 %v3551, %v3551
  %v3568 = vpack.c.bf16 %v3552, %v3552
  %v3569 = vpack.c.bf16 %v3553, %v3553
  %v3570 = vpack.c.bf16 %v3554, %v3554
  %3571 = vst [vmem:[%s8] sm:$0xf] %v3555
  %3572 = vst [vmem:[%s8 + $0x4] sm:$0xf] %v3556
  %3573 = vst [vmem:[%s8 + $0x8] sm:$0xf] %v3557
  %3574 = vst [vmem:[%s8 + $0xc] sm:$0xf] %v3558
  %3575 = vst [vmem:[%s8 + $0x10] sm:$0xf] %v3559
  %3576 = vst [vmem:[%s8 + $0x14] sm:$0xf] %v3560
  %3577 = vst [vmem:[%s8 + $0x18] sm:$0xf] %v3561
  %3578 = vst [vmem:[%s8 + $0x1c] sm:$0xf] %v3562
  %3579 = vst [vmem:[%s8 + $0x20] sm:$0xf] %v3563
  %3580 = vst [vmem:[%s8 + $0x24] sm:$0xf] %v3564
  %3581 = vst [vmem:[%s8 + $0x28] sm:$0xf] %v3565
  %3582 = vst [vmem:[%s8 + $0x2c] sm:$0xf] %v3566
  %3583 = vst [vmem:[%s8 + $0x30] sm:$0xf] %v3567
  %3584 = vst [vmem:[%s8 + $0x34] sm:$0xf] %v3568
  %3585 = vst [vmem:[%s8 + $0x38] sm:$0xf] %v3569
  %3586 = vst [vmem:[%s8 + $0x3c] sm:$0xf] %v3570
  // Predicated region
  $region34: #{rnnlm_forward.2} parent=0 // pred_check
    _
  $region35: #{rnnlm_forward.2} parent=0 // pred_check_branch
    %3588 = sbr.rel (0) target = $region37
  $region36: #{rnnlm_forward.2} parent=0 // pred_region
    _
  $region37: #{rnnlm_forward.2} parent=0 // pred_fallthru
    _
  // Predicated region
  $region38: #{rnnlm_forward.2} parent=0 // pred_check
    _
  $region39: #{rnnlm_forward.2} parent=0 // pred_check_branch
    %3590 = sbr.rel (0) target = $region41
  $region40: #{rnnlm_forward.2} parent=0 // pred_region
    _
  $region41: #{rnnlm_forward.2} parent=0 // pred_fallthru
    _

</llo_original>
